<compile_context>
chip_gen: v7x
topology: tpu7x:2x2x1
jax: 0.10.0
libtpu: 0.0.40
codegen_flags: <defaults>
</compile_context>

<pallas_src>
import math
import functools

import jax
import jax.numpy as jnp
import numpy as np
from jax.experimental import pallas as pl
from jax.experimental.pallas import tpu as pltpu


# ----------------------------------------------------------------------------
# In-kernel GRU layer, fully unrolled over time.
# PyTorch gate order (r, z, n):
#   r = sigmoid(Wi_r x + bi_r + Wh_r h + bh_r)
#   z = sigmoid(Wi_z x + bi_z + Wh_z h + bh_z)
#   n = tanh   (Wi_n x + bi_n + r * (Wh_n h + bh_n))
#   h' = (1 - z) * n + z * h
# ----------------------------------------------------------------------------
def _run_gru_unrolled(x_flat, T, B, h0, wih_ref, whh_ref, bfold_ref, bhn_ref,
                      collect_outputs):
    """x_flat: (T*B, in) value; h0: (B, H) value.
    wih_ref: (3, in, H); whh_ref: (3, H, H);
    bfold_ref: (3, 1, H) = [bi_r+bh_r, bi_z+bh_z, bi_n]; bhn_ref: (1, H) = bh_n."""
    # Hoisted input projections: no dependence on h -> all T steps at once.
    gi_r = jnp.dot(x_flat, wih_ref[0], preferred_element_type=jnp.float32) + bfold_ref[0]
    gi_z = jnp.dot(x_flat, wih_ref[1], preferred_element_type=jnp.float32) + bfold_ref[1]
    gi_n = jnp.dot(x_flat, wih_ref[2], preferred_element_type=jnp.float32) + bfold_ref[2]

    w_hr = whh_ref[0]
    w_hz = whh_ref[1]
    w_hn = whh_ref[2]
    b_hn = bhn_ref[...]

    h = h0
    ys = []
    for t in range(T):                      # static unroll; T is small
        lo = t * B
        gh_r = jnp.dot(h, w_hr, preferred_element_type=jnp.float32)
        gh_z = jnp.dot(h, w_hz, preferred_element_type=jnp.float32)
        gh_n = jnp.dot(h, w_hn, preferred_element_type=jnp.float32) + b_hn
        r = jax.nn.sigmoid(gi_r[lo:lo + B] + gh_r)
        z = jax.nn.sigmoid(gi_z[lo:lo + B] + gh_z)
        n = jnp.tanh(gi_n[lo:lo + B] + r * gh_n)
        h = (1.0 - z) * n + z * h
        if collect_outputs:
            ys.append(h)
    return ys, h


def _make_fused_kernel(num_layers, T_src, T_trg, B, H):
    n_layer_refs = 4 * num_layers

    def kernel(*refs):
        src_ref, trg_ref = refs[0], refs[1]
        enc_refs = refs[2:2 + n_layer_refs]
        dec_refs = refs[2 + n_layer_refs:2 + 2 * n_layer_refs]
        fcw_ref = refs[2 + 2 * n_layer_refs]
        fcb_ref = refs[3 + 2 * n_layer_refs]
        out_ref = refs[4 + 2 * n_layer_refs]
        hn_ref = refs[5 + 2 * n_layer_refs]

        # ------------------------------ encoder -----------------------------
        x = src_ref[...]                              # (T_src*B, I)
        enc_hns = []
        for l in range(num_layers):
            wih, whh, bfold, bhn = enc_refs[4 * l:4 * l + 4]
            need_seq = l < num_layers - 1             # encoder_output is unused
            ys, hn_l = _run_gru_unrolled(
                x, T_src, B, jnp.zeros((B, H), jnp.float32),
                wih, whh, bfold, bhn, need_seq)
            enc_hns.append(hn_l)
            hn_ref[l] = hn_l
            if need_seq:
                x = jnp.concatenate(ys, axis=0)

        # ------------------------------ decoder -----------------------------
        # encoder_hn2decoder_h0 is the identity for the unidirectional GRU.
        y = trg_ref[...]                              # (T_trg*B, I)
        for l in range(num_layers):
            wih, whh, bfold, bhn = dec_refs[4 * l:4 * l + 4]
            ys, _ = _run_gru_unrolled(
                y, T_trg, B, enc_hns[l], wih, whh, bfold, bhn, True)
            y = jnp.concatenate(ys, axis=0)           # (T_trg*B, H), VMEM-resident

        # -------------------------- fused final fc --------------------------
        out_ref[...] = (jnp.dot(y, fcw_ref[...],
                                preferred_element_type=jnp.float32)
                        + fcb_ref[...])

    return kernel


# ----------------------------------------------------------------------------
# Parameter construction (deterministic PyTorch-style uniform(-k, k), k=1/sqrt(H))
# and one-time preparation (transposes, per-gate split, bias folding).
# ----------------------------------------------------------------------------
def init_gru_params(key, input_size, hidden_size, num_layers):
    k = 1.0 / math.sqrt(hidden_size)
    layers = []
    for l in range(num_layers):
        in_sz = input_size if l == 0 else hidden_size
        key, k1, k2, k3, k4 = jax.random.split(key, 5)
        w_ih = jax.random.uniform(k1, (3 * hidden_size, in_sz), jnp.float32, -k, k)
        w_hh = jax.random.uniform(k2, (3 * hidden_size, hidden_size), jnp.float32, -k, k)
        b_ih = jax.random.uniform(k3, (3 * hidden_size,), jnp.float32, -k, k)
        b_hh = jax.random.uniform(k4, (3 * hidden_size,), jnp.float32, -k, k)
        layers.append((w_ih, w_hh, b_ih, b_hh))
    return key, layers


def init_params(key, input_size, hidden_size, num_layers):
    key, enc = init_gru_params(key, input_size, hidden_size, num_layers)
    key, dec = init_gru_params(key, input_size, hidden_size, num_layers)
    kfc = 1.0 / math.sqrt(hidden_size)
    key, k1, k2 = jax.random.split(key, 3)
    fc_w = jax.random.uniform(k1, (input_size, hidden_size), jnp.float32, -kfc, kfc)
    fc_b = jax.random.uniform(k2, (input_size,), jnp.float32, -kfc, kfc)
    return {"enc": enc, "dec": dec, "fc_w": fc_w, "fc_b": fc_b}


def prepare_fused_params(params, hidden_size):
    """One-time prep: per-gate transposed weights + folded biases."""
    H = hidden_size

    def prep_layer(w_ih, w_hh, b_ih, b_hh):
        wih = jnp.stack([w_ih[0:H].T, w_ih[H:2 * H].T, w_ih[2 * H:3 * H].T])  # (3, in, H)
        whh = jnp.stack([w_hh[0:H].T, w_hh[H:2 * H].T, w_hh[2 * H:3 * H].T])  # (3, H, H)
        bfold = jnp.stack([(b_ih[0:H] + b_hh[0:H])[None, :],
                           (b_ih[H:2 * H] + b_hh[H:2 * H])[None, :],
                           b_ih[2 * H:3 * H][None, :]])                       # (3, 1, H)
        bhn = b_hh[2 * H:3 * H][None, :]                                      # (1, H)
        return [wih, whh, bfold, bhn]

    enc_flat, dec_flat = [], []
    for lp in params["enc"]:
        enc_flat += prep_layer(*lp)
    for lp in params["dec"]:
        dec_flat += prep_layer(*lp)
    return {"enc_flat": enc_flat, "dec_flat": dec_flat,
            "fc_w_t": jnp.transpose(params["fc_w"]),    # (H, input_size)
            "fc_b2": params["fc_b"][None, :]}           # (1, input_size)


# ----------------------------------------------------------------------------
# EncoderDecoder.forward — single fused pallas_call.
# ----------------------------------------------------------------------------
def encoder_decoder_forward(fused, src, trg, num_layers, hidden_size,
                            is_train=True):
    T_src, B, I = src.shape
    T_trg = trg.shape[0]
    H = hidden_size

    args = ([src.reshape(T_src * B, I), trg.reshape(T_trg * B, I)]
            + fused["enc_flat"] + fused["dec_flat"]
            + [fused["fc_w_t"], fused["fc_b2"]])

    vmem = pl.BlockSpec(memory_space=pltpu.MemorySpace.VMEM)
    out2, hn = pl.pallas_call(
        _make_fused_kernel(num_layers, T_src, T_trg, B, H),
        out_shape=(jax.ShapeDtypeStruct((T_trg * B, I), jnp.float32),
                   jax.ShapeDtypeStruct((num_layers, B, H), jnp.float32)),
        in_specs=[vmem] * len(args),
        out_specs=(vmem, vmem),
    )(*args)

    if not is_train:
        # decoder_h0 == encoder_hn for the unidirectional encoder.
        return hn
    return out2.reshape(T_trg, B, I)        # (trg_seq_len, batch, input_size)


# ----------------------------------------------------------------------------
# Pure-JAX reference (lax.scan) for correctness check.
# ----------------------------------------------------------------------------
def gru_layer_ref(x, h0, w_ih, w_hh, b_ih, b_hh):
    H = h0.shape[-1]

    def step(h, x_t):
        gi = x_t @ w_ih.T + b_ih
        gh = h @ w_hh.T + b_hh
        r = jax.nn.sigmoid(gi[:, :H] + gh[:, :H])
        z = jax.nn.sigmoid(gi[:, H:2 * H] + gh[:, H:2 * H])
        n = jnp.tanh(gi[:, 2 * H:] + r * gh[:, 2 * H:])
        h_new = (1.0 - z) * n + z * h
        return h_new, h_new

    hn, ys = jax.lax.scan(step, h0, x)
    return ys, hn


def forward_ref(params, src, trg, num_layers, hidden_size):
    B = src.shape[1]
    x = src
    hns = []
    for l in range(num_layers):
        x, hn = gru_layer_ref(x, jnp.zeros((B, hidden_size), jnp.float32),
                              *params["enc"][l])
        hns.append(hn)
    dec_h0 = jnp.stack(hns, axis=0)
    y = trg
    for l in range(num_layers):
        y, _ = gru_layer_ref(y, dec_h0[l], *params["dec"][l])
    return y @ params["fc_w"].T + params["fc_b"]


if __name__ == "__main__":
    input_size, hidden_size, num_layers = 8, 32, 1
    src_len, trg_len, batch = 10, 8, 8   # batch multiple of 8 -> aligned per-step slabs

    key = jax.random.PRNGKey(0)
    kp, ks, kt = jax.random.split(key, 3)
    params = init_params(kp, input_size, hidden_size, num_layers)
    fused = prepare_fused_params(params, hidden_size)

    src = jax.random.normal(ks, (src_len, batch, input_size), jnp.float32)
    trg = jax.random.normal(kt, (trg_len, batch, input_size), jnp.float32)

    fwd = functools.partial(encoder_decoder_forward,
                            num_layers=num_layers, hidden_size=hidden_size)
    out = jax.block_until_ready(fwd(fused, src, trg))
    assert out.shape == (trg_len, batch, input_size), out.shape

    ref = jax.block_until_ready(forward_ref(params, src, trg,
                                            num_layers, hidden_size))
    np.testing.assert_allclose(np.asarray(out), np.asarray(ref),
                               rtol=1e-5, atol=1e-5)
    print("KERNEL_OK")
</pallas_src>

<mosaic_0001>
module attributes {stable_mosaic.version = 11 : i64} {
  func.func @kernel(%arg0: memref<80x8xf32, #tpu.memory_space<vmem>>, %arg1: memref<64x8xf32, #tpu.memory_space<vmem>>, %arg2: memref<3x8x32xf32, #tpu.memory_space<vmem>>, %arg3: memref<3x32x32xf32, #tpu.memory_space<vmem>>, %arg4: memref<3x1x32xf32, #tpu.memory_space<vmem>>, %arg5: memref<1x32xf32, #tpu.memory_space<vmem>>, %arg6: memref<3x8x32xf32, #tpu.memory_space<vmem>>, %arg7: memref<3x32x32xf32, #tpu.memory_space<vmem>>, %arg8: memref<3x1x32xf32, #tpu.memory_space<vmem>>, %arg9: memref<1x32xf32, #tpu.memory_space<vmem>>, %arg10: memref<32x8xf32, #tpu.memory_space<vmem>>, %arg11: memref<1x8xf32, #tpu.memory_space<vmem>>, %arg12: memref<64x8xf32, #tpu.memory_space<vmem>>, %arg13: memref<1x8x32xf32, #tpu.memory_space<vmem>>) attributes {dimension_semantics = [], scalar_prefetch = 0 : i64, scratch_operands = 0 : i64, tpu.core_type = #tpu.core_type<tc>} {
    %c0 = arith.constant 0 : index
    %c0_0 = arith.constant 0 : index
    %0 = vector.load %arg0[%c0, %c0_0] : memref<80x8xf32, #tpu.memory_space<vmem>>, vector<80x8xf32>
    %cst = arith.constant 0.000000e+00 : f32
    %1 = vector.broadcast %cst : f32 to vector<8x32xf32>
    %c0_1 = arith.constant 0 : index
    %c0_2 = arith.constant 0 : index
    %c0_3 = arith.constant 0 : index
    %2 = vector.load %arg2[%c0_1, %c0_2, %c0_3] : memref<3x8x32xf32, #tpu.memory_space<vmem>>, vector<1x8x32xf32>
    %3 = vector.shape_cast %2 : vector<1x8x32xf32> to vector<8x32xf32>
    %cst_4 = arith.constant dense<0.000000e+00> : vector<80x32xf32>
    %4 = tpu.matmul %0, %3, %cst_4 {dimension_numbers = #tpu.dot_dimension_numbers<[1], [0], [0], [1], [0, 0, 1, 1], [], []>} : vector<80x8xf32>, vector<8x32xf32>, vector<80x32xf32> -> vector<80x32xf32>
    %c0_5 = arith.constant 0 : index
    %c0_6 = arith.constant 0 : index
    %c0_7 = arith.constant 0 : index
    %5 = vector.load %arg4[%c0_5, %c0_6, %c0_7] : memref<3x1x32xf32, #tpu.memory_space<vmem>>, vector<1x1x32xf32>
    %6 = vector.shape_cast %5 : vector<1x1x32xf32> to vector<1x32xf32>
    %7 = vector.broadcast %6 : vector<1x32xf32> to vector<80x32xf32>
    %8 = arith.addf %4, %7 : vector<80x32xf32>
    %c1 = arith.constant 1 : index
    %c0_8 = arith.constant 0 : index
    %c0_9 = arith.constant 0 : index
    %9 = vector.load %arg2[%c1, %c0_8, %c0_9] : memref<3x8x32xf32, #tpu.memory_space<vmem>>, vector<1x8x32xf32>
    %10 = vector.shape_cast %9 : vector<1x8x32xf32> to vector<8x32xf32>
    %cst_10 = arith.constant dense<0.000000e+00> : vector<80x32xf32>
    %11 = tpu.matmul %0, %10, %cst_10 {dimension_numbers = #tpu.dot_dimension_numbers<[1], [0], [0], [1], [0, 0, 1, 1], [], []>} : vector<80x8xf32>, vector<8x32xf32>, vector<80x32xf32> -> vector<80x32xf32>
    %c1_11 = arith.constant 1 : index
    %c0_12 = arith.constant 0 : index
    %c0_13 = arith.constant 0 : index
    %12 = vector.load %arg4[%c1_11, %c0_12, %c0_13] : memref<3x1x32xf32, #tpu.memory_space<vmem>>, vector<1x1x32xf32>
    %13 = vector.shape_cast %12 : vector<1x1x32xf32> to vector<1x32xf32>
    %14 = vector.broadcast %13 : vector<1x32xf32> to vector<80x32xf32>
    %15 = arith.addf %11, %14 : vector<80x32xf32>
    %c2 = arith.constant 2 : index
    %c0_14 = arith.constant 0 : index
    %c0_15 = arith.constant 0 : index
    %16 = vector.load %arg2[%c2, %c0_14, %c0_15] : memref<3x8x32xf32, #tpu.memory_space<vmem>>, vector<1x8x32xf32>
    %17 = vector.shape_cast %16 : vector<1x8x32xf32> to vector<8x32xf32>
    %cst_16 = arith.constant dense<0.000000e+00> : vector<80x32xf32>
    %18 = tpu.matmul %0, %17, %cst_16 {dimension_numbers = #tpu.dot_dimension_numbers<[1], [0], [0], [1], [0, 0, 1, 1], [], []>} : vector<80x8xf32>, vector<8x32xf32>, vector<80x32xf32> -> vector<80x32xf32>
    %c2_17 = arith.constant 2 : index
    %c0_18 = arith.constant 0 : index
    %c0_19 = arith.constant 0 : index
    %19 = vector.load %arg4[%c2_17, %c0_18, %c0_19] : memref<3x1x32xf32, #tpu.memory_space<vmem>>, vector<1x1x32xf32>
    %20 = vector.shape_cast %19 : vector<1x1x32xf32> to vector<1x32xf32>
    %21 = vector.broadcast %20 : vector<1x32xf32> to vector<80x32xf32>
    %22 = arith.addf %18, %21 : vector<80x32xf32>
    %c0_20 = arith.constant 0 : index
    %c0_21 = arith.constant 0 : index
    %c0_22 = arith.constant 0 : index
    %23 = vector.load %arg3[%c0_20, %c0_21, %c0_22] : memref<3x32x32xf32, #tpu.memory_space<vmem>>, vector<1x32x32xf32>
    %24 = vector.shape_cast %23 : vector<1x32x32xf32> to vector<32x32xf32>
    %c1_23 = arith.constant 1 : index
    %c0_24 = arith.constant 0 : index
    %c0_25 = arith.constant 0 : index
    %25 = vector.load %arg3[%c1_23, %c0_24, %c0_25] : memref<3x32x32xf32, #tpu.memory_space<vmem>>, vector<1x32x32xf32>
    %26 = vector.shape_cast %25 : vector<1x32x32xf32> to vector<32x32xf32>
    %c2_26 = arith.constant 2 : index
    %c0_27 = arith.constant 0 : index
    %c0_28 = arith.constant 0 : index
    %27 = vector.load %arg3[%c2_26, %c0_27, %c0_28] : memref<3x32x32xf32, #tpu.memory_space<vmem>>, vector<1x32x32xf32>
    %28 = vector.shape_cast %27 : vector<1x32x32xf32> to vector<32x32xf32>
    %c0_29 = arith.constant 0 : index
    %c0_30 = arith.constant 0 : index
    %29 = vector.load %arg5[%c0_29, %c0_30] : memref<1x32xf32, #tpu.memory_space<vmem>>, vector<1x32xf32>
    %cst_31 = arith.constant dense<0.000000e+00> : vector<8x32xf32>
    %30 = tpu.matmul %1, %24, %cst_31 {dimension_numbers = #tpu.dot_dimension_numbers<[1], [0], [0], [1], [0, 0, 1, 1], [], []>} : vector<8x32xf32>, vector<32x32xf32>, vector<8x32xf32> -> vector<8x32xf32>
    %cst_32 = arith.constant dense<0.000000e+00> : vector<8x32xf32>
    %31 = tpu.matmul %1, %26, %cst_32 {dimension_numbers = #tpu.dot_dimension_numbers<[1], [0], [0], [1], [0, 0, 1, 1], [], []>} : vector<8x32xf32>, vector<32x32xf32>, vector<8x32xf32> -> vector<8x32xf32>
    %cst_33 = arith.constant dense<0.000000e+00> : vector<8x32xf32>
    %32 = tpu.matmul %1, %28, %cst_33 {dimension_numbers = #tpu.dot_dimension_numbers<[1], [0], [0], [1], [0, 0, 1, 1], [], []>} : vector<8x32xf32>, vector<32x32xf32>, vector<8x32xf32> -> vector<8x32xf32>
    %33 = vector.broadcast %29 : vector<1x32xf32> to vector<8x32xf32>
    %34 = arith.addf %32, %33 : vector<8x32xf32>
    %35 = vector.extract_strided_slice %8 {offsets = [0, 0], sizes = [8, 32], strides = [1, 1]} : vector<80x32xf32> to vector<8x32xf32>
    %36 = arith.addf %35, %30 : vector<8x32xf32>
    %37 = arith.negf %36 : vector<8x32xf32>
    %38 = math.exp %37 : vector<8x32xf32>
    %cst_34 = arith.constant 1.000000e+00 : f32
    %39 = vector.broadcast %cst_34 : f32 to vector<8x32xf32>
    %40 = arith.addf %39, %38 : vector<8x32xf32>
    %41 = arith.divf %39, %40 : vector<8x32xf32>
    %42 = vector.extract_strided_slice %15 {offsets = [0, 0], sizes = [8, 32], strides = [1, 1]} : vector<80x32xf32> to vector<8x32xf32>
    %43 = arith.addf %42, %31 : vector<8x32xf32>
    %44 = arith.negf %43 : vector<8x32xf32>
    %45 = math.exp %44 : vector<8x32xf32>
    %cst_35 = arith.constant 1.000000e+00 : f32
    %46 = vector.broadcast %cst_35 : f32 to vector<8x32xf32>
    %47 = arith.addf %46, %45 : vector<8x32xf32>
    %48 = arith.divf %46, %47 : vector<8x32xf32>
    %49 = vector.extract_strided_slice %22 {offsets = [0, 0], sizes = [8, 32], strides = [1, 1]} : vector<80x32xf32> to vector<8x32xf32>
    %50 = arith.mulf %41, %34 : vector<8x32xf32>
    %51 = arith.addf %49, %50 : vector<8x32xf32>
    %52 = math.tanh %51 : vector<8x32xf32>
    %cst_36 = arith.constant 1.000000e+00 : f32
    %53 = vector.broadcast %cst_36 : f32 to vector<8x32xf32>
    %54 = arith.subf %53, %48 : vector<8x32xf32>
    %55 = arith.mulf %54, %52 : vector<8x32xf32>
    %56 = arith.mulf %48, %1 : vector<8x32xf32>
    %57 = arith.addf %55, %56 : vector<8x32xf32>
    %cst_37 = arith.constant dense<0.000000e+00> : vector<8x32xf32>
    %58 = tpu.matmul %57, %24, %cst_37 {dimension_numbers = #tpu.dot_dimension_numbers<[1], [0], [0], [1], [0, 0, 1, 1], [], []>} : vector<8x32xf32>, vector<32x32xf32>, vector<8x32xf32> -> vector<8x32xf32>
    %cst_38 = arith.constant dense<0.000000e+00> : vector<8x32xf32>
    %59 = tpu.matmul %57, %26, %cst_38 {dimension_numbers = #tpu.dot_dimension_numbers<[1], [0], [0], [1], [0, 0, 1, 1], [], []>} : vector<8x32xf32>, vector<32x32xf32>, vector<8x32xf32> -> vector<8x32xf32>
    %cst_39 = arith.constant dense<0.000000e+00> : vector<8x32xf32>
    %60 = tpu.matmul %57, %28, %cst_39 {dimension_numbers = #tpu.dot_dimension_numbers<[1], [0], [0], [1], [0, 0, 1, 1], [], []>} : vector<8x32xf32>, vector<32x32xf32>, vector<8x32xf32> -> vector<8x32xf32>
    %61 = vector.broadcast %29 : vector<1x32xf32> to vector<8x32xf32>
    %62 = arith.addf %60, %61 : vector<8x32xf32>
    %63 = vector.extract_strided_slice %8 {offsets = [8, 0], sizes = [8, 32], strides = [1, 1]} : vector<80x32xf32> to vector<8x32xf32>
    %64 = arith.addf %63, %58 : vector<8x32xf32>
    %65 = arith.negf %64 : vector<8x32xf32>
    %66 = math.exp %65 : vector<8x32xf32>
    %cst_40 = arith.constant 1.000000e+00 : f32
    %67 = vector.broadcast %cst_40 : f32 to vector<8x32xf32>
    %68 = arith.addf %67, %66 : vector<8x32xf32>
    %69 = arith.divf %67, %68 : vector<8x32xf32>
    %70 = vector.extract_strided_slice %15 {offsets = [8, 0], sizes = [8, 32], strides = [1, 1]} : vector<80x32xf32> to vector<8x32xf32>
    %71 = arith.addf %70, %59 : vector<8x32xf32>
    %72 = arith.negf %71 : vector<8x32xf32>
    %73 = math.exp %72 : vector<8x32xf32>
    %cst_41 = arith.constant 1.000000e+00 : f32
    %74 = vector.broadcast %cst_41 : f32 to vector<8x32xf32>
    %75 = arith.addf %74, %73 : vector<8x32xf32>
    %76 = arith.divf %74, %75 : vector<8x32xf32>
    %77 = vector.extract_strided_slice %22 {offsets = [8, 0], sizes = [8, 32], strides = [1, 1]} : vector<80x32xf32> to vector<8x32xf32>
    %78 = arith.mulf %69, %62 : vector<8x32xf32>
    %79 = arith.addf %77, %78 : vector<8x32xf32>
    %80 = math.tanh %79 : vector<8x32xf32>
    %cst_42 = arith.constant 1.000000e+00 : f32
    %81 = vector.broadcast %cst_42 : f32 to vector<8x32xf32>
    %82 = arith.subf %81, %76 : vector<8x32xf32>
    %83 = arith.mulf %82, %80 : vector<8x32xf32>
    %84 = arith.mulf %76, %57 : vector<8x32xf32>
    %85 = arith.addf %83, %84 : vector<8x32xf32>
    %cst_43 = arith.constant dense<0.000000e+00> : vector<8x32xf32>
    %86 = tpu.matmul %85, %24, %cst_43 {dimension_numbers = #tpu.dot_dimension_numbers<[1], [0], [0], [1], [0, 0, 1, 1], [], []>} : vector<8x32xf32>, vector<32x32xf32>, vector<8x32xf32> -> vector<8x32xf32>
    %cst_44 = arith.constant dense<0.000000e+00> : vector<8x32xf32>
    %87 = tpu.matmul %85, %26, %cst_44 {dimension_numbers = #tpu.dot_dimension_numbers<[1], [0], [0], [1], [0, 0, 1, 1], [], []>} : vector<8x32xf32>, vector<32x32xf32>, vector<8x32xf32> -> vector<8x32xf32>
    %cst_45 = arith.constant dense<0.000000e+00> : vector<8x32xf32>
    %88 = tpu.matmul %85, %28, %cst_45 {dimension_numbers = #tpu.dot_dimension_numbers<[1], [0], [0], [1], [0, 0, 1, 1], [], []>} : vector<8x32xf32>, vector<32x32xf32>, vector<8x32xf32> -> vector<8x32xf32>
    %89 = vector.broadcast %29 : vector<1x32xf32> to vector<8x32xf32>
    %90 = arith.addf %88, %89 : vector<8x32xf32>
    %91 = vector.extract_strided_slice %8 {offsets = [16, 0], sizes = [8, 32], strides = [1, 1]} : vector<80x32xf32> to vector<8x32xf32>
    %92 = arith.addf %91, %86 : vector<8x32xf32>
    %93 = arith.negf %92 : vector<8x32xf32>
    %94 = math.exp %93 : vector<8x32xf32>
    %cst_46 = arith.constant 1.000000e+00 : f32
    %95 = vector.broadcast %cst_46 : f32 to vector<8x32xf32>
    %96 = arith.addf %95, %94 : vector<8x32xf32>
    %97 = arith.divf %95, %96 : vector<8x32xf32>
    %98 = vector.extract_strided_slice %15 {offsets = [16, 0], sizes = [8, 32], strides = [1, 1]} : vector<80x32xf32> to vector<8x32xf32>
    %99 = arith.addf %98, %87 : vector<8x32xf32>
    %100 = arith.negf %99 : vector<8x32xf32>
    %101 = math.exp %100 : vector<8x32xf32>
    %cst_47 = arith.constant 1.000000e+00 : f32
    %102 = vector.broadcast %cst_47 : f32 to vector<8x32xf32>
    %103 = arith.addf %102, %101 : vector<8x32xf32>
    %104 = arith.divf %102, %103 : vector<8x32xf32>
    %105 = vector.extract_strided_slice %22 {offsets = [16, 0], sizes = [8, 32], strides = [1, 1]} : vector<80x32xf32> to vector<8x32xf32>
    %106 = arith.mulf %97, %90 : vector<8x32xf32>
    %107 = arith.addf %105, %106 : vector<8x32xf32>
    %108 = math.tanh %107 : vector<8x32xf32>
    %cst_48 = arith.constant 1.000000e+00 : f32
    %109 = vector.broadcast %cst_48 : f32 to vector<8x32xf32>
    %110 = arith.subf %109, %104 : vector<8x32xf32>
    %111 = arith.mulf %110, %108 : vector<8x32xf32>
    %112 = arith.mulf %104, %85 : vector<8x32xf32>
    %113 = arith.addf %111, %112 : vector<8x32xf32>
    %cst_49 = arith.constant dense<0.000000e+00> : vector<8x32xf32>
    %114 = tpu.matmul %113, %24, %cst_49 {dimension_numbers = #tpu.dot_dimension_numbers<[1], [0], [0], [1], [0, 0, 1, 1], [], []>} : vector<8x32xf32>, vector<32x32xf32>, vector<8x32xf32> -> vector<8x32xf32>
    %cst_50 = arith.constant dense<0.000000e+00> : vector<8x32xf32>
    %115 = tpu.matmul %113, %26, %cst_50 {dimension_numbers = #tpu.dot_dimension_numbers<[1], [0], [0], [1], [0, 0, 1, 1], [], []>} : vector<8x32xf32>, vector<32x32xf32>, vector<8x32xf32> -> vector<8x32xf32>
    %cst_51 = arith.constant dense<0.000000e+00> : vector<8x32xf32>
    %116 = tpu.matmul %113, %28, %cst_51 {dimension_numbers = #tpu.dot_dimension_numbers<[1], [0], [0], [1], [0, 0, 1, 1], [], []>} : vector<8x32xf32>, vector<32x32xf32>, vector<8x32xf32> -> vector<8x32xf32>
    %117 = vector.broadcast %29 : vector<1x32xf32> to vector<8x32xf32>
    %118 = arith.addf %116, %117 : vector<8x32xf32>
    %119 = vector.extract_strided_slice %8 {offsets = [24, 0], sizes = [8, 32], strides = [1, 1]} : vector<80x32xf32> to vector<8x32xf32>
    %120 = arith.addf %119, %114 : vector<8x32xf32>
    %121 = arith.negf %120 : vector<8x32xf32>
    %122 = math.exp %121 : vector<8x32xf32>
    %cst_52 = arith.constant 1.000000e+00 : f32
    %123 = vector.broadcast %cst_52 : f32 to vector<8x32xf32>
    %124 = arith.addf %123, %122 : vector<8x32xf32>
    %125 = arith.divf %123, %124 : vector<8x32xf32>
    %126 = vector.extract_strided_slice %15 {offsets = [24, 0], sizes = [8, 32], strides = [1, 1]} : vector<80x32xf32> to vector<8x32xf32>
    %127 = arith.addf %126, %115 : vector<8x32xf32>
    %128 = arith.negf %127 : vector<8x32xf32>
    %129 = math.exp %128 : vector<8x32xf32>
    %cst_53 = arith.constant 1.000000e+00 : f32
    %130 = vector.broadcast %cst_53 : f32 to vector<8x32xf32>
    %131 = arith.addf %130, %129 : vector<8x32xf32>
    %132 = arith.divf %130, %131 : vector<8x32xf32>
    %133 = vector.extract_strided_slice %22 {offsets = [24, 0], sizes = [8, 32], strides = [1, 1]} : vector<80x32xf32> to vector<8x32xf32>
    %134 = arith.mulf %125, %118 : vector<8x32xf32>
    %135 = arith.addf %133, %134 : vector<8x32xf32>
    %136 = math.tanh %135 : vector<8x32xf32>
    %cst_54 = arith.constant 1.000000e+00 : f32
    %137 = vector.broadcast %cst_54 : f32 to vector<8x32xf32>
    %138 = arith.subf %137, %132 : vector<8x32xf32>
    %139 = arith.mulf %138, %136 : vector<8x32xf32>
    %140 = arith.mulf %132, %113 : vector<8x32xf32>
    %141 = arith.addf %139, %140 : vector<8x32xf32>
    %cst_55 = arith.constant dense<0.000000e+00> : vector<8x32xf32>
    %142 = tpu.matmul %141, %24, %cst_55 {dimension_numbers = #tpu.dot_dimension_numbers<[1], [0], [0], [1], [0, 0, 1, 1], [], []>} : vector<8x32xf32>, vector<32x32xf32>, vector<8x32xf32> -> vector<8x32xf32>
    %cst_56 = arith.constant dense<0.000000e+00> : vector<8x32xf32>
    %143 = tpu.matmul %141, %26, %cst_56 {dimension_numbers = #tpu.dot_dimension_numbers<[1], [0], [0], [1], [0, 0, 1, 1], [], []>} : vector<8x32xf32>, vector<32x32xf32>, vector<8x32xf32> -> vector<8x32xf32>
    %cst_57 = arith.constant dense<0.000000e+00> : vector<8x32xf32>
    %144 = tpu.matmul %141, %28, %cst_57 {dimension_numbers = #tpu.dot_dimension_numbers<[1], [0], [0], [1], [0, 0, 1, 1], [], []>} : vector<8x32xf32>, vector<32x32xf32>, vector<8x32xf32> -> vector<8x32xf32>
    %145 = vector.broadcast %29 : vector<1x32xf32> to vector<8x32xf32>
    %146 = arith.addf %144, %145 : vector<8x32xf32>
    %147 = vector.extract_strided_slice %8 {offsets = [32, 0], sizes = [8, 32], strides = [1, 1]} : vector<80x32xf32> to vector<8x32xf32>
    %148 = arith.addf %147, %142 : vector<8x32xf32>
    %149 = arith.negf %148 : vector<8x32xf32>
    %150 = math.exp %149 : vector<8x32xf32>
    %cst_58 = arith.constant 1.000000e+00 : f32
    %151 = vector.broadcast %cst_58 : f32 to vector<8x32xf32>
    %152 = arith.addf %151, %150 : vector<8x32xf32>
    %153 = arith.divf %151, %152 : vector<8x32xf32>
    %154 = vector.extract_strided_slice %15 {offsets = [32, 0], sizes = [8, 32], strides = [1, 1]} : vector<80x32xf32> to vector<8x32xf32>
    %155 = arith.addf %154, %143 : vector<8x32xf32>
    %156 = arith.negf %155 : vector<8x32xf32>
    %157 = math.exp %156 : vector<8x32xf32>
    %cst_59 = arith.constant 1.000000e+00 : f32
    %158 = vector.broadcast %cst_59 : f32 to vector<8x32xf32>
    %159 = arith.addf %158, %157 : vector<8x32xf32>
    %160 = arith.divf %158, %159 : vector<8x32xf32>
    %161 = vector.extract_strided_slice %22 {offsets = [32, 0], sizes = [8, 32], strides = [1, 1]} : vector<80x32xf32> to vector<8x32xf32>
    %162 = arith.mulf %153, %146 : vector<8x32xf32>
    %163 = arith.addf %161, %162 : vector<8x32xf32>
    %164 = math.tanh %163 : vector<8x32xf32>
    %cst_60 = arith.constant 1.000000e+00 : f32
    %165 = vector.broadcast %cst_60 : f32 to vector<8x32xf32>
    %166 = arith.subf %165, %160 : vector<8x32xf32>
    %167 = arith.mulf %166, %164 : vector<8x32xf32>
    %168 = arith.mulf %160, %141 : vector<8x32xf32>
    %169 = arith.addf %167, %168 : vector<8x32xf32>
    %cst_61 = arith.constant dense<0.000000e+00> : vector<8x32xf32>
    %170 = tpu.matmul %169, %24, %cst_61 {dimension_numbers = #tpu.dot_dimension_numbers<[1], [0], [0], [1], [0, 0, 1, 1], [], []>} : vector<8x32xf32>, vector<32x32xf32>, vector<8x32xf32> -> vector<8x32xf32>
    %cst_62 = arith.constant dense<0.000000e+00> : vector<8x32xf32>
    %171 = tpu.matmul %169, %26, %cst_62 {dimension_numbers = #tpu.dot_dimension_numbers<[1], [0], [0], [1], [0, 0, 1, 1], [], []>} : vector<8x32xf32>, vector<32x32xf32>, vector<8x32xf32> -> vector<8x32xf32>
    %cst_63 = arith.constant dense<0.000000e+00> : vector<8x32xf32>
    %172 = tpu.matmul %169, %28, %cst_63 {dimension_numbers = #tpu.dot_dimension_numbers<[1], [0], [0], [1], [0, 0, 1, 1], [], []>} : vector<8x32xf32>, vector<32x32xf32>, vector<8x32xf32> -> vector<8x32xf32>
    %173 = vector.broadcast %29 : vector<1x32xf32> to vector<8x32xf32>
    %174 = arith.addf %172, %173 : vector<8x32xf32>
    %175 = vector.extract_strided_slice %8 {offsets = [40, 0], sizes = [8, 32], strides = [1, 1]} : vector<80x32xf32> to vector<8x32xf32>
    %176 = arith.addf %175, %170 : vector<8x32xf32>
    %177 = arith.negf %176 : vector<8x32xf32>
    %178 = math.exp %177 : vector<8x32xf32>
    %cst_64 = arith.constant 1.000000e+00 : f32
    %179 = vector.broadcast %cst_64 : f32 to vector<8x32xf32>
    %180 = arith.addf %179, %178 : vector<8x32xf32>
    %181 = arith.divf %179, %180 : vector<8x32xf32>
    %182 = vector.extract_strided_slice %15 {offsets = [40, 0], sizes = [8, 32], strides = [1, 1]} : vector<80x32xf32> to vector<8x32xf32>
    %183 = arith.addf %182, %171 : vector<8x32xf32>
    %184 = arith.negf %183 : vector<8x32xf32>
    %185 = math.exp %184 : vector<8x32xf32>
    %cst_65 = arith.constant 1.000000e+00 : f32
    %186 = vector.broadcast %cst_65 : f32 to vector<8x32xf32>
    %187 = arith.addf %186, %185 : vector<8x32xf32>
    %188 = arith.divf %186, %187 : vector<8x32xf32>
    %189 = vector.extract_strided_slice %22 {offsets = [40, 0], sizes = [8, 32], strides = [1, 1]} : vector<80x32xf32> to vector<8x32xf32>
    %190 = arith.mulf %181, %174 : vector<8x32xf32>
    %191 = arith.addf %189, %190 : vector<8x32xf32>
    %192 = math.tanh %191 : vector<8x32xf32>
    %cst_66 = arith.constant 1.000000e+00 : f32
    %193 = vector.broadcast %cst_66 : f32 to vector<8x32xf32>
    %194 = arith.subf %193, %188 : vector<8x32xf32>
    %195 = arith.mulf %194, %192 : vector<8x32xf32>
    %196 = arith.mulf %188, %169 : vector<8x32xf32>
    %197 = arith.addf %195, %196 : vector<8x32xf32>
    %cst_67 = arith.constant dense<0.000000e+00> : vector<8x32xf32>
    %198 = tpu.matmul %197, %24, %cst_67 {dimension_numbers = #tpu.dot_dimension_numbers<[1], [0], [0], [1], [0, 0, 1, 1], [], []>} : vector<8x32xf32>, vector<32x32xf32>, vector<8x32xf32> -> vector<8x32xf32>
    %cst_68 = arith.constant dense<0.000000e+00> : vector<8x32xf32>
    %199 = tpu.matmul %197, %26, %cst_68 {dimension_numbers = #tpu.dot_dimension_numbers<[1], [0], [0], [1], [0, 0, 1, 1], [], []>} : vector<8x32xf32>, vector<32x32xf32>, vector<8x32xf32> -> vector<8x32xf32>
    %cst_69 = arith.constant dense<0.000000e+00> : vector<8x32xf32>
    %200 = tpu.matmul %197, %28, %cst_69 {dimension_numbers = #tpu.dot_dimension_numbers<[1], [0], [0], [1], [0, 0, 1, 1], [], []>} : vector<8x32xf32>, vector<32x32xf32>, vector<8x32xf32> -> vector<8x32xf32>
    %201 = vector.broadcast %29 : vector<1x32xf32> to vector<8x32xf32>
    %202 = arith.addf %200, %201 : vector<8x32xf32>
    %203 = vector.extract_strided_slice %8 {offsets = [48, 0], sizes = [8, 32], strides = [1, 1]} : vector<80x32xf32> to vector<8x32xf32>
    %204 = arith.addf %203, %198 : vector<8x32xf32>
    %205 = arith.negf %204 : vector<8x32xf32>
    %206 = math.exp %205 : vector<8x32xf32>
    %cst_70 = arith.constant 1.000000e+00 : f32
    %207 = vector.broadcast %cst_70 : f32 to vector<8x32xf32>
    %208 = arith.addf %207, %206 : vector<8x32xf32>
    %209 = arith.divf %207, %208 : vector<8x32xf32>
    %210 = vector.extract_strided_slice %15 {offsets = [48, 0], sizes = [8, 32], strides = [1, 1]} : vector<80x32xf32> to vector<8x32xf32>
    %211 = arith.addf %210, %199 : vector<8x32xf32>
    %212 = arith.negf %211 : vector<8x32xf32>
    %213 = math.exp %212 : vector<8x32xf32>
    %cst_71 = arith.constant 1.000000e+00 : f32
    %214 = vector.broadcast %cst_71 : f32 to vector<8x32xf32>
    %215 = arith.addf %214, %213 : vector<8x32xf32>
    %216 = arith.divf %214, %215 : vector<8x32xf32>
    %217 = vector.extract_strided_slice %22 {offsets = [48, 0], sizes = [8, 32], strides = [1, 1]} : vector<80x32xf32> to vector<8x32xf32>
    %218 = arith.mulf %209, %202 : vector<8x32xf32>
    %219 = arith.addf %217, %218 : vector<8x32xf32>
    %220 = math.tanh %219 : vector<8x32xf32>
    %cst_72 = arith.constant 1.000000e+00 : f32
    %221 = vector.broadcast %cst_72 : f32 to vector<8x32xf32>
    %222 = arith.subf %221, %216 : vector<8x32xf32>
    %223 = arith.mulf %222, %220 : vector<8x32xf32>
    %224 = arith.mulf %216, %197 : vector<8x32xf32>
    %225 = arith.addf %223, %224 : vector<8x32xf32>
    %cst_73 = arith.constant dense<0.000000e+00> : vector<8x32xf32>
    %226 = tpu.matmul %225, %24, %cst_73 {dimension_numbers = #tpu.dot_dimension_numbers<[1], [0], [0], [1], [0, 0, 1, 1], [], []>} : vector<8x32xf32>, vector<32x32xf32>, vector<8x32xf32> -> vector<8x32xf32>
    %cst_74 = arith.constant dense<0.000000e+00> : vector<8x32xf32>
    %227 = tpu.matmul %225, %26, %cst_74 {dimension_numbers = #tpu.dot_dimension_numbers<[1], [0], [0], [1], [0, 0, 1, 1], [], []>} : vector<8x32xf32>, vector<32x32xf32>, vector<8x32xf32> -> vector<8x32xf32>
    %cst_75 = arith.constant dense<0.000000e+00> : vector<8x32xf32>
    %228 = tpu.matmul %225, %28, %cst_75 {dimension_numbers = #tpu.dot_dimension_numbers<[1], [0], [0], [1], [0, 0, 1, 1], [], []>} : vector<8x32xf32>, vector<32x32xf32>, vector<8x32xf32> -> vector<8x32xf32>
    %229 = vector.broadcast %29 : vector<1x32xf32> to vector<8x32xf32>
    %230 = arith.addf %228, %229 : vector<8x32xf32>
    %231 = vector.extract_strided_slice %8 {offsets = [56, 0], sizes = [8, 32], strides = [1, 1]} : vector<80x32xf32> to vector<8x32xf32>
    %232 = arith.addf %231, %226 : vector<8x32xf32>
    %233 = arith.negf %232 : vector<8x32xf32>
    %234 = math.exp %233 : vector<8x32xf32>
    %cst_76 = arith.constant 1.000000e+00 : f32
    %235 = vector.broadcast %cst_76 : f32 to vector<8x32xf32>
    %236 = arith.addf %235, %234 : vector<8x32xf32>
    %237 = arith.divf %235, %236 : vector<8x32xf32>
    %238 = vector.extract_strided_slice %15 {offsets = [56, 0], sizes = [8, 32], strides = [1, 1]} : vector<80x32xf32> to vector<8x32xf32>
    %239 = arith.addf %238, %227 : vector<8x32xf32>
    %240 = arith.negf %239 : vector<8x32xf32>
    %241 = math.exp %240 : vector<8x32xf32>
    %cst_77 = arith.constant 1.000000e+00 : f32
    %242 = vector.broadcast %cst_77 : f32 to vector<8x32xf32>
    %243 = arith.addf %242, %241 : vector<8x32xf32>
    %244 = arith.divf %242, %243 : vector<8x32xf32>
    %245 = vector.extract_strided_slice %22 {offsets = [56, 0], sizes = [8, 32], strides = [1, 1]} : vector<80x32xf32> to vector<8x32xf32>
    %246 = arith.mulf %237, %230 : vector<8x32xf32>
    %247 = arith.addf %245, %246 : vector<8x32xf32>
    %248 = math.tanh %247 : vector<8x32xf32>
    %cst_78 = arith.constant 1.000000e+00 : f32
    %249 = vector.broadcast %cst_78 : f32 to vector<8x32xf32>
    %250 = arith.subf %249, %244 : vector<8x32xf32>
    %251 = arith.mulf %250, %248 : vector<8x32xf32>
    %252 = arith.mulf %244, %225 : vector<8x32xf32>
    %253 = arith.addf %251, %252 : vector<8x32xf32>
    %cst_79 = arith.constant dense<0.000000e+00> : vector<8x32xf32>
    %254 = tpu.matmul %253, %24, %cst_79 {dimension_numbers = #tpu.dot_dimension_numbers<[1], [0], [0], [1], [0, 0, 1, 1], [], []>} : vector<8x32xf32>, vector<32x32xf32>, vector<8x32xf32> -> vector<8x32xf32>
    %cst_80 = arith.constant dense<0.000000e+00> : vector<8x32xf32>
    %255 = tpu.matmul %253, %26, %cst_80 {dimension_numbers = #tpu.dot_dimension_numbers<[1], [0], [0], [1], [0, 0, 1, 1], [], []>} : vector<8x32xf32>, vector<32x32xf32>, vector<8x32xf32> -> vector<8x32xf32>
    %cst_81 = arith.constant dense<0.000000e+00> : vector<8x32xf32>
    %256 = tpu.matmul %253, %28, %cst_81 {dimension_numbers = #tpu.dot_dimension_numbers<[1], [0], [0], [1], [0, 0, 1, 1], [], []>} : vector<8x32xf32>, vector<32x32xf32>, vector<8x32xf32> -> vector<8x32xf32>
    %257 = vector.broadcast %29 : vector<1x32xf32> to vector<8x32xf32>
    %258 = arith.addf %256, %257 : vector<8x32xf32>
    %259 = vector.extract_strided_slice %8 {offsets = [64, 0], sizes = [8, 32], strides = [1, 1]} : vector<80x32xf32> to vector<8x32xf32>
    %260 = arith.addf %259, %254 : vector<8x32xf32>
    %261 = arith.negf %260 : vector<8x32xf32>
    %262 = math.exp %261 : vector<8x32xf32>
    %cst_82 = arith.constant 1.000000e+00 : f32
    %263 = vector.broadcast %cst_82 : f32 to vector<8x32xf32>
    %264 = arith.addf %263, %262 : vector<8x32xf32>
    %265 = arith.divf %263, %264 : vector<8x32xf32>
    %266 = vector.extract_strided_slice %15 {offsets = [64, 0], sizes = [8, 32], strides = [1, 1]} : vector<80x32xf32> to vector<8x32xf32>
    %267 = arith.addf %266, %255 : vector<8x32xf32>
    %268 = arith.negf %267 : vector<8x32xf32>
    %269 = math.exp %268 : vector<8x32xf32>
    %cst_83 = arith.constant 1.000000e+00 : f32
    %270 = vector.broadcast %cst_83 : f32 to vector<8x32xf32>
    %271 = arith.addf %270, %269 : vector<8x32xf32>
    %272 = arith.divf %270, %271 : vector<8x32xf32>
    %273 = vector.extract_strided_slice %22 {offsets = [64, 0], sizes = [8, 32], strides = [1, 1]} : vector<80x32xf32> to vector<8x32xf32>
    %274 = arith.mulf %265, %258 : vector<8x32xf32>
    %275 = arith.addf %273, %274 : vector<8x32xf32>
    %276 = math.tanh %275 : vector<8x32xf32>
    %cst_84 = arith.constant 1.000000e+00 : f32
    %277 = vector.broadcast %cst_84 : f32 to vector<8x32xf32>
    %278 = arith.subf %277, %272 : vector<8x32xf32>
    %279 = arith.mulf %278, %276 : vector<8x32xf32>
    %280 = arith.mulf %272, %253 : vector<8x32xf32>
    %281 = arith.addf %279, %280 : vector<8x32xf32>
    %cst_85 = arith.constant dense<0.000000e+00> : vector<8x32xf32>
    %282 = tpu.matmul %281, %24, %cst_85 {dimension_numbers = #tpu.dot_dimension_numbers<[1], [0], [0], [1], [0, 0, 1, 1], [], []>} : vector<8x32xf32>, vector<32x32xf32>, vector<8x32xf32> -> vector<8x32xf32>
    %cst_86 = arith.constant dense<0.000000e+00> : vector<8x32xf32>
    %283 = tpu.matmul %281, %26, %cst_86 {dimension_numbers = #tpu.dot_dimension_numbers<[1], [0], [0], [1], [0, 0, 1, 1], [], []>} : vector<8x32xf32>, vector<32x32xf32>, vector<8x32xf32> -> vector<8x32xf32>
    %cst_87 = arith.constant dense<0.000000e+00> : vector<8x32xf32>
    %284 = tpu.matmul %281, %28, %cst_87 {dimension_numbers = #tpu.dot_dimension_numbers<[1], [0], [0], [1], [0, 0, 1, 1], [], []>} : vector<8x32xf32>, vector<32x32xf32>, vector<8x32xf32> -> vector<8x32xf32>
    %285 = vector.broadcast %29 : vector<1x32xf32> to vector<8x32xf32>
    %286 = arith.addf %284, %285 : vector<8x32xf32>
    %287 = vector.extract_strided_slice %8 {offsets = [72, 0], sizes = [8, 32], strides = [1, 1]} : vector<80x32xf32> to vector<8x32xf32>
    %288 = arith.addf %287, %282 : vector<8x32xf32>
    %289 = arith.negf %288 : vector<8x32xf32>
    %290 = math.exp %289 : vector<8x32xf32>
    %cst_88 = arith.constant 1.000000e+00 : f32
    %291 = vector.broadcast %cst_88 : f32 to vector<8x32xf32>
    %292 = arith.addf %291, %290 : vector<8x32xf32>
    %293 = arith.divf %291, %292 : vector<8x32xf32>
    %294 = vector.extract_strided_slice %15 {offsets = [72, 0], sizes = [8, 32], strides = [1, 1]} : vector<80x32xf32> to vector<8x32xf32>
    %295 = arith.addf %294, %283 : vector<8x32xf32>
    %296 = arith.negf %295 : vector<8x32xf32>
    %297 = math.exp %296 : vector<8x32xf32>
    %cst_89 = arith.constant 1.000000e+00 : f32
    %298 = vector.broadcast %cst_89 : f32 to vector<8x32xf32>
    %299 = arith.addf %298, %297 : vector<8x32xf32>
    %300 = arith.divf %298, %299 : vector<8x32xf32>
    %301 = vector.extract_strided_slice %22 {offsets = [72, 0], sizes = [8, 32], strides = [1, 1]} : vector<80x32xf32> to vector<8x32xf32>
    %302 = arith.mulf %293, %286 : vector<8x32xf32>
    %303 = arith.addf %301, %302 : vector<8x32xf32>
    %304 = math.tanh %303 : vector<8x32xf32>
    %cst_90 = arith.constant 1.000000e+00 : f32
    %305 = vector.broadcast %cst_90 : f32 to vector<8x32xf32>
    %306 = arith.subf %305, %300 : vector<8x32xf32>
    %307 = arith.mulf %306, %304 : vector<8x32xf32>
    %308 = arith.mulf %300, %281 : vector<8x32xf32>
    %309 = arith.addf %307, %308 : vector<8x32xf32>
    %c0_91 = arith.constant 0 : index
    %c0_92 = arith.constant 0 : index
    %c0_93 = arith.constant 0 : index
    %310 = vector.load %arg13[%c0_91, %c0_92, %c0_93] : memref<1x8x32xf32, #tpu.memory_space<vmem>>, vector<1x8x32xf32>
    %311 = vector.shape_cast %310 : vector<1x8x32xf32> to vector<8x32xf32>
    %312 = vector.shape_cast %309 : vector<8x32xf32> to vector<1x8x32xf32>
    tpu.vector_store %arg13[%c0_91, %c0_92, %c0_93], %312 {strides = array<i32>} : memref<1x8x32xf32, #tpu.memory_space<vmem>>, vector<1x8x32xf32>,
    %c0_94 = arith.constant 0 : index
    %c0_95 = arith.constant 0 : index
    %313 = vector.load %arg1[%c0_94, %c0_95] : memref<64x8xf32, #tpu.memory_space<vmem>>, vector<64x8xf32>
    %c0_96 = arith.constant 0 : index
    %c0_97 = arith.constant 0 : index
    %c0_98 = arith.constant 0 : index
    %314 = vector.load %arg6[%c0_96, %c0_97, %c0_98] : memref<3x8x32xf32, #tpu.memory_space<vmem>>, vector<1x8x32xf32>
    %315 = vector.shape_cast %314 : vector<1x8x32xf32> to vector<8x32xf32>
    %cst_99 = arith.constant dense<0.000000e+00> : vector<64x32xf32>
    %316 = tpu.matmul %313, %315, %cst_99 {dimension_numbers = #tpu.dot_dimension_numbers<[1], [0], [0], [1], [0, 0, 1, 1], [], []>} : vector<64x8xf32>, vector<8x32xf32>, vector<64x32xf32> -> vector<64x32xf32>
    %c0_100 = arith.constant 0 : index
    %c0_101 = arith.constant 0 : index
    %c0_102 = arith.constant 0 : index
    %317 = vector.load %arg8[%c0_100, %c0_101, %c0_102] : memref<3x1x32xf32, #tpu.memory_space<vmem>>, vector<1x1x32xf32>
    %318 = vector.shape_cast %317 : vector<1x1x32xf32> to vector<1x32xf32>
    %319 = vector.broadcast %318 : vector<1x32xf32> to vector<64x32xf32>
    %320 = arith.addf %316, %319 : vector<64x32xf32>
    %c1_103 = arith.constant 1 : index
    %c0_104 = arith.constant 0 : index
    %c0_105 = arith.constant 0 : index
    %321 = vector.load %arg6[%c1_103, %c0_104, %c0_105] : memref<3x8x32xf32, #tpu.memory_space<vmem>>, vector<1x8x32xf32>
    %322 = vector.shape_cast %321 : vector<1x8x32xf32> to vector<8x32xf32>
    %cst_106 = arith.constant dense<0.000000e+00> : vector<64x32xf32>
    %323 = tpu.matmul %313, %322, %cst_106 {dimension_numbers = #tpu.dot_dimension_numbers<[1], [0], [0], [1], [0, 0, 1, 1], [], []>} : vector<64x8xf32>, vector<8x32xf32>, vector<64x32xf32> -> vector<64x32xf32>
    %c1_107 = arith.constant 1 : index
    %c0_108 = arith.constant 0 : index
    %c0_109 = arith.constant 0 : index
    %324 = vector.load %arg8[%c1_107, %c0_108, %c0_109] : memref<3x1x32xf32, #tpu.memory_space<vmem>>, vector<1x1x32xf32>
    %325 = vector.shape_cast %324 : vector<1x1x32xf32> to vector<1x32xf32>
    %326 = vector.broadcast %325 : vector<1x32xf32> to vector<64x32xf32>
    %327 = arith.addf %323, %326 : vector<64x32xf32>
    %c2_110 = arith.constant 2 : index
    %c0_111 = arith.constant 0 : index
    %c0_112 = arith.constant 0 : index
    %328 = vector.load %arg6[%c2_110, %c0_111, %c0_112] : memref<3x8x32xf32, #tpu.memory_space<vmem>>, vector<1x8x32xf32>
    %329 = vector.shape_cast %328 : vector<1x8x32xf32> to vector<8x32xf32>
    %cst_113 = arith.constant dense<0.000000e+00> : vector<64x32xf32>
    %330 = tpu.matmul %313, %329, %cst_113 {dimension_numbers = #tpu.dot_dimension_numbers<[1], [0], [0], [1], [0, 0, 1, 1], [], []>} : vector<64x8xf32>, vector<8x32xf32>, vector<64x32xf32> -> vector<64x32xf32>
    %c2_114 = arith.constant 2 : index
    %c0_115 = arith.constant 0 : index
    %c0_116 = arith.constant 0 : index
    %331 = vector.load %arg8[%c2_114, %c0_115, %c0_116] : memref<3x1x32xf32, #tpu.memory_space<vmem>>, vector<1x1x32xf32>
    %332 = vector.shape_cast %331 : vector<1x1x32xf32> to vector<1x32xf32>
    %333 = vector.broadcast %332 : vector<1x32xf32> to vector<64x32xf32>
    %334 = arith.addf %330, %333 : vector<64x32xf32>
    %c0_117 = arith.constant 0 : index
    %c0_118 = arith.constant 0 : index
    %c0_119 = arith.constant 0 : index
    %335 = vector.load %arg7[%c0_117, %c0_118, %c0_119] : memref<3x32x32xf32, #tpu.memory_space<vmem>>, vector<1x32x32xf32>
    %336 = vector.shape_cast %335 : vector<1x32x32xf32> to vector<32x32xf32>
    %c1_120 = arith.constant 1 : index
    %c0_121 = arith.constant 0 : index
    %c0_122 = arith.constant 0 : index
    %337 = vector.load %arg7[%c1_120, %c0_121, %c0_122] : memref<3x32x32xf32, #tpu.memory_space<vmem>>, vector<1x32x32xf32>
    %338 = vector.shape_cast %337 : vector<1x32x32xf32> to vector<32x32xf32>
    %c2_123 = arith.constant 2 : index
    %c0_124 = arith.constant 0 : index
    %c0_125 = arith.constant 0 : index
    %339 = vector.load %arg7[%c2_123, %c0_124, %c0_125] : memref<3x32x32xf32, #tpu.memory_space<vmem>>, vector<1x32x32xf32>
    %340 = vector.shape_cast %339 : vector<1x32x32xf32> to vector<32x32xf32>
    %c0_126 = arith.constant 0 : index
    %c0_127 = arith.constant 0 : index
    %341 = vector.load %arg9[%c0_126, %c0_127] : memref<1x32xf32, #tpu.memory_space<vmem>>, vector<1x32xf32>
    %cst_128 = arith.constant dense<0.000000e+00> : vector<8x32xf32>
    %342 = tpu.matmul %309, %336, %cst_128 {dimension_numbers = #tpu.dot_dimension_numbers<[1], [0], [0], [1], [0, 0, 1, 1], [], []>} : vector<8x32xf32>, vector<32x32xf32>, vector<8x32xf32> -> vector<8x32xf32>
    %cst_129 = arith.constant dense<0.000000e+00> : vector<8x32xf32>
    %343 = tpu.matmul %309, %338, %cst_129 {dimension_numbers = #tpu.dot_dimension_numbers<[1], [0], [0], [1], [0, 0, 1, 1], [], []>} : vector<8x32xf32>, vector<32x32xf32>, vector<8x32xf32> -> vector<8x32xf32>
    %cst_130 = arith.constant dense<0.000000e+00> : vector<8x32xf32>
    %344 = tpu.matmul %309, %340, %cst_130 {dimension_numbers = #tpu.dot_dimension_numbers<[1], [0], [0], [1], [0, 0, 1, 1], [], []>} : vector<8x32xf32>, vector<32x32xf32>, vector<8x32xf32> -> vector<8x32xf32>
    %345 = vector.broadcast %341 : vector<1x32xf32> to vector<8x32xf32>
    %346 = arith.addf %344, %345 : vector<8x32xf32>
    %347 = vector.extract_strided_slice %320 {offsets = [0, 0], sizes = [8, 32], strides = [1, 1]} : vector<64x32xf32> to vector<8x32xf32>
    %348 = arith.addf %347, %342 : vector<8x32xf32>
    %349 = arith.negf %348 : vector<8x32xf32>
    %350 = math.exp %349 : vector<8x32xf32>
    %cst_131 = arith.constant 1.000000e+00 : f32
    %351 = vector.broadcast %cst_131 : f32 to vector<8x32xf32>
    %352 = arith.addf %351, %350 : vector<8x32xf32>
    %353 = arith.divf %351, %352 : vector<8x32xf32>
    %354 = vector.extract_strided_slice %327 {offsets = [0, 0], sizes = [8, 32], strides = [1, 1]} : vector<64x32xf32> to vector<8x32xf32>
    %355 = arith.addf %354, %343 : vector<8x32xf32>
    %356 = arith.negf %355 : vector<8x32xf32>
    %357 = math.exp %356 : vector<8x32xf32>
    %cst_132 = arith.constant 1.000000e+00 : f32
    %358 = vector.broadcast %cst_132 : f32 to vector<8x32xf32>
    %359 = arith.addf %358, %357 : vector<8x32xf32>
    %360 = arith.divf %358, %359 : vector<8x32xf32>
    %361 = vector.extract_strided_slice %334 {offsets = [0, 0], sizes = [8, 32], strides = [1, 1]} : vector<64x32xf32> to vector<8x32xf32>
    %362 = arith.mulf %353, %346 : vector<8x32xf32>
    %363 = arith.addf %361, %362 : vector<8x32xf32>
    %364 = math.tanh %363 : vector<8x32xf32>
    %cst_133 = arith.constant 1.000000e+00 : f32
    %365 = vector.broadcast %cst_133 : f32 to vector<8x32xf32>
    %366 = arith.subf %365, %360 : vector<8x32xf32>
    %367 = arith.mulf %366, %364 : vector<8x32xf32>
    %368 = arith.mulf %360, %309 : vector<8x32xf32>
    %369 = arith.addf %367, %368 : vector<8x32xf32>
    %cst_134 = arith.constant dense<0.000000e+00> : vector<8x32xf32>
    %370 = tpu.matmul %369, %336, %cst_134 {dimension_numbers = #tpu.dot_dimension_numbers<[1], [0], [0], [1], [0, 0, 1, 1], [], []>} : vector<8x32xf32>, vector<32x32xf32>, vector<8x32xf32> -> vector<8x32xf32>
    %cst_135 = arith.constant dense<0.000000e+00> : vector<8x32xf32>
    %371 = tpu.matmul %369, %338, %cst_135 {dimension_numbers = #tpu.dot_dimension_numbers<[1], [0], [0], [1], [0, 0, 1, 1], [], []>} : vector<8x32xf32>, vector<32x32xf32>, vector<8x32xf32> -> vector<8x32xf32>
    %cst_136 = arith.constant dense<0.000000e+00> : vector<8x32xf32>
    %372 = tpu.matmul %369, %340, %cst_136 {dimension_numbers = #tpu.dot_dimension_numbers<[1], [0], [0], [1], [0, 0, 1, 1], [], []>} : vector<8x32xf32>, vector<32x32xf32>, vector<8x32xf32> -> vector<8x32xf32>
    %373 = vector.broadcast %341 : vector<1x32xf32> to vector<8x32xf32>
    %374 = arith.addf %372, %373 : vector<8x32xf32>
    %375 = vector.extract_strided_slice %320 {offsets = [8, 0], sizes = [8, 32], strides = [1, 1]} : vector<64x32xf32> to vector<8x32xf32>
    %376 = arith.addf %375, %370 : vector<8x32xf32>
    %377 = arith.negf %376 : vector<8x32xf32>
    %378 = math.exp %377 : vector<8x32xf32>
    %cst_137 = arith.constant 1.000000e+00 : f32
    %379 = vector.broadcast %cst_137 : f32 to vector<8x32xf32>
    %380 = arith.addf %379, %378 : vector<8x32xf32>
    %381 = arith.divf %379, %380 : vector<8x32xf32>
    %382 = vector.extract_strided_slice %327 {offsets = [8, 0], sizes = [8, 32], strides = [1, 1]} : vector<64x32xf32> to vector<8x32xf32>
    %383 = arith.addf %382, %371 : vector<8x32xf32>
    %384 = arith.negf %383 : vector<8x32xf32>
    %385 = math.exp %384 : vector<8x32xf32>
    %cst_138 = arith.constant 1.000000e+00 : f32
    %386 = vector.broadcast %cst_138 : f32 to vector<8x32xf32>
    %387 = arith.addf %386, %385 : vector<8x32xf32>
    %388 = arith.divf %386, %387 : vector<8x32xf32>
    %389 = vector.extract_strided_slice %334 {offsets = [8, 0], sizes = [8, 32], strides = [1, 1]} : vector<64x32xf32> to vector<8x32xf32>
    %390 = arith.mulf %381, %374 : vector<8x32xf32>
    %391 = arith.addf %389, %390 : vector<8x32xf32>
    %392 = math.tanh %391 : vector<8x32xf32>
    %cst_139 = arith.constant 1.000000e+00 : f32
    %393 = vector.broadcast %cst_139 : f32 to vector<8x32xf32>
    %394 = arith.subf %393, %388 : vector<8x32xf32>
    %395 = arith.mulf %394, %392 : vector<8x32xf32>
    %396 = arith.mulf %388, %369 : vector<8x32xf32>
    %397 = arith.addf %395, %396 : vector<8x32xf32>
    %cst_140 = arith.constant dense<0.000000e+00> : vector<8x32xf32>
    %398 = tpu.matmul %397, %336, %cst_140 {dimension_numbers = #tpu.dot_dimension_numbers<[1], [0], [0], [1], [0, 0, 1, 1], [], []>} : vector<8x32xf32>, vector<32x32xf32>, vector<8x32xf32> -> vector<8x32xf32>
    %cst_141 = arith.constant dense<0.000000e+00> : vector<8x32xf32>
    %399 = tpu.matmul %397, %338, %cst_141 {dimension_numbers = #tpu.dot_dimension_numbers<[1], [0], [0], [1], [0, 0, 1, 1], [], []>} : vector<8x32xf32>, vector<32x32xf32>, vector<8x32xf32> -> vector<8x32xf32>
    %cst_142 = arith.constant dense<0.000000e+00> : vector<8x32xf32>
    %400 = tpu.matmul %397, %340, %cst_142 {dimension_numbers = #tpu.dot_dimension_numbers<[1], [0], [0], [1], [0, 0, 1, 1], [], []>} : vector<8x32xf32>, vector<32x32xf32>, vector<8x32xf32> -> vector<8x32xf32>
    %401 = vector.broadcast %341 : vector<1x32xf32> to vector<8x32xf32>
    %402 = arith.addf %400, %401 : vector<8x32xf32>
    %403 = vector.extract_strided_slice %320 {offsets = [16, 0], sizes = [8, 32], strides = [1, 1]} : vector<64x32xf32> to vector<8x32xf32>
    %404 = arith.addf %403, %398 : vector<8x32xf32>
    %405 = arith.negf %404 : vector<8x32xf32>
    %406 = math.exp %405 : vector<8x32xf32>
    %cst_143 = arith.constant 1.000000e+00 : f32
    %407 = vector.broadcast %cst_143 : f32 to vector<8x32xf32>
    %408 = arith.addf %407, %406 : vector<8x32xf32>
    %409 = arith.divf %407, %408 : vector<8x32xf32>
    %410 = vector.extract_strided_slice %327 {offsets = [16, 0], sizes = [8, 32], strides = [1, 1]} : vector<64x32xf32> to vector<8x32xf32>
    %411 = arith.addf %410, %399 : vector<8x32xf32>
    %412 = arith.negf %411 : vector<8x32xf32>
    %413 = math.exp %412 : vector<8x32xf32>
    %cst_144 = arith.constant 1.000000e+00 : f32
    %414 = vector.broadcast %cst_144 : f32 to vector<8x32xf32>
    %415 = arith.addf %414, %413 : vector<8x32xf32>
    %416 = arith.divf %414, %415 : vector<8x32xf32>
    %417 = vector.extract_strided_slice %334 {offsets = [16, 0], sizes = [8, 32], strides = [1, 1]} : vector<64x32xf32> to vector<8x32xf32>
    %418 = arith.mulf %409, %402 : vector<8x32xf32>
    %419 = arith.addf %417, %418 : vector<8x32xf32>
    %420 = math.tanh %419 : vector<8x32xf32>
    %cst_145 = arith.constant 1.000000e+00 : f32
    %421 = vector.broadcast %cst_145 : f32 to vector<8x32xf32>
    %422 = arith.subf %421, %416 : vector<8x32xf32>
    %423 = arith.mulf %422, %420 : vector<8x32xf32>
    %424 = arith.mulf %416, %397 : vector<8x32xf32>
    %425 = arith.addf %423, %424 : vector<8x32xf32>
    %cst_146 = arith.constant dense<0.000000e+00> : vector<8x32xf32>
    %426 = tpu.matmul %425, %336, %cst_146 {dimension_numbers = #tpu.dot_dimension_numbers<[1], [0], [0], [1], [0, 0, 1, 1], [], []>} : vector<8x32xf32>, vector<32x32xf32>, vector<8x32xf32> -> vector<8x32xf32>
    %cst_147 = arith.constant dense<0.000000e+00> : vector<8x32xf32>
    %427 = tpu.matmul %425, %338, %cst_147 {dimension_numbers = #tpu.dot_dimension_numbers<[1], [0], [0], [1], [0, 0, 1, 1], [], []>} : vector<8x32xf32>, vector<32x32xf32>, vector<8x32xf32> -> vector<8x32xf32>
    %cst_148 = arith.constant dense<0.000000e+00> : vector<8x32xf32>
    %428 = tpu.matmul %425, %340, %cst_148 {dimension_numbers = #tpu.dot_dimension_numbers<[1], [0], [0], [1], [0, 0, 1, 1], [], []>} : vector<8x32xf32>, vector<32x32xf32>, vector<8x32xf32> -> vector<8x32xf32>
    %429 = vector.broadcast %341 : vector<1x32xf32> to vector<8x32xf32>
    %430 = arith.addf %428, %429 : vector<8x32xf32>
    %431 = vector.extract_strided_slice %320 {offsets = [24, 0], sizes = [8, 32], strides = [1, 1]} : vector<64x32xf32> to vector<8x32xf32>
    %432 = arith.addf %431, %426 : vector<8x32xf32>
    %433 = arith.negf %432 : vector<8x32xf32>
    %434 = math.exp %433 : vector<8x32xf32>
    %cst_149 = arith.constant 1.000000e+00 : f32
    %435 = vector.broadcast %cst_149 : f32 to vector<8x32xf32>
    %436 = arith.addf %435, %434 : vector<8x32xf32>
    %437 = arith.divf %435, %436 : vector<8x32xf32>
    %438 = vector.extract_strided_slice %327 {offsets = [24, 0], sizes = [8, 32], strides = [1, 1]} : vector<64x32xf32> to vector<8x32xf32>
    %439 = arith.addf %438, %427 : vector<8x32xf32>
    %440 = arith.negf %439 : vector<8x32xf32>
    %441 = math.exp %440 : vector<8x32xf32>
    %cst_150 = arith.constant 1.000000e+00 : f32
    %442 = vector.broadcast %cst_150 : f32 to vector<8x32xf32>
    %443 = arith.addf %442, %441 : vector<8x32xf32>
    %444 = arith.divf %442, %443 : vector<8x32xf32>
    %445 = vector.extract_strided_slice %334 {offsets = [24, 0], sizes = [8, 32], strides = [1, 1]} : vector<64x32xf32> to vector<8x32xf32>
    %446 = arith.mulf %437, %430 : vector<8x32xf32>
    %447 = arith.addf %445, %446 : vector<8x32xf32>
    %448 = math.tanh %447 : vector<8x32xf32>
    %cst_151 = arith.constant 1.000000e+00 : f32
    %449 = vector.broadcast %cst_151 : f32 to vector<8x32xf32>
    %450 = arith.subf %449, %444 : vector<8x32xf32>
    %451 = arith.mulf %450, %448 : vector<8x32xf32>
    %452 = arith.mulf %444, %425 : vector<8x32xf32>
    %453 = arith.addf %451, %452 : vector<8x32xf32>
    %cst_152 = arith.constant dense<0.000000e+00> : vector<8x32xf32>
    %454 = tpu.matmul %453, %336, %cst_152 {dimension_numbers = #tpu.dot_dimension_numbers<[1], [0], [0], [1], [0, 0, 1, 1], [], []>} : vector<8x32xf32>, vector<32x32xf32>, vector<8x32xf32> -> vector<8x32xf32>
    %cst_153 = arith.constant dense<0.000000e+00> : vector<8x32xf32>
    %455 = tpu.matmul %453, %338, %cst_153 {dimension_numbers = #tpu.dot_dimension_numbers<[1], [0], [0], [1], [0, 0, 1, 1], [], []>} : vector<8x32xf32>, vector<32x32xf32>, vector<8x32xf32> -> vector<8x32xf32>
    %cst_154 = arith.constant dense<0.000000e+00> : vector<8x32xf32>
    %456 = tpu.matmul %453, %340, %cst_154 {dimension_numbers = #tpu.dot_dimension_numbers<[1], [0], [0], [1], [0, 0, 1, 1], [], []>} : vector<8x32xf32>, vector<32x32xf32>, vector<8x32xf32> -> vector<8x32xf32>
    %457 = vector.broadcast %341 : vector<1x32xf32> to vector<8x32xf32>
    %458 = arith.addf %456, %457 : vector<8x32xf32>
    %459 = vector.extract_strided_slice %320 {offsets = [32, 0], sizes = [8, 32], strides = [1, 1]} : vector<64x32xf32> to vector<8x32xf32>
    %460 = arith.addf %459, %454 : vector<8x32xf32>
    %461 = arith.negf %460 : vector<8x32xf32>
    %462 = math.exp %461 : vector<8x32xf32>
    %cst_155 = arith.constant 1.000000e+00 : f32
    %463 = vector.broadcast %cst_155 : f32 to vector<8x32xf32>
    %464 = arith.addf %463, %462 : vector<8x32xf32>
    %465 = arith.divf %463, %464 : vector<8x32xf32>
    %466 = vector.extract_strided_slice %327 {offsets = [32, 0], sizes = [8, 32], strides = [1, 1]} : vector<64x32xf32> to vector<8x32xf32>
    %467 = arith.addf %466, %455 : vector<8x32xf32>
    %468 = arith.negf %467 : vector<8x32xf32>
    %469 = math.exp %468 : vector<8x32xf32>
    %cst_156 = arith.constant 1.000000e+00 : f32
    %470 = vector.broadcast %cst_156 : f32 to vector<8x32xf32>
    %471 = arith.addf %470, %469 : vector<8x32xf32>
    %472 = arith.divf %470, %471 : vector<8x32xf32>
    %473 = vector.extract_strided_slice %334 {offsets = [32, 0], sizes = [8, 32], strides = [1, 1]} : vector<64x32xf32> to vector<8x32xf32>
    %474 = arith.mulf %465, %458 : vector<8x32xf32>
    %475 = arith.addf %473, %474 : vector<8x32xf32>
    %476 = math.tanh %475 : vector<8x32xf32>
    %cst_157 = arith.constant 1.000000e+00 : f32
    %477 = vector.broadcast %cst_157 : f32 to vector<8x32xf32>
    %478 = arith.subf %477, %472 : vector<8x32xf32>
    %479 = arith.mulf %478, %476 : vector<8x32xf32>
    %480 = arith.mulf %472, %453 : vector<8x32xf32>
    %481 = arith.addf %479, %480 : vector<8x32xf32>
    %cst_158 = arith.constant dense<0.000000e+00> : vector<8x32xf32>
    %482 = tpu.matmul %481, %336, %cst_158 {dimension_numbers = #tpu.dot_dimension_numbers<[1], [0], [0], [1], [0, 0, 1, 1], [], []>} : vector<8x32xf32>, vector<32x32xf32>, vector<8x32xf32> -> vector<8x32xf32>
    %cst_159 = arith.constant dense<0.000000e+00> : vector<8x32xf32>
    %483 = tpu.matmul %481, %338, %cst_159 {dimension_numbers = #tpu.dot_dimension_numbers<[1], [0], [0], [1], [0, 0, 1, 1], [], []>} : vector<8x32xf32>, vector<32x32xf32>, vector<8x32xf32> -> vector<8x32xf32>
    %cst_160 = arith.constant dense<0.000000e+00> : vector<8x32xf32>
    %484 = tpu.matmul %481, %340, %cst_160 {dimension_numbers = #tpu.dot_dimension_numbers<[1], [0], [0], [1], [0, 0, 1, 1], [], []>} : vector<8x32xf32>, vector<32x32xf32>, vector<8x32xf32> -> vector<8x32xf32>
    %485 = vector.broadcast %341 : vector<1x32xf32> to vector<8x32xf32>
    %486 = arith.addf %484, %485 : vector<8x32xf32>
    %487 = vector.extract_strided_slice %320 {offsets = [40, 0], sizes = [8, 32], strides = [1, 1]} : vector<64x32xf32> to vector<8x32xf32>
    %488 = arith.addf %487, %482 : vector<8x32xf32>
    %489 = arith.negf %488 : vector<8x32xf32>
    %490 = math.exp %489 : vector<8x32xf32>
    %cst_161 = arith.constant 1.000000e+00 : f32
    %491 = vector.broadcast %cst_161 : f32 to vector<8x32xf32>
    %492 = arith.addf %491, %490 : vector<8x32xf32>
    %493 = arith.divf %491, %492 : vector<8x32xf32>
    %494 = vector.extract_strided_slice %327 {offsets = [40, 0], sizes = [8, 32], strides = [1, 1]} : vector<64x32xf32> to vector<8x32xf32>
    %495 = arith.addf %494, %483 : vector<8x32xf32>
    %496 = arith.negf %495 : vector<8x32xf32>
    %497 = math.exp %496 : vector<8x32xf32>
    %cst_162 = arith.constant 1.000000e+00 : f32
    %498 = vector.broadcast %cst_162 : f32 to vector<8x32xf32>
    %499 = arith.addf %498, %497 : vector<8x32xf32>
    %500 = arith.divf %498, %499 : vector<8x32xf32>
    %501 = vector.extract_strided_slice %334 {offsets = [40, 0], sizes = [8, 32], strides = [1, 1]} : vector<64x32xf32> to vector<8x32xf32>
    %502 = arith.mulf %493, %486 : vector<8x32xf32>
    %503 = arith.addf %501, %502 : vector<8x32xf32>
    %504 = math.tanh %503 : vector<8x32xf32>
    %cst_163 = arith.constant 1.000000e+00 : f32
    %505 = vector.broadcast %cst_163 : f32 to vector<8x32xf32>
    %506 = arith.subf %505, %500 : vector<8x32xf32>
    %507 = arith.mulf %506, %504 : vector<8x32xf32>
    %508 = arith.mulf %500, %481 : vector<8x32xf32>
    %509 = arith.addf %507, %508 : vector<8x32xf32>
    %cst_164 = arith.constant dense<0.000000e+00> : vector<8x32xf32>
    %510 = tpu.matmul %509, %336, %cst_164 {dimension_numbers = #tpu.dot_dimension_numbers<[1], [0], [0], [1], [0, 0, 1, 1], [], []>} : vector<8x32xf32>, vector<32x32xf32>, vector<8x32xf32> -> vector<8x32xf32>
    %cst_165 = arith.constant dense<0.000000e+00> : vector<8x32xf32>
    %511 = tpu.matmul %509, %338, %cst_165 {dimension_numbers = #tpu.dot_dimension_numbers<[1], [0], [0], [1], [0, 0, 1, 1], [], []>} : vector<8x32xf32>, vector<32x32xf32>, vector<8x32xf32> -> vector<8x32xf32>
    %cst_166 = arith.constant dense<0.000000e+00> : vector<8x32xf32>
    %512 = tpu.matmul %509, %340, %cst_166 {dimension_numbers = #tpu.dot_dimension_numbers<[1], [0], [0], [1], [0, 0, 1, 1], [], []>} : vector<8x32xf32>, vector<32x32xf32>, vector<8x32xf32> -> vector<8x32xf32>
    %513 = vector.broadcast %341 : vector<1x32xf32> to vector<8x32xf32>
    %514 = arith.addf %512, %513 : vector<8x32xf32>
    %515 = vector.extract_strided_slice %320 {offsets = [48, 0], sizes = [8, 32], strides = [1, 1]} : vector<64x32xf32> to vector<8x32xf32>
    %516 = arith.addf %515, %510 : vector<8x32xf32>
    %517 = arith.negf %516 : vector<8x32xf32>
    %518 = math.exp %517 : vector<8x32xf32>
    %cst_167 = arith.constant 1.000000e+00 : f32
    %519 = vector.broadcast %cst_167 : f32 to vector<8x32xf32>
    %520 = arith.addf %519, %518 : vector<8x32xf32>
    %521 = arith.divf %519, %520 : vector<8x32xf32>
    %522 = vector.extract_strided_slice %327 {offsets = [48, 0], sizes = [8, 32], strides = [1, 1]} : vector<64x32xf32> to vector<8x32xf32>
    %523 = arith.addf %522, %511 : vector<8x32xf32>
    %524 = arith.negf %523 : vector<8x32xf32>
    %525 = math.exp %524 : vector<8x32xf32>
    %cst_168 = arith.constant 1.000000e+00 : f32
    %526 = vector.broadcast %cst_168 : f32 to vector<8x32xf32>
    %527 = arith.addf %526, %525 : vector<8x32xf32>
    %528 = arith.divf %526, %527 : vector<8x32xf32>
    %529 = vector.extract_strided_slice %334 {offsets = [48, 0], sizes = [8, 32], strides = [1, 1]} : vector<64x32xf32> to vector<8x32xf32>
    %530 = arith.mulf %521, %514 : vector<8x32xf32>
    %531 = arith.addf %529, %530 : vector<8x32xf32>
    %532 = math.tanh %531 : vector<8x32xf32>
    %cst_169 = arith.constant 1.000000e+00 : f32
    %533 = vector.broadcast %cst_169 : f32 to vector<8x32xf32>
    %534 = arith.subf %533, %528 : vector<8x32xf32>
    %535 = arith.mulf %534, %532 : vector<8x32xf32>
    %536 = arith.mulf %528, %509 : vector<8x32xf32>
    %537 = arith.addf %535, %536 : vector<8x32xf32>
    %cst_170 = arith.constant dense<0.000000e+00> : vector<8x32xf32>
    %538 = tpu.matmul %537, %336, %cst_170 {dimension_numbers = #tpu.dot_dimension_numbers<[1], [0], [0], [1], [0, 0, 1, 1], [], []>} : vector<8x32xf32>, vector<32x32xf32>, vector<8x32xf32> -> vector<8x32xf32>
    %cst_171 = arith.constant dense<0.000000e+00> : vector<8x32xf32>
    %539 = tpu.matmul %537, %338, %cst_171 {dimension_numbers = #tpu.dot_dimension_numbers<[1], [0], [0], [1], [0, 0, 1, 1], [], []>} : vector<8x32xf32>, vector<32x32xf32>, vector<8x32xf32> -> vector<8x32xf32>
    %cst_172 = arith.constant dense<0.000000e+00> : vector<8x32xf32>
    %540 = tpu.matmul %537, %340, %cst_172 {dimension_numbers = #tpu.dot_dimension_numbers<[1], [0], [0], [1], [0, 0, 1, 1], [], []>} : vector<8x32xf32>, vector<32x32xf32>, vector<8x32xf32> -> vector<8x32xf32>
    %541 = vector.broadcast %341 : vector<1x32xf32> to vector<8x32xf32>
    %542 = arith.addf %540, %541 : vector<8x32xf32>
    %543 = vector.extract_strided_slice %320 {offsets = [56, 0], sizes = [8, 32], strides = [1, 1]} : vector<64x32xf32> to vector<8x32xf32>
    %544 = arith.addf %543, %538 : vector<8x32xf32>
    %545 = arith.negf %544 : vector<8x32xf32>
    %546 = math.exp %545 : vector<8x32xf32>
    %cst_173 = arith.constant 1.000000e+00 : f32
    %547 = vector.broadcast %cst_173 : f32 to vector<8x32xf32>
    %548 = arith.addf %547, %546 : vector<8x32xf32>
    %549 = arith.divf %547, %548 : vector<8x32xf32>
    %550 = vector.extract_strided_slice %327 {offsets = [56, 0], sizes = [8, 32], strides = [1, 1]} : vector<64x32xf32> to vector<8x32xf32>
    %551 = arith.addf %550, %539 : vector<8x32xf32>
    %552 = arith.negf %551 : vector<8x32xf32>
    %553 = math.exp %552 : vector<8x32xf32>
    %cst_174 = arith.constant 1.000000e+00 : f32
    %554 = vector.broadcast %cst_174 : f32 to vector<8x32xf32>
    %555 = arith.addf %554, %553 : vector<8x32xf32>
    %556 = arith.divf %554, %555 : vector<8x32xf32>
    %557 = vector.extract_strided_slice %334 {offsets = [56, 0], sizes = [8, 32], strides = [1, 1]} : vector<64x32xf32> to vector<8x32xf32>
    %558 = arith.mulf %549, %542 : vector<8x32xf32>
    %559 = arith.addf %557, %558 : vector<8x32xf32>
    %560 = math.tanh %559 : vector<8x32xf32>
    %cst_175 = arith.constant 1.000000e+00 : f32
    %561 = vector.broadcast %cst_175 : f32 to vector<8x32xf32>
    %562 = arith.subf %561, %556 : vector<8x32xf32>
    %563 = arith.mulf %562, %560 : vector<8x32xf32>
    %564 = arith.mulf %556, %537 : vector<8x32xf32>
    %565 = arith.addf %563, %564 : vector<8x32xf32>
    %566 = tpu.concatenate %369, %397, %425, %453, %481, %509, %537, %565 in 0 : vector<8x32xf32>, vector<8x32xf32>, vector<8x32xf32>, vector<8x32xf32>, vector<8x32xf32>, vector<8x32xf32>, vector<8x32xf32>, vector<8x32xf32> -> vector<64x32xf32>
    %c0_176 = arith.constant 0 : index
    %c0_177 = arith.constant 0 : index
    %567 = vector.load %arg10[%c0_176, %c0_177] : memref<32x8xf32, #tpu.memory_space<vmem>>, vector<32x8xf32>
    %cst_178 = arith.constant dense<0.000000e+00> : vector<64x8xf32>
    %568 = tpu.matmul %566, %567, %cst_178 {dimension_numbers = #tpu.dot_dimension_numbers<[1], [0], [0], [1], [0, 0, 1, 1], [], []>} : vector<64x32xf32>, vector<32x8xf32>, vector<64x8xf32> -> vector<64x8xf32>
    %c0_179 = arith.constant 0 : index
    %c0_180 = arith.constant 0 : index
    %569 = vector.load %arg11[%c0_179, %c0_180] : memref<1x8xf32, #tpu.memory_space<vmem>>, vector<1x8xf32>
    %570 = vector.broadcast %569 : vector<1x8xf32> to vector<64x8xf32>
    %571 = arith.addf %568, %570 : vector<64x8xf32>
    %c0_181 = arith.constant 0 : index
    %c0_182 = arith.constant 0 : index
    %572 = vector.load %arg12[%c0_181, %c0_182] : memref<64x8xf32, #tpu.memory_space<vmem>>, vector<64x8xf32>
    tpu.vector_store %arg12[%c0_181, %c0_182], %571 {strides = array<i32>} : memref<64x8xf32, #tpu.memory_space<vmem>>, vector<64x8xf32>,
    return
  }
}

</mosaic_0001>

<llo_original>
// kernel: tpu_custom_call.1
$region0: #{tpu_custom_call.1}
  #allocation0 [shape = 'u32[]', space=smem, size = 0x4, offset = 0x4, fixed_abs, tag = 'smem constant byte address 0x4 - core index']
  #allocation1 [shape = 'u32[144,128]{1,0:T(1,128)}', space=vmem, size = 0x12000, scoped, tag = 'internal scratch']
  %s0 = inlined_call_operand.vmem [shape: f32[80,8], index: 0, kind: input, shape index: {}]
  %s1 = inlined_call_operand.vmem [shape: f32[64,8], index: 1, kind: input, shape index: {}]
  %s2 = inlined_call_operand.hbm [shape: f32[3,8,32], index: 2, kind: input, shape index: {}]
  %s3 = inlined_call_operand.vmem [shape: f32[3,32,32], index: 3, kind: input, shape index: {}]
  %s4 = inlined_call_operand.hbm [shape: f32[3,1,32], index: 4, kind: input, shape index: {}]
  %s5 = inlined_call_operand.vmem [shape: f32[1,32], index: 5, kind: input, shape index: {}]
  %s6 = inlined_call_operand.vmem [shape: f32[3,8,32], index: 6, kind: input, shape index: {}]
  %s7 = inlined_call_operand.vmem [shape: f32[3,32,32], index: 7, kind: input, shape index: {}]
  %s8 = inlined_call_operand.vmem [shape: f32[3,1,32], index: 8, kind: input, shape index: {}]
  %s9 = inlined_call_operand.vmem [shape: f32[1,32], index: 9, kind: input, shape index: {}]
  %s10 = inlined_call_operand.vmem [shape: f32[32,8], index: 10, kind: input, shape index: {}]
  %s11 = inlined_call_operand.vmem [shape: f32[1,8], index: 11, kind: input, shape index: {}]
  %s12 = inlined_call_operand.vmem [shape: f32[64,8], index: 12, kind: output, shape index: {0}]
  %s13 = inlined_call_operand.hbm [shape: f32[1,8,32], index: 13, kind: output, shape index: {1}]
  %14 = xla_tuple %s12, %s13
  %s15 = sld [smem:[#allocation0]]
  $region74: #{tpu_custom_call.1} parent=0
    _
  %s17 = ssub.s32 1, %s15
  %s18 = scalar_select 0, %s17, %s15
  $region1: #{tpu_custom_call.1} parent=0
    #allocation2 [shape = 'u8[12288]{0}', space=vmem, size = 0x3000, scoped, tag = 'input window, operand 2, single buffered']
    #allocation3 [shape = 's32[1]{0}', space=sflag, size = 0x4, scoped, tag = 'scoped memory for tpu_custom_call.1']
    #allocation4 [shape = 's32[1]{0}', space=sflag, size = 0x4, scoped, tag = 'scoped memory for tpu_custom_call.1']
    #allocation5 [shape = 'u8[1536]{0}', space=vmem, size = 0x800, scoped, tag = 'input window, operand 4, single buffered']
    #allocation6 [shape = 's32[1]{0}', space=sflag, size = 0x4, scoped, tag = 'scoped memory for tpu_custom_call.1']
    #allocation7 [shape = 'u8[4096]{0}', space=vmem, size = 0x1000, scoped, tag = 'output window, operand 1, single buffered']
    %19 = vsyncpa [#allocation3], 0
    %20 = vsyncpa [#allocation6], 0
    %21 = vsyncpa [#allocation4], 0
    // Predicated region
    $region2: #{tpu_custom_call.1} parent=1 // pred_check
      _
    $region3: #{tpu_custom_call.1} parent=1 // pred_check_branch
      %23 = sbr.rel (0) target = $region5
    $region4: #{tpu_custom_call.1} parent=1 // pred_region
      _
    $region5: #{tpu_custom_call.1} parent=1 // pred_fallthru
      _
    // Predicated region
    $region6: #{tpu_custom_call.1} parent=1 // pred_check
      _
    $region7: #{tpu_custom_call.1} parent=1 // pred_check_branch
      %25 = sbr.rel (0) target = $region9
    $region8: #{tpu_custom_call.1} parent=1 // pred_region
      _
    $region9: #{tpu_custom_call.1} parent=1 // pred_fallthru
      _
    // Predicated region
    $region10: #{tpu_custom_call.1} parent=1 // pred_check
      _
    $region11: #{tpu_custom_call.1} parent=1 // pred_check_branch
      %27 = sbr.rel (0) target = $region13
    $region12: #{tpu_custom_call.1} parent=1 // pred_region
      %s29 = ssub.s32 384, 384
      %30 = vsyncadd [#allocation3], %s29
      %s31 = sshll.u32 [#allocation2], 4
      %s32 = int_to_ptr.vmem [resolvable:$true] %s31
      %37 = dma.hbm_to_vmem [thread:$0]  %s2, 384, %s32, [#allocation3], 128, 128, 8
    $region13: #{tpu_custom_call.1} parent=1 // pred_fallthru
      _
    // Predicated region
    $region14: #{tpu_custom_call.1} parent=1 // pred_check
      _
    $region15: #{tpu_custom_call.1} parent=1 // pred_check_branch
      %39 = sbr.rel (0) target = $region17
    $region16: #{tpu_custom_call.1} parent=1 // pred_region
      _
    $region17: #{tpu_custom_call.1} parent=1 // pred_fallthru
      _
    // Predicated region
    $region18: #{tpu_custom_call.1} parent=1 // pred_check
      _
    $region19: #{tpu_custom_call.1} parent=1 // pred_check_branch
      %41 = sbr.rel (0) target = $region21
    $region20: #{tpu_custom_call.1} parent=1 // pred_region
      %s43 = ssub.s32 48, 48
      %44 = vsyncadd [#allocation6], %s43
      %s45 = sshll.u32 [#allocation5], 4
      %s46 = int_to_ptr.vmem [resolvable:$true] %s45
      %51 = dma.hbm_to_vmem [thread:$0]  %s4, 48, %s46, [#allocation6], 16, 16, 1
    $region21: #{tpu_custom_call.1} parent=1 // pred_fallthru
      _
    // Predicated region
    $region22: #{tpu_custom_call.1} parent=1 // pred_check
      _
    $region23: #{tpu_custom_call.1} parent=1 // pred_check_branch
      %53 = sbr.rel (0) target = $region25
    $region24: #{tpu_custom_call.1} parent=1 // pred_region
      _
    $region25: #{tpu_custom_call.1} parent=1 // pred_fallthru
      _
    // Predicated region
    $region26: #{tpu_custom_call.1} parent=1 // pred_check
      _
    $region27: #{tpu_custom_call.1} parent=1 // pred_check_branch
      %55 = sbr.rel (0) target = $region29
    $region28: #{tpu_custom_call.1} parent=1 // pred_region
      _
    $region29: #{tpu_custom_call.1} parent=1 // pred_fallthru
      _
    // Predicated region
    $region30: #{tpu_custom_call.1} parent=1 // pred_check
      _
    $region31: #{tpu_custom_call.1} parent=1 // pred_check_branch
      %57 = sbr.rel (0) target = $region33
    $region32: #{tpu_custom_call.1} parent=1 // pred_region
      _
    $region33: #{tpu_custom_call.1} parent=1 // pred_fallthru
      _
    // Predicated region
    $region34: #{tpu_custom_call.1} parent=1 // pred_check
      _
    $region35: #{tpu_custom_call.1} parent=1 // pred_check_branch
      %59 = sbr.rel (0) target = $region37
    $region36: #{tpu_custom_call.1} parent=1 // pred_region
      _
    $region37: #{tpu_custom_call.1} parent=1 // pred_fallthru
      _
    // Predicated region
    $region38: #{tpu_custom_call.1} parent=1 // pred_check
      _
    $region39: #{tpu_custom_call.1} parent=1 // pred_check_branch
      %61 = sbr.rel (0) target = $region41
    $region40: #{tpu_custom_call.1} parent=1 // pred_region
      _
    $region41: #{tpu_custom_call.1} parent=1 // pred_fallthru
      _
    // Predicated region
    $region42: #{tpu_custom_call.1} parent=1 // pred_check
      _
    $region43: #{tpu_custom_call.1} parent=1 // pred_check_branch
      %63 = sbr.rel (0) target = $region45
    $region44: #{tpu_custom_call.1} parent=1 // pred_region
      _
    $region45: #{tpu_custom_call.1} parent=1 // pred_fallthru
      _
    // Predicated region
    $region46: #{tpu_custom_call.1} parent=1 // pred_check
      _
    $region47: #{tpu_custom_call.1} parent=1 // pred_check_branch
      %65 = sbr.rel (0) target = $region49
    $region48: #{tpu_custom_call.1} parent=1 // pred_region
      _
    $region49: #{tpu_custom_call.1} parent=1 // pred_fallthru
      _
    // Predicated region
    $region50: #{tpu_custom_call.1} parent=1 // pred_check
      _
    $region51: #{tpu_custom_call.1} parent=1 // pred_check_branch
      %67 = sbr.rel (0) target = $region53
    $region52: #{tpu_custom_call.1} parent=1 // pred_region
      %68 = dma.done [#allocation3], 384
    $region53: #{tpu_custom_call.1} parent=1 // pred_fallthru
      _
    // Predicated region
    $region54: #{tpu_custom_call.1} parent=1 // pred_check
      _
    $region55: #{tpu_custom_call.1} parent=1 // pred_check_branch
      %70 = sbr.rel (0) target = $region57
    $region56: #{tpu_custom_call.1} parent=1 // pred_region
      %71 = dma.done [#allocation6], 48
    $region57: #{tpu_custom_call.1} parent=1 // pred_fallthru
      _
    %v72 = vld [vmem:[%s0] sm:$0xff]
    %v73 = vld [vmem:[%s0 + $0x8] sm:$0xff]
    %v74 = vld [vmem:[%s0 + $0x10] sm:$0xff]
    %v75 = vld [vmem:[%s0 + $0x18] sm:$0xff]
    %v76 = vld [vmem:[%s0 + $0x20] sm:$0xff]
    %v77 = vld [vmem:[%s0 + $0x28] sm:$0xff]
    %v78 = vld [vmem:[%s0 + $0x30] sm:$0xff]
    %v79 = vld [vmem:[%s0 + $0x38] sm:$0xff]
    %v80 = vld [vmem:[%s0 + $0x40] sm:$0xff]
    %v81 = vld [vmem:[%s0 + $0x48] sm:$0xff]
    %v82 = vld [vmem:[#allocation2] sm:$0xff]
    %v83 = vld [vmem:[#allocation5] sm:$0x1]
    %v85 = vlaneseq
    %v86 = vshrl.u32 %v85, 7
    %v87 = vsub.s32 0, %v86
    %v88 = vrot.slane %v83, %v87
    %vm90 = vcmask 64512
    %v92 = vsel %vm90, %v72, 0
    %v95 = vsel %vm90, %v73, 0
    %v98 = vsel %vm90, %v74, 0
    %v101 = vsel %vm90, %v75, 0
    %v104 = vsel %vm90, %v76, 0
    %v107 = vsel %vm90, %v77, 0
    %v110 = vsel %vm90, %v78, 0
    %v113 = vsel %vm90, %v79, 0
    %v116 = vsel %vm90, %v80, 0
    %v119 = vsel %vm90, %v81, 0
    %121 = vmatprep.subr.mxu0 0.0
    %122 = vmatpush1.msra.mxu0 %v82
    %123 = vmatprep.subr.mxu0 0.0
    %124 = vmatpush1.msra.mxu0 0.0
    %125 = vmatprep.subr.mxu0 0.0
    %126 = vmatpush1.msra.mxu0 0.0
    %127 = vmatprep.subr.mxu0 0.0
    %128 = vmatpush1.msra.mxu0 0.0
    %129 = vmatprep.subr.mxu0 0.0
    %130 = vmatpush1.msra.mxu0 0.0
    %131 = vmatprep.subr.mxu0 0.0
    %132 = vmatpush1.msra.mxu0 0.0
    %133 = vmatprep.subr.mxu0 0.0
    %134 = vmatpush1.msra.mxu0 0.0
    %135 = vmatprep.subr.mxu0 0.0
    %136 = vmatpush1.msra.mxu0 0.0
    %137 = vmatprep.subr.mxu0 0.0
    %138 = vmatpush1.msra.mxu0 0.0
    %139 = vmatprep.subr.mxu0 0.0
    %140 = vmatpush1.msra.mxu0 0.0
    %141 = vmatprep.subr.mxu0 0.0
    %142 = vmatpush1.msra.mxu0 0.0
    %143 = vmatprep.subr.mxu0 0.0
    %144 = vmatpush1.msra.mxu0 0.0
    %145 = vmatprep.subr.mxu0 0.0
    %146 = vmatpush1.msra.mxu0 0.0
    %147 = vmatprep.subr.mxu0 0.0
    %148 = vmatpush1.msra.mxu0 0.0
    %149 = vmatprep.subr.mxu0 0.0
    %150 = vmatpush1.msra.mxu0 0.0
    %151 = vmatprep.subr.mxu0 0.0
    %152 = vmatpush1.msra.mxu0 0.0
    %153 = vmatprep.subr.mxu0 0.0
    %154 = vmatpush1.msra.mxu0 0.0
    %155 = vmatprep.subr.mxu0 0.0
    %156 = vmatpush1.msra.mxu0 0.0
    %157 = vmatprep.subr.mxu0 0.0
    %158 = vmatpush1.msra.mxu0 0.0
    %159 = vmatprep.subr.mxu0 0.0
    %160 = vmatpush1.msra.mxu0 0.0
    %161 = vmatprep.subr.mxu0 0.0
    %162 = vmatpush1.msra.mxu0 0.0
    %163 = vmatprep.subr.mxu0 0.0
    %164 = vmatpush1.msra.mxu0 0.0
    %165 = vmatprep.subr.mxu0 0.0
    %166 = vmatpush1.msra.mxu0 0.0
    %167 = vmatprep.subr.mxu0 0.0
    %168 = vmatpush1.msra.mxu0 0.0
    %169 = vmatprep.subr.mxu0 0.0
    %170 = vmatpush1.msra.mxu0 0.0
    %171 = vmatprep.subr.mxu0 0.0
    %172 = vmatpush1.msra.mxu0 0.0
    %173 = vmatprep.subr.mxu0 0.0
    %174 = vmatpush1.msra.mxu0 0.0
    %175 = vmatprep.subr.mxu0 0.0
    %176 = vmatpush1.msra.mxu0 0.0
    %177 = vmatprep.subr.mxu0 0.0
    %178 = vmatpush1.msra.mxu0 0.0
    %179 = vmatprep.subr.mxu0 0.0
    %180 = vmatpush1.msra.mxu0 0.0
    %181 = vmatprep.subr.mxu0 0.0
    %182 = vmatpush1.msra.mxu0 0.0
    %183 = vmatprep.subr.mxu0 0.0
    %184 = vmatpush1.msra.mxu0 0.0
    %185 = vmatprep.mubr.f32.mxu0 0.0
    %186 = vmatmul.mubr.f32.gmra.mrb[0].mxu0 %v92
    %v187 = vpop.f32.mrb[0].mxu0
    %v188 = vadd.f32 %v88, %v187
    %v189 = vpop.f32.mrb[0].mxu0
    %190 = vmatprep.mubr.f32.mxu0 0.0
    %191 = vmatmul.mubr.f32.gmra.mrb[0].mxu0 %v95
    %v192 = vpop.f32.mrb[0].mxu0
    %v193 = vadd.f32 %v88, %v192
    %v194 = vpop.f32.mrb[0].mxu0
    %195 = vmatprep.mubr.f32.mxu0 0.0
    %196 = vmatmul.mubr.f32.gmra.mrb[0].mxu0 %v98
    %v197 = vpop.f32.mrb[0].mxu0
    %v198 = vadd.f32 %v88, %v197
    %v199 = vpop.f32.mrb[0].mxu0
    %200 = vmatprep.mubr.f32.mxu0 0.0
    %201 = vmatmul.mubr.f32.gmra.mrb[0].mxu0 %v101
    %v202 = vpop.f32.mrb[0].mxu0
    %v203 = vadd.f32 %v88, %v202
    %v204 = vpop.f32.mrb[0].mxu0
    %205 = vmatprep.mubr.f32.mxu0 0.0
    %206 = vmatmul.mubr.f32.gmra.mrb[0].mxu0 %v104
    %v207 = vpop.f32.mrb[0].mxu0
    %v208 = vadd.f32 %v88, %v207
    %v209 = vpop.f32.mrb[0].mxu0
    %210 = vmatprep.mubr.f32.mxu0 0.0
    %211 = vmatmul.mubr.f32.gmra.mrb[0].mxu0 %v107
    %v212 = vpop.f32.mrb[0].mxu0
    %v213 = vadd.f32 %v88, %v212
    %v214 = vpop.f32.mrb[0].mxu0
    %215 = vmatprep.mubr.f32.mxu0 0.0
    %216 = vmatmul.mubr.f32.gmra.mrb[0].mxu0 %v110
    %v217 = vpop.f32.mrb[0].mxu0
    %v218 = vadd.f32 %v88, %v217
    %v219 = vpop.f32.mrb[0].mxu0
    %220 = vmatprep.mubr.f32.mxu0 0.0
    %221 = vmatmul.mubr.f32.gmra.mrb[0].mxu0 %v113
    %v222 = vpop.f32.mrb[0].mxu0
    %v223 = vadd.f32 %v88, %v222
    %v224 = vpop.f32.mrb[0].mxu0
    %225 = vmatprep.mubr.f32.mxu0 0.0
    %226 = vmatmul.mubr.f32.gmra.mrb[0].mxu0 %v116
    %v227 = vpop.f32.mrb[0].mxu0
    %v228 = vadd.f32 %v88, %v227
    %v229 = vpop.f32.mrb[0].mxu0
    %230 = vmatprep.mubr.f32.mxu0 0.0
    %231 = vmatmul.mubr.f32.gmra.mrb[0].mxu0 %v119
    %v232 = vpop.f32.mrb[0].mxu0
    %v233 = vadd.f32 %v88, %v232
    %v234 = vpop.f32.mrb[0].mxu0
    %235 = vdwg.mxu0
    %s236 = scalar_lea.vmem [#allocation2], 8
    %v237 = vld [vmem:[%s236] sm:$0xff]
    %s238 = scalar_lea.vmem [#allocation5], 1
    %v239 = vld [vmem:[%s238] sm:$0x1]
    %v241 = vlaneseq
    %v242 = vshrl.u32 %v241, 7
    %v243 = vsub.s32 0, %v242
    %v244 = vrot.slane %v239, %v243
    %246 = vmatprep.subr.mxu0 0.0
    %247 = vmatpush1.msra.mxu0 %v237
    %248 = vmatprep.subr.mxu0 0.0
    %249 = vmatpush1.msra.mxu0 0.0
    %250 = vmatprep.subr.mxu0 0.0
    %251 = vmatpush1.msra.mxu0 0.0
    %252 = vmatprep.subr.mxu0 0.0
    %253 = vmatpush1.msra.mxu0 0.0
    %254 = vmatprep.subr.mxu0 0.0
    %255 = vmatpush1.msra.mxu0 0.0
    %256 = vmatprep.subr.mxu0 0.0
    %257 = vmatpush1.msra.mxu0 0.0
    %258 = vmatprep.subr.mxu0 0.0
    %259 = vmatpush1.msra.mxu0 0.0
    %260 = vmatprep.subr.mxu0 0.0
    %261 = vmatpush1.msra.mxu0 0.0
    %262 = vmatprep.subr.mxu0 0.0
    %263 = vmatpush1.msra.mxu0 0.0
    %264 = vmatprep.subr.mxu0 0.0
    %265 = vmatpush1.msra.mxu0 0.0
    %266 = vmatprep.subr.mxu0 0.0
    %267 = vmatpush1.msra.mxu0 0.0
    %268 = vmatprep.subr.mxu0 0.0
    %269 = vmatpush1.msra.mxu0 0.0
    %270 = vmatprep.subr.mxu0 0.0
    %271 = vmatpush1.msra.mxu0 0.0
    %272 = vmatprep.subr.mxu0 0.0
    %273 = vmatpush1.msra.mxu0 0.0
    %274 = vmatprep.subr.mxu0 0.0
    %275 = vmatpush1.msra.mxu0 0.0
    %276 = vmatprep.subr.mxu0 0.0
    %277 = vmatpush1.msra.mxu0 0.0
    %278 = vmatprep.subr.mxu0 0.0
    %279 = vmatpush1.msra.mxu0 0.0
    %280 = vmatprep.subr.mxu0 0.0
    %281 = vmatpush1.msra.mxu0 0.0
    %282 = vmatprep.subr.mxu0 0.0
    %283 = vmatpush1.msra.mxu0 0.0
    %284 = vmatprep.subr.mxu0 0.0
    %285 = vmatpush1.msra.mxu0 0.0
    %286 = vmatprep.subr.mxu0 0.0
    %287 = vmatpush1.msra.mxu0 0.0
    %288 = vmatprep.subr.mxu0 0.0
    %289 = vmatpush1.msra.mxu0 0.0
    %290 = vmatprep.subr.mxu0 0.0
    %291 = vmatpush1.msra.mxu0 0.0
    %292 = vmatprep.subr.mxu0 0.0
    %293 = vmatpush1.msra.mxu0 0.0
    %294 = vmatprep.subr.mxu0 0.0
    %295 = vmatpush1.msra.mxu0 0.0
    %296 = vmatprep.subr.mxu0 0.0
    %297 = vmatpush1.msra.mxu0 0.0
    %298 = vmatprep.subr.mxu0 0.0
    %299 = vmatpush1.msra.mxu0 0.0
    %300 = vmatprep.subr.mxu0 0.0
    %301 = vmatpush1.msra.mxu0 0.0
    %302 = vmatprep.subr.mxu0 0.0
    %303 = vmatpush1.msra.mxu0 0.0
    %304 = vmatprep.subr.mxu0 0.0
    %305 = vmatpush1.msra.mxu0 0.0
    %306 = vmatprep.subr.mxu0 0.0
    %307 = vmatpush1.msra.mxu0 0.0
    %308 = vmatprep.subr.mxu0 0.0
    %309 = vmatpush1.msra.mxu0 0.0
    %310 = vmatprep.mubr.f32.mxu0 0.0
    %311 = vmatmul.mubr.f32.gmra.mrb[0].mxu0 %v92
    %v312 = vpop.f32.mrb[0].mxu0
    %v313 = vadd.f32 %v244, %v312
    %v314 = vpop.f32.mrb[0].mxu0
    %315 = vmatprep.mubr.f32.mxu0 0.0
    %316 = vmatmul.mubr.f32.gmra.mrb[0].mxu0 %v95
    %v317 = vpop.f32.mrb[0].mxu0
    %v318 = vadd.f32 %v244, %v317
    %v319 = vpop.f32.mrb[0].mxu0
    %320 = vmatprep.mubr.f32.mxu0 0.0
    %321 = vmatmul.mubr.f32.gmra.mrb[0].mxu0 %v98
    %v322 = vpop.f32.mrb[0].mxu0
    %v323 = vadd.f32 %v244, %v322
    %v324 = vpop.f32.mrb[0].mxu0
    %325 = vmatprep.mubr.f32.mxu0 0.0
    %326 = vmatmul.mubr.f32.gmra.mrb[0].mxu0 %v101
    %v327 = vpop.f32.mrb[0].mxu0
    %v328 = vadd.f32 %v244, %v327
    %v329 = vpop.f32.mrb[0].mxu0
    %330 = vmatprep.mubr.f32.mxu0 0.0
    %331 = vmatmul.mubr.f32.gmra.mrb[0].mxu0 %v104
    %v332 = vpop.f32.mrb[0].mxu0
    %v333 = vadd.f32 %v244, %v332
    %v334 = vpop.f32.mrb[0].mxu0
    %335 = vmatprep.mubr.f32.mxu0 0.0
    %336 = vmatmul.mubr.f32.gmra.mrb[0].mxu0 %v107
    %v337 = vpop.f32.mrb[0].mxu0
    %v338 = vadd.f32 %v244, %v337
    %v339 = vpop.f32.mrb[0].mxu0
    %340 = vmatprep.mubr.f32.mxu0 0.0
    %341 = vmatmul.mubr.f32.gmra.mrb[0].mxu0 %v110
    %v342 = vpop.f32.mrb[0].mxu0
    %v343 = vadd.f32 %v244, %v342
    %v344 = vpop.f32.mrb[0].mxu0
    %345 = vmatprep.mubr.f32.mxu0 0.0
    %346 = vmatmul.mubr.f32.gmra.mrb[0].mxu0 %v113
    %v347 = vpop.f32.mrb[0].mxu0
    %v348 = vadd.f32 %v244, %v347
    %v349 = vpop.f32.mrb[0].mxu0
    %350 = vmatprep.mubr.f32.mxu0 0.0
    %351 = vmatmul.mubr.f32.gmra.mrb[0].mxu0 %v116
    %v352 = vpop.f32.mrb[0].mxu0
    %v353 = vadd.f32 %v244, %v352
    %v354 = vpop.f32.mrb[0].mxu0
    %355 = vmatprep.mubr.f32.mxu0 0.0
    %356 = vmatmul.mubr.f32.gmra.mrb[0].mxu0 %v119
    %v357 = vpop.f32.mrb[0].mxu0
    %v358 = vadd.f32 %v244, %v357
    %v359 = vpop.f32.mrb[0].mxu0
    %360 = vdwg.mxu0
    %s361 = scalar_lea.vmem [#allocation2], 16
    %v362 = vld [vmem:[%s361] sm:$0xff]
    %s363 = scalar_lea.vmem [#allocation5], 2
    %v364 = vld [vmem:[%s363] sm:$0x1]
    %v366 = vlaneseq
    %v367 = vshrl.u32 %v366, 7
    %v368 = vsub.s32 0, %v367
    %v369 = vrot.slane %v364, %v368
    %371 = vmatprep.subr.mxu0 0.0
    %372 = vmatpush1.msra.mxu0 %v362
    %373 = vmatprep.subr.mxu0 0.0
    %374 = vmatpush1.msra.mxu0 0.0
    %375 = vmatprep.subr.mxu0 0.0
    %376 = vmatpush1.msra.mxu0 0.0
    %377 = vmatprep.subr.mxu0 0.0
    %378 = vmatpush1.msra.mxu0 0.0
    %379 = vmatprep.subr.mxu0 0.0
    %380 = vmatpush1.msra.mxu0 0.0
    %381 = vmatprep.subr.mxu0 0.0
    %382 = vmatpush1.msra.mxu0 0.0
    %383 = vmatprep.subr.mxu0 0.0
    %384 = vmatpush1.msra.mxu0 0.0
    %385 = vmatprep.subr.mxu0 0.0
    %386 = vmatpush1.msra.mxu0 0.0
    %387 = vmatprep.subr.mxu0 0.0
    %388 = vmatpush1.msra.mxu0 0.0
    %389 = vmatprep.subr.mxu0 0.0
    %390 = vmatpush1.msra.mxu0 0.0
    %391 = vmatprep.subr.mxu0 0.0
    %392 = vmatpush1.msra.mxu0 0.0
    %393 = vmatprep.subr.mxu0 0.0
    %394 = vmatpush1.msra.mxu0 0.0
    %395 = vmatprep.subr.mxu0 0.0
    %396 = vmatpush1.msra.mxu0 0.0
    %397 = vmatprep.subr.mxu0 0.0
    %398 = vmatpush1.msra.mxu0 0.0
    %399 = vmatprep.subr.mxu0 0.0
    %400 = vmatpush1.msra.mxu0 0.0
    %401 = vmatprep.subr.mxu0 0.0
    %402 = vmatpush1.msra.mxu0 0.0
    %403 = vmatprep.subr.mxu0 0.0
    %404 = vmatpush1.msra.mxu0 0.0
    %405 = vmatprep.subr.mxu0 0.0
    %406 = vmatpush1.msra.mxu0 0.0
    %407 = vmatprep.subr.mxu0 0.0
    %408 = vmatpush1.msra.mxu0 0.0
    %409 = vmatprep.subr.mxu0 0.0
    %410 = vmatpush1.msra.mxu0 0.0
    %411 = vmatprep.subr.mxu0 0.0
    %412 = vmatpush1.msra.mxu0 0.0
    %413 = vmatprep.subr.mxu0 0.0
    %414 = vmatpush1.msra.mxu0 0.0
    %415 = vmatprep.subr.mxu0 0.0
    %416 = vmatpush1.msra.mxu0 0.0
    %417 = vmatprep.subr.mxu0 0.0
    %418 = vmatpush1.msra.mxu0 0.0
    %419 = vmatprep.subr.mxu0 0.0
    %420 = vmatpush1.msra.mxu0 0.0
    %421 = vmatprep.subr.mxu0 0.0
    %422 = vmatpush1.msra.mxu0 0.0
    %423 = vmatprep.subr.mxu0 0.0
    %424 = vmatpush1.msra.mxu0 0.0
    %425 = vmatprep.subr.mxu0 0.0
    %426 = vmatpush1.msra.mxu0 0.0
    %427 = vmatprep.subr.mxu0 0.0
    %428 = vmatpush1.msra.mxu0 0.0
    %429 = vmatprep.subr.mxu0 0.0
    %430 = vmatpush1.msra.mxu0 0.0
    %431 = vmatprep.subr.mxu0 0.0
    %432 = vmatpush1.msra.mxu0 0.0
    %433 = vmatprep.subr.mxu0 0.0
    %434 = vmatpush1.msra.mxu0 0.0
    %435 = vmatprep.mubr.f32.mxu0 0.0
    %436 = vmatmul.mubr.f32.gmra.mrb[0].mxu0 %v92
    %v437 = vpop.f32.mrb[0].mxu0
    %v438 = vadd.f32 %v369, %v437
    %v439 = vpop.f32.mrb[0].mxu0
    %440 = vmatprep.mubr.f32.mxu0 0.0
    %441 = vmatmul.mubr.f32.gmra.mrb[0].mxu0 %v95
    %v442 = vpop.f32.mrb[0].mxu0
    %v443 = vadd.f32 %v369, %v442
    %v444 = vpop.f32.mrb[0].mxu0
    %445 = vmatprep.mubr.f32.mxu0 0.0
    %446 = vmatmul.mubr.f32.gmra.mrb[0].mxu0 %v98
    %v447 = vpop.f32.mrb[0].mxu0
    %v448 = vadd.f32 %v369, %v447
    %v449 = vpop.f32.mrb[0].mxu0
    %450 = vmatprep.mubr.f32.mxu0 0.0
    %451 = vmatmul.mubr.f32.gmra.mrb[0].mxu0 %v101
    %v452 = vpop.f32.mrb[0].mxu0
    %v453 = vadd.f32 %v369, %v452
    %v454 = vpop.f32.mrb[0].mxu0
    %455 = vmatprep.mubr.f32.mxu0 0.0
    %456 = vmatmul.mubr.f32.gmra.mrb[0].mxu0 %v104
    %v457 = vpop.f32.mrb[0].mxu0
    %v458 = vadd.f32 %v369, %v457
    %v459 = vpop.f32.mrb[0].mxu0
    %460 = vmatprep.mubr.f32.mxu0 0.0
    %461 = vmatmul.mubr.f32.gmra.mrb[0].mxu0 %v107
    %v462 = vpop.f32.mrb[0].mxu0
    %v463 = vadd.f32 %v369, %v462
    %v464 = vpop.f32.mrb[0].mxu0
    %465 = vmatprep.mubr.f32.mxu0 0.0
    %466 = vmatmul.mubr.f32.gmra.mrb[0].mxu0 %v110
    %v467 = vpop.f32.mrb[0].mxu0
    %v468 = vadd.f32 %v369, %v467
    %v469 = vpop.f32.mrb[0].mxu0
    %470 = vmatprep.mubr.f32.mxu0 0.0
    %471 = vmatmul.mubr.f32.gmra.mrb[0].mxu0 %v113
    %v472 = vpop.f32.mrb[0].mxu0
    %v473 = vadd.f32 %v369, %v472
    %v474 = vpop.f32.mrb[0].mxu0
    %475 = vmatprep.mubr.f32.mxu0 0.0
    %476 = vmatmul.mubr.f32.gmra.mrb[0].mxu0 %v116
    %v477 = vpop.f32.mrb[0].mxu0
    %v478 = vadd.f32 %v369, %v477
    %v479 = vpop.f32.mrb[0].mxu0
    %480 = vmatprep.mubr.f32.mxu0 0.0
    %481 = vmatmul.mubr.f32.gmra.mrb[0].mxu0 %v119
    %v482 = vpop.f32.mrb[0].mxu0
    %v483 = vadd.f32 %v369, %v482
    %v484 = vpop.f32.mrb[0].mxu0
    %485 = vdwg.mxu0
    %v486 = vld [vmem:[%s3] sm:$0xff]
    %v487 = vld [vmem:[%s3 + $0x8] sm:$0xff]
    %v488 = vld [vmem:[%s3 + $0x10] sm:$0xff]
    %v489 = vld [vmem:[%s3 + $0x18] sm:$0xff]
    %s490 = scalar_lea.vmem %s3, 32
    %v491 = vld [vmem:[%s490] sm:$0xff]
    %v492 = vld [vmem:[%s490 + $0x8] sm:$0xff]
    %v493 = vld [vmem:[%s490 + $0x10] sm:$0xff]
    %v494 = vld [vmem:[%s490 + $0x18] sm:$0xff]
    %s495 = scalar_lea.vmem %s3, 64
    %v496 = vld [vmem:[%s495] sm:$0xff]
    %v497 = vld [vmem:[%s495 + $0x8] sm:$0xff]
    %v498 = vld [vmem:[%s495 + $0x10] sm:$0xff]
    %v499 = vld [vmem:[%s495 + $0x18] sm:$0xff]
    %v500 = vld [vmem:[%s5] sm:$0x1]
    %vm501 = vcmask 261120
    %v503 = vsel %vm501, 0.0, 0
    %505 = vmatprep.subr.mxu0 0.0
    %506 = vmatpush1.msra.mxu0 %v486
    %507 = vmatprep.subr.mxu0 0.0
    %508 = vmatpush1.msra.mxu0 %v487
    %509 = vmatprep.subr.mxu0 0.0
    %510 = vmatpush1.msra.mxu0 %v488
    %511 = vmatprep.subr.mxu0 0.0
    %512 = vmatpush1.msra.mxu0 %v489
    %513 = vmatprep.subr.mxu0 0.0
    %514 = vmatpush1.msra.mxu0 0.0
    %515 = vmatprep.subr.mxu0 0.0
    %516 = vmatpush1.msra.mxu0 0.0
    %517 = vmatprep.subr.mxu0 0.0
    %518 = vmatpush1.msra.mxu0 0.0
    %519 = vmatprep.subr.mxu0 0.0
    %520 = vmatpush1.msra.mxu0 0.0
    %521 = vmatprep.subr.mxu0 0.0
    %522 = vmatpush1.msra.mxu0 0.0
    %523 = vmatprep.subr.mxu0 0.0
    %524 = vmatpush1.msra.mxu0 0.0
    %525 = vmatprep.subr.mxu0 0.0
    %526 = vmatpush1.msra.mxu0 0.0
    %527 = vmatprep.subr.mxu0 0.0
    %528 = vmatpush1.msra.mxu0 0.0
    %529 = vmatprep.subr.mxu0 0.0
    %530 = vmatpush1.msra.mxu0 0.0
    %531 = vmatprep.subr.mxu0 0.0
    %532 = vmatpush1.msra.mxu0 0.0
    %533 = vmatprep.subr.mxu0 0.0
    %534 = vmatpush1.msra.mxu0 0.0
    %535 = vmatprep.subr.mxu0 0.0
    %536 = vmatpush1.msra.mxu0 0.0
    %537 = vmatprep.subr.mxu0 0.0
    %538 = vmatpush1.msra.mxu0 0.0
    %539 = vmatprep.subr.mxu0 0.0
    %540 = vmatpush1.msra.mxu0 0.0
    %541 = vmatprep.subr.mxu0 0.0
    %542 = vmatpush1.msra.mxu0 0.0
    %543 = vmatprep.subr.mxu0 0.0
    %544 = vmatpush1.msra.mxu0 0.0
    %545 = vmatprep.subr.mxu0 0.0
    %546 = vmatpush1.msra.mxu0 0.0
    %547 = vmatprep.subr.mxu0 0.0
    %548 = vmatpush1.msra.mxu0 0.0
    %549 = vmatprep.subr.mxu0 0.0
    %550 = vmatpush1.msra.mxu0 0.0
    %551 = vmatprep.subr.mxu0 0.0
    %552 = vmatpush1.msra.mxu0 0.0
    %553 = vmatprep.subr.mxu0 0.0
    %554 = vmatpush1.msra.mxu0 0.0
    %555 = vmatprep.subr.mxu0 0.0
    %556 = vmatpush1.msra.mxu0 0.0
    %557 = vmatprep.subr.mxu0 0.0
    %558 = vmatpush1.msra.mxu0 0.0
    %559 = vmatprep.subr.mxu0 0.0
    %560 = vmatpush1.msra.mxu0 0.0
    %561 = vmatprep.subr.mxu0 0.0
    %562 = vmatpush1.msra.mxu0 0.0
    %563 = vmatprep.subr.mxu0 0.0
    %564 = vmatpush1.msra.mxu0 0.0
    %565 = vmatprep.subr.mxu0 0.0
    %566 = vmatpush1.msra.mxu0 0.0
    %567 = vmatprep.subr.mxu0 0.0
    %568 = vmatpush1.msra.mxu0 0.0
    %569 = vmatprep.mubr.f32.mxu0 0.0
    %570 = vmatmul.mubr.f32.gmra.mrb[0].mxu0 %v503
    %v571 = vpop.f32.mrb[0].mxu0
    %v572 = vadd.f32 0.0, %v571
    %v573 = vpop.f32.mrb[0].mxu0
    %574 = vdwg.mxu0
    %575 = vmatprep.subr.mxu0 0.0
    %576 = vmatpush1.msra.mxu0 %v491
    %577 = vmatprep.subr.mxu0 0.0
    %578 = vmatpush1.msra.mxu0 %v492
    %579 = vmatprep.subr.mxu0 0.0
    %580 = vmatpush1.msra.mxu0 %v493
    %581 = vmatprep.subr.mxu0 0.0
    %582 = vmatpush1.msra.mxu0 %v494
    %583 = vmatprep.subr.mxu0 0.0
    %584 = vmatpush1.msra.mxu0 0.0
    %585 = vmatprep.subr.mxu0 0.0
    %586 = vmatpush1.msra.mxu0 0.0
    %587 = vmatprep.subr.mxu0 0.0
    %588 = vmatpush1.msra.mxu0 0.0
    %589 = vmatprep.subr.mxu0 0.0
    %590 = vmatpush1.msra.mxu0 0.0
    %591 = vmatprep.subr.mxu0 0.0
    %592 = vmatpush1.msra.mxu0 0.0
    %593 = vmatprep.subr.mxu0 0.0
    %594 = vmatpush1.msra.mxu0 0.0
    %595 = vmatprep.subr.mxu0 0.0
    %596 = vmatpush1.msra.mxu0 0.0
    %597 = vmatprep.subr.mxu0 0.0
    %598 = vmatpush1.msra.mxu0 0.0
    %599 = vmatprep.subr.mxu0 0.0
    %600 = vmatpush1.msra.mxu0 0.0
    %601 = vmatprep.subr.mxu0 0.0
    %602 = vmatpush1.msra.mxu0 0.0
    %603 = vmatprep.subr.mxu0 0.0
    %604 = vmatpush1.msra.mxu0 0.0
    %605 = vmatprep.subr.mxu0 0.0
    %606 = vmatpush1.msra.mxu0 0.0
    %607 = vmatprep.subr.mxu0 0.0
    %608 = vmatpush1.msra.mxu0 0.0
    %609 = vmatprep.subr.mxu0 0.0
    %610 = vmatpush1.msra.mxu0 0.0
    %611 = vmatprep.subr.mxu0 0.0
    %612 = vmatpush1.msra.mxu0 0.0
    %613 = vmatprep.subr.mxu0 0.0
    %614 = vmatpush1.msra.mxu0 0.0
    %615 = vmatprep.subr.mxu0 0.0
    %616 = vmatpush1.msra.mxu0 0.0
    %617 = vmatprep.subr.mxu0 0.0
    %618 = vmatpush1.msra.mxu0 0.0
    %619 = vmatprep.subr.mxu0 0.0
    %620 = vmatpush1.msra.mxu0 0.0
    %621 = vmatprep.subr.mxu0 0.0
    %622 = vmatpush1.msra.mxu0 0.0
    %623 = vmatprep.subr.mxu0 0.0
    %624 = vmatpush1.msra.mxu0 0.0
    %625 = vmatprep.subr.mxu0 0.0
    %626 = vmatpush1.msra.mxu0 0.0
    %627 = vmatprep.subr.mxu0 0.0
    %628 = vmatpush1.msra.mxu0 0.0
    %629 = vmatprep.subr.mxu0 0.0
    %630 = vmatpush1.msra.mxu0 0.0
    %631 = vmatprep.subr.mxu0 0.0
    %632 = vmatpush1.msra.mxu0 0.0
    %633 = vmatprep.subr.mxu0 0.0
    %634 = vmatpush1.msra.mxu0 0.0
    %635 = vmatprep.subr.mxu0 0.0
    %636 = vmatpush1.msra.mxu0 0.0
    %637 = vmatprep.subr.mxu0 0.0
    %638 = vmatpush1.msra.mxu0 0.0
    %639 = vmatprep.mubr.f32.mxu0 0.0
    %640 = vmatmul.mubr.f32.gmra.mrb[0].mxu0 %v503
    %v641 = vpop.f32.mrb[0].mxu0
    %v642 = vadd.f32 0.0, %v641
    %v643 = vpop.f32.mrb[0].mxu0
    %644 = vdwg.mxu0
    %v646 = vlaneseq
    %v647 = vshrl.u32 %v646, 7
    %v648 = vsub.s32 0, %v647
    %v649 = vrot.slane %v500, %v648
    %651 = vmatprep.subr.mxu0 0.0
    %652 = vmatpush1.msra.mxu0 %v496
    %653 = vmatprep.subr.mxu0 0.0
    %654 = vmatpush1.msra.mxu0 %v497
    %655 = vmatprep.subr.mxu0 0.0
    %656 = vmatpush1.msra.mxu0 %v498
    %657 = vmatprep.subr.mxu0 0.0
    %658 = vmatpush1.msra.mxu0 %v499
    %659 = vmatprep.subr.mxu0 0.0
    %660 = vmatpush1.msra.mxu0 0.0
    %661 = vmatprep.subr.mxu0 0.0
    %662 = vmatpush1.msra.mxu0 0.0
    %663 = vmatprep.subr.mxu0 0.0
    %664 = vmatpush1.msra.mxu0 0.0
    %665 = vmatprep.subr.mxu0 0.0
    %666 = vmatpush1.msra.mxu0 0.0
    %667 = vmatprep.subr.mxu0 0.0
    %668 = vmatpush1.msra.mxu0 0.0
    %669 = vmatprep.subr.mxu0 0.0
    %670 = vmatpush1.msra.mxu0 0.0
    %671 = vmatprep.subr.mxu0 0.0
    %672 = vmatpush1.msra.mxu0 0.0
    %673 = vmatprep.subr.mxu0 0.0
    %674 = vmatpush1.msra.mxu0 0.0
    %675 = vmatprep.subr.mxu0 0.0
    %676 = vmatpush1.msra.mxu0 0.0
    %677 = vmatprep.subr.mxu0 0.0
    %678 = vmatpush1.msra.mxu0 0.0
    %679 = vmatprep.subr.mxu0 0.0
    %680 = vmatpush1.msra.mxu0 0.0
    %681 = vmatprep.subr.mxu0 0.0
    %682 = vmatpush1.msra.mxu0 0.0
    %683 = vmatprep.subr.mxu0 0.0
    %684 = vmatpush1.msra.mxu0 0.0
    %685 = vmatprep.subr.mxu0 0.0
    %686 = vmatpush1.msra.mxu0 0.0
    %687 = vmatprep.subr.mxu0 0.0
    %688 = vmatpush1.msra.mxu0 0.0
    %689 = vmatprep.subr.mxu0 0.0
    %690 = vmatpush1.msra.mxu0 0.0
    %691 = vmatprep.subr.mxu0 0.0
    %692 = vmatpush1.msra.mxu0 0.0
    %693 = vmatprep.subr.mxu0 0.0
    %694 = vmatpush1.msra.mxu0 0.0
    %695 = vmatprep.subr.mxu0 0.0
    %696 = vmatpush1.msra.mxu0 0.0
    %697 = vmatprep.subr.mxu0 0.0
    %698 = vmatpush1.msra.mxu0 0.0
    %699 = vmatprep.subr.mxu0 0.0
    %700 = vmatpush1.msra.mxu0 0.0
    %701 = vmatprep.subr.mxu0 0.0
    %702 = vmatpush1.msra.mxu0 0.0
    %703 = vmatprep.subr.mxu0 0.0
    %704 = vmatpush1.msra.mxu0 0.0
    %705 = vmatprep.subr.mxu0 0.0
    %706 = vmatpush1.msra.mxu0 0.0
    %707 = vmatprep.subr.mxu0 0.0
    %708 = vmatpush1.msra.mxu0 0.0
    %709 = vmatprep.subr.mxu0 0.0
    %710 = vmatpush1.msra.mxu0 0.0
    %711 = vmatprep.subr.mxu0 0.0
    %712 = vmatpush1.msra.mxu0 0.0
    %713 = vmatprep.subr.mxu0 0.0
    %714 = vmatpush1.msra.mxu0 0.0
    %715 = vmatprep.mubr.f32.mxu0 0.0
    %716 = vmatmul.mubr.f32.gmra.mrb[0].mxu0 %v503
    %v717 = vpop.f32.mrb[0].mxu0
    %v718 = vadd.f32 %v649, %v717
    %v719 = vpop.f32.mrb[0].mxu0
    %720 = vdwg.mxu0
    %v721 = vadd.f32 %v188, %v572
    %v722 = vxor.u32 %v721, 2147483648
    %v723 = vmul.f32 %v722, 1.442695
    %v724 = vpow.pop %v723
    %v725 = vadd.f32 %v724, 1.0
    %v726 = vrcp.pop %v725
    %v727 = vmul.f32 1.0, %v726
    %v728 = vadd.f32 %v313, %v642
    %v729 = vxor.u32 %v728, 2147483648
    %v730 = vmul.f32 %v729, 1.442695
    %v731 = vpow.pop %v730
    %v732 = vadd.f32 %v731, 1.0
    %v733 = vrcp.pop %v732
    %v734 = vmul.f32 1.0, %v733
    %v735 = vmul.f32 %v727, %v718
    %v736 = vadd.f32 %v438, %v735
    %v737 = vtanh.pop %v736
    %v738 = vsub.f32 1.0, %v734
    %v739 = vmul.f32 %v738, %v737
    %v740 = vmul.f32 %v734, 0.0
    %v741 = vadd.f32 %v739, %v740
    %v743 = vsel %vm501, %v741, 0
    %745 = vmatprep.subr.mxu0 0.0
    %746 = vmatpush1.msra.mxu0 %v486
    %747 = vmatprep.subr.mxu0 0.0
    %748 = vmatpush1.msra.mxu0 %v487
    %749 = vmatprep.subr.mxu0 0.0
    %750 = vmatpush1.msra.mxu0 %v488
    %751 = vmatprep.subr.mxu0 0.0
    %752 = vmatpush1.msra.mxu0 %v489
    %753 = vmatprep.subr.mxu0 0.0
    %754 = vmatpush1.msra.mxu0 0.0
    %755 = vmatprep.subr.mxu0 0.0
    %756 = vmatpush1.msra.mxu0 0.0
    %757 = vmatprep.subr.mxu0 0.0
    %758 = vmatpush1.msra.mxu0 0.0
    %759 = vmatprep.subr.mxu0 0.0
    %760 = vmatpush1.msra.mxu0 0.0
    %761 = vmatprep.subr.mxu0 0.0
    %762 = vmatpush1.msra.mxu0 0.0
    %763 = vmatprep.subr.mxu0 0.0
    %764 = vmatpush1.msra.mxu0 0.0
    %765 = vmatprep.subr.mxu0 0.0
    %766 = vmatpush1.msra.mxu0 0.0
    %767 = vmatprep.subr.mxu0 0.0
    %768 = vmatpush1.msra.mxu0 0.0
    %769 = vmatprep.subr.mxu0 0.0
    %770 = vmatpush1.msra.mxu0 0.0
    %771 = vmatprep.subr.mxu0 0.0
    %772 = vmatpush1.msra.mxu0 0.0
    %773 = vmatprep.subr.mxu0 0.0
    %774 = vmatpush1.msra.mxu0 0.0
    %775 = vmatprep.subr.mxu0 0.0
    %776 = vmatpush1.msra.mxu0 0.0
    %777 = vmatprep.subr.mxu0 0.0
    %778 = vmatpush1.msra.mxu0 0.0
    %779 = vmatprep.subr.mxu0 0.0
    %780 = vmatpush1.msra.mxu0 0.0
    %781 = vmatprep.subr.mxu0 0.0
    %782 = vmatpush1.msra.mxu0 0.0
    %783 = vmatprep.subr.mxu0 0.0
    %784 = vmatpush1.msra.mxu0 0.0
    %785 = vmatprep.subr.mxu0 0.0
    %786 = vmatpush1.msra.mxu0 0.0
    %787 = vmatprep.subr.mxu0 0.0
    %788 = vmatpush1.msra.mxu0 0.0
    %789 = vmatprep.subr.mxu0 0.0
    %790 = vmatpush1.msra.mxu0 0.0
    %791 = vmatprep.subr.mxu0 0.0
    %792 = vmatpush1.msra.mxu0 0.0
    %793 = vmatprep.subr.mxu0 0.0
    %794 = vmatpush1.msra.mxu0 0.0
    %795 = vmatprep.subr.mxu0 0.0
    %796 = vmatpush1.msra.mxu0 0.0
    %797 = vmatprep.subr.mxu0 0.0
    %798 = vmatpush1.msra.mxu0 0.0
    %799 = vmatprep.subr.mxu0 0.0
    %800 = vmatpush1.msra.mxu0 0.0
    %801 = vmatprep.subr.mxu0 0.0
    %802 = vmatpush1.msra.mxu0 0.0
    %803 = vmatprep.subr.mxu0 0.0
    %804 = vmatpush1.msra.mxu0 0.0
    %805 = vmatprep.subr.mxu0 0.0
    %806 = vmatpush1.msra.mxu0 0.0
    %807 = vmatprep.subr.mxu0 0.0
    %808 = vmatpush1.msra.mxu0 0.0
    %809 = vmatprep.mubr.f32.mxu0 0.0
    %810 = vmatmul.mubr.f32.gmra.mrb[0].mxu0 %v743
    %v811 = vpop.f32.mrb[0].mxu0
    %v812 = vadd.f32 0.0, %v811
    %v813 = vpop.f32.mrb[0].mxu0
    %814 = vdwg.mxu0
    %815 = vmatprep.subr.mxu0 0.0
    %816 = vmatpush1.msra.mxu0 %v491
    %817 = vmatprep.subr.mxu0 0.0
    %818 = vmatpush1.msra.mxu0 %v492
    %819 = vmatprep.subr.mxu0 0.0
    %820 = vmatpush1.msra.mxu0 %v493
    %821 = vmatprep.subr.mxu0 0.0
    %822 = vmatpush1.msra.mxu0 %v494
    %823 = vmatprep.subr.mxu0 0.0
    %824 = vmatpush1.msra.mxu0 0.0
    %825 = vmatprep.subr.mxu0 0.0
    %826 = vmatpush1.msra.mxu0 0.0
    %827 = vmatprep.subr.mxu0 0.0
    %828 = vmatpush1.msra.mxu0 0.0
    %829 = vmatprep.subr.mxu0 0.0
    %830 = vmatpush1.msra.mxu0 0.0
    %831 = vmatprep.subr.mxu0 0.0
    %832 = vmatpush1.msra.mxu0 0.0
    %833 = vmatprep.subr.mxu0 0.0
    %834 = vmatpush1.msra.mxu0 0.0
    %835 = vmatprep.subr.mxu0 0.0
    %836 = vmatpush1.msra.mxu0 0.0
    %837 = vmatprep.subr.mxu0 0.0
    %838 = vmatpush1.msra.mxu0 0.0
    %839 = vmatprep.subr.mxu0 0.0
    %840 = vmatpush1.msra.mxu0 0.0
    %841 = vmatprep.subr.mxu0 0.0
    %842 = vmatpush1.msra.mxu0 0.0
    %843 = vmatprep.subr.mxu0 0.0
    %844 = vmatpush1.msra.mxu0 0.0
    %845 = vmatprep.subr.mxu0 0.0
    %846 = vmatpush1.msra.mxu0 0.0
    %847 = vmatprep.subr.mxu0 0.0
    %848 = vmatpush1.msra.mxu0 0.0
    %849 = vmatprep.subr.mxu0 0.0
    %850 = vmatpush1.msra.mxu0 0.0
    %851 = vmatprep.subr.mxu0 0.0
    %852 = vmatpush1.msra.mxu0 0.0
    %853 = vmatprep.subr.mxu0 0.0
    %854 = vmatpush1.msra.mxu0 0.0
    %855 = vmatprep.subr.mxu0 0.0
    %856 = vmatpush1.msra.mxu0 0.0
    %857 = vmatprep.subr.mxu0 0.0
    %858 = vmatpush1.msra.mxu0 0.0
    %859 = vmatprep.subr.mxu0 0.0
    %860 = vmatpush1.msra.mxu0 0.0
    %861 = vmatprep.subr.mxu0 0.0
    %862 = vmatpush1.msra.mxu0 0.0
    %863 = vmatprep.subr.mxu0 0.0
    %864 = vmatpush1.msra.mxu0 0.0
    %865 = vmatprep.subr.mxu0 0.0
    %866 = vmatpush1.msra.mxu0 0.0
    %867 = vmatprep.subr.mxu0 0.0
    %868 = vmatpush1.msra.mxu0 0.0
    %869 = vmatprep.subr.mxu0 0.0
    %870 = vmatpush1.msra.mxu0 0.0
    %871 = vmatprep.subr.mxu0 0.0
    %872 = vmatpush1.msra.mxu0 0.0
    %873 = vmatprep.subr.mxu0 0.0
    %874 = vmatpush1.msra.mxu0 0.0
    %875 = vmatprep.subr.mxu0 0.0
    %876 = vmatpush1.msra.mxu0 0.0
    %877 = vmatprep.subr.mxu0 0.0
    %878 = vmatpush1.msra.mxu0 0.0
    %879 = vmatprep.mubr.f32.mxu0 0.0
    %880 = vmatmul.mubr.f32.gmra.mrb[0].mxu0 %v743
    %v881 = vpop.f32.mrb[0].mxu0
    %v882 = vadd.f32 0.0, %v881
    %v883 = vpop.f32.mrb[0].mxu0
    %884 = vdwg.mxu0
    %885 = vmatprep.subr.mxu0 0.0
    %886 = vmatpush1.msra.mxu0 %v496
    %887 = vmatprep.subr.mxu0 0.0
    %888 = vmatpush1.msra.mxu0 %v497
    %889 = vmatprep.subr.mxu0 0.0
    %890 = vmatpush1.msra.mxu0 %v498
    %891 = vmatprep.subr.mxu0 0.0
    %892 = vmatpush1.msra.mxu0 %v499
    %893 = vmatprep.subr.mxu0 0.0
    %894 = vmatpush1.msra.mxu0 0.0
    %895 = vmatprep.subr.mxu0 0.0
    %896 = vmatpush1.msra.mxu0 0.0
    %897 = vmatprep.subr.mxu0 0.0
    %898 = vmatpush1.msra.mxu0 0.0
    %899 = vmatprep.subr.mxu0 0.0
    %900 = vmatpush1.msra.mxu0 0.0
    %901 = vmatprep.subr.mxu0 0.0
    %902 = vmatpush1.msra.mxu0 0.0
    %903 = vmatprep.subr.mxu0 0.0
    %904 = vmatpush1.msra.mxu0 0.0
    %905 = vmatprep.subr.mxu0 0.0
    %906 = vmatpush1.msra.mxu0 0.0
    %907 = vmatprep.subr.mxu0 0.0
    %908 = vmatpush1.msra.mxu0 0.0
    %909 = vmatprep.subr.mxu0 0.0
    %910 = vmatpush1.msra.mxu0 0.0
    %911 = vmatprep.subr.mxu0 0.0
    %912 = vmatpush1.msra.mxu0 0.0
    %913 = vmatprep.subr.mxu0 0.0
    %914 = vmatpush1.msra.mxu0 0.0
    %915 = vmatprep.subr.mxu0 0.0
    %916 = vmatpush1.msra.mxu0 0.0
    %917 = vmatprep.subr.mxu0 0.0
    %918 = vmatpush1.msra.mxu0 0.0
    %919 = vmatprep.subr.mxu0 0.0
    %920 = vmatpush1.msra.mxu0 0.0
    %921 = vmatprep.subr.mxu0 0.0
    %922 = vmatpush1.msra.mxu0 0.0
    %923 = vmatprep.subr.mxu0 0.0
    %924 = vmatpush1.msra.mxu0 0.0
    %925 = vmatprep.subr.mxu0 0.0
    %926 = vmatpush1.msra.mxu0 0.0
    %927 = vmatprep.subr.mxu0 0.0
    %928 = vmatpush1.msra.mxu0 0.0
    %929 = vmatprep.subr.mxu0 0.0
    %930 = vmatpush1.msra.mxu0 0.0
    %931 = vmatprep.subr.mxu0 0.0
    %932 = vmatpush1.msra.mxu0 0.0
    %933 = vmatprep.subr.mxu0 0.0
    %934 = vmatpush1.msra.mxu0 0.0
    %935 = vmatprep.subr.mxu0 0.0
    %936 = vmatpush1.msra.mxu0 0.0
    %937 = vmatprep.subr.mxu0 0.0
    %938 = vmatpush1.msra.mxu0 0.0
    %939 = vmatprep.subr.mxu0 0.0
    %940 = vmatpush1.msra.mxu0 0.0
    %941 = vmatprep.subr.mxu0 0.0
    %942 = vmatpush1.msra.mxu0 0.0
    %943 = vmatprep.subr.mxu0 0.0
    %944 = vmatpush1.msra.mxu0 0.0
    %945 = vmatprep.subr.mxu0 0.0
    %946 = vmatpush1.msra.mxu0 0.0
    %947 = vmatprep.subr.mxu0 0.0
    %948 = vmatpush1.msra.mxu0 0.0
    %949 = vmatprep.mubr.f32.mxu0 0.0
    %950 = vmatmul.mubr.f32.gmra.mrb[0].mxu0 %v743
    %v951 = vpop.f32.mrb[0].mxu0
    %v952 = vadd.f32 %v649, %v951
    %v953 = vpop.f32.mrb[0].mxu0
    %954 = vdwg.mxu0
    %v955 = vadd.f32 %v193, %v812
    %v956 = vxor.u32 %v955, 2147483648
    %v957 = vmul.f32 %v956, 1.442695
    %v958 = vpow.pop %v957
    %v959 = vadd.f32 %v958, 1.0
    %v960 = vrcp.pop %v959
    %v961 = vmul.f32 1.0, %v960
    %v962 = vadd.f32 %v318, %v882
    %v963 = vxor.u32 %v962, 2147483648
    %v964 = vmul.f32 %v963, 1.442695
    %v965 = vpow.pop %v964
    %v966 = vadd.f32 %v965, 1.0
    %v967 = vrcp.pop %v966
    %v968 = vmul.f32 1.0, %v967
    %v969 = vmul.f32 %v961, %v952
    %v970 = vadd.f32 %v443, %v969
    %v971 = vtanh.pop %v970
    %v972 = vsub.f32 1.0, %v968
    %v973 = vmul.f32 %v972, %v971
    %v974 = vmul.f32 %v968, %v741
    %v975 = vadd.f32 %v973, %v974
    %v977 = vsel %vm501, %v975, 0
    %979 = vmatprep.subr.mxu0 0.0
    %980 = vmatpush1.msra.mxu0 %v486
    %981 = vmatprep.subr.mxu0 0.0
    %982 = vmatpush1.msra.mxu0 %v487
    %983 = vmatprep.subr.mxu0 0.0
    %984 = vmatpush1.msra.mxu0 %v488
    %985 = vmatprep.subr.mxu0 0.0
    %986 = vmatpush1.msra.mxu0 %v489
    %987 = vmatprep.subr.mxu0 0.0
    %988 = vmatpush1.msra.mxu0 0.0
    %989 = vmatprep.subr.mxu0 0.0
    %990 = vmatpush1.msra.mxu0 0.0
    %991 = vmatprep.subr.mxu0 0.0
    %992 = vmatpush1.msra.mxu0 0.0
    %993 = vmatprep.subr.mxu0 0.0
    %994 = vmatpush1.msra.mxu0 0.0
    %995 = vmatprep.subr.mxu0 0.0
    %996 = vmatpush1.msra.mxu0 0.0
    %997 = vmatprep.subr.mxu0 0.0
    %998 = vmatpush1.msra.mxu0 0.0
    %999 = vmatprep.subr.mxu0 0.0
    %1000 = vmatpush1.msra.mxu0 0.0
    %1001 = vmatprep.subr.mxu0 0.0
    %1002 = vmatpush1.msra.mxu0 0.0
    %1003 = vmatprep.subr.mxu0 0.0
    %1004 = vmatpush1.msra.mxu0 0.0
    %1005 = vmatprep.subr.mxu0 0.0
    %1006 = vmatpush1.msra.mxu0 0.0
    %1007 = vmatprep.subr.mxu0 0.0
    %1008 = vmatpush1.msra.mxu0 0.0
    %1009 = vmatprep.subr.mxu0 0.0
    %1010 = vmatpush1.msra.mxu0 0.0
    %1011 = vmatprep.subr.mxu0 0.0
    %1012 = vmatpush1.msra.mxu0 0.0
    %1013 = vmatprep.subr.mxu0 0.0
    %1014 = vmatpush1.msra.mxu0 0.0
    %1015 = vmatprep.subr.mxu0 0.0
    %1016 = vmatpush1.msra.mxu0 0.0
    %1017 = vmatprep.subr.mxu0 0.0
    %1018 = vmatpush1.msra.mxu0 0.0
    %1019 = vmatprep.subr.mxu0 0.0
    %1020 = vmatpush1.msra.mxu0 0.0
    %1021 = vmatprep.subr.mxu0 0.0
    %1022 = vmatpush1.msra.mxu0 0.0
    %1023 = vmatprep.subr.mxu0 0.0
    %1024 = vmatpush1.msra.mxu0 0.0
    %1025 = vmatprep.subr.mxu0 0.0
    %1026 = vmatpush1.msra.mxu0 0.0
    %1027 = vmatprep.subr.mxu0 0.0
    %1028 = vmatpush1.msra.mxu0 0.0
    %1029 = vmatprep.subr.mxu0 0.0
    %1030 = vmatpush1.msra.mxu0 0.0
    %1031 = vmatprep.subr.mxu0 0.0
    %1032 = vmatpush1.msra.mxu0 0.0
    %1033 = vmatprep.subr.mxu0 0.0
    %1034 = vmatpush1.msra.mxu0 0.0
    %1035 = vmatprep.subr.mxu0 0.0
    %1036 = vmatpush1.msra.mxu0 0.0
    %1037 = vmatprep.subr.mxu0 0.0
    %1038 = vmatpush1.msra.mxu0 0.0
    %1039 = vmatprep.subr.mxu0 0.0
    %1040 = vmatpush1.msra.mxu0 0.0
    %1041 = vmatprep.subr.mxu0 0.0
    %1042 = vmatpush1.msra.mxu0 0.0
    %1043 = vmatprep.mubr.f32.mxu0 0.0
    %1044 = vmatmul.mubr.f32.gmra.mrb[0].mxu0 %v977
    %v1045 = vpop.f32.mrb[0].mxu0
    %v1046 = vadd.f32 0.0, %v1045
    %v1047 = vpop.f32.mrb[0].mxu0
    %1048 = vdwg.mxu0
    %1049 = vmatprep.subr.mxu0 0.0
    %1050 = vmatpush1.msra.mxu0 %v491
    %1051 = vmatprep.subr.mxu0 0.0
    %1052 = vmatpush1.msra.mxu0 %v492
    %1053 = vmatprep.subr.mxu0 0.0
    %1054 = vmatpush1.msra.mxu0 %v493
    %1055 = vmatprep.subr.mxu0 0.0
    %1056 = vmatpush1.msra.mxu0 %v494
    %1057 = vmatprep.subr.mxu0 0.0
    %1058 = vmatpush1.msra.mxu0 0.0
    %1059 = vmatprep.subr.mxu0 0.0
    %1060 = vmatpush1.msra.mxu0 0.0
    %1061 = vmatprep.subr.mxu0 0.0
    %1062 = vmatpush1.msra.mxu0 0.0
    %1063 = vmatprep.subr.mxu0 0.0
    %1064 = vmatpush1.msra.mxu0 0.0
    %1065 = vmatprep.subr.mxu0 0.0
    %1066 = vmatpush1.msra.mxu0 0.0
    %1067 = vmatprep.subr.mxu0 0.0
    %1068 = vmatpush1.msra.mxu0 0.0
    %1069 = vmatprep.subr.mxu0 0.0
    %1070 = vmatpush1.msra.mxu0 0.0
    %1071 = vmatprep.subr.mxu0 0.0
    %1072 = vmatpush1.msra.mxu0 0.0
    %1073 = vmatprep.subr.mxu0 0.0
    %1074 = vmatpush1.msra.mxu0 0.0
    %1075 = vmatprep.subr.mxu0 0.0
    %1076 = vmatpush1.msra.mxu0 0.0
    %1077 = vmatprep.subr.mxu0 0.0
    %1078 = vmatpush1.msra.mxu0 0.0
    %1079 = vmatprep.subr.mxu0 0.0
    %1080 = vmatpush1.msra.mxu0 0.0
    %1081 = vmatprep.subr.mxu0 0.0
    %1082 = vmatpush1.msra.mxu0 0.0
    %1083 = vmatprep.subr.mxu0 0.0
    %1084 = vmatpush1.msra.mxu0 0.0
    %1085 = vmatprep.subr.mxu0 0.0
    %1086 = vmatpush1.msra.mxu0 0.0
    %1087 = vmatprep.subr.mxu0 0.0
    %1088 = vmatpush1.msra.mxu0 0.0
    %1089 = vmatprep.subr.mxu0 0.0
    %1090 = vmatpush1.msra.mxu0 0.0
    %1091 = vmatprep.subr.mxu0 0.0
    %1092 = vmatpush1.msra.mxu0 0.0
    %1093 = vmatprep.subr.mxu0 0.0
    %1094 = vmatpush1.msra.mxu0 0.0
    %1095 = vmatprep.subr.mxu0 0.0
    %1096 = vmatpush1.msra.mxu0 0.0
    %1097 = vmatprep.subr.mxu0 0.0
    %1098 = vmatpush1.msra.mxu0 0.0
    %1099 = vmatprep.subr.mxu0 0.0
    %1100 = vmatpush1.msra.mxu0 0.0
    %1101 = vmatprep.subr.mxu0 0.0
    %1102 = vmatpush1.msra.mxu0 0.0
    %1103 = vmatprep.subr.mxu0 0.0
    %1104 = vmatpush1.msra.mxu0 0.0
    %1105 = vmatprep.subr.mxu0 0.0
    %1106 = vmatpush1.msra.mxu0 0.0
    %1107 = vmatprep.subr.mxu0 0.0
    %1108 = vmatpush1.msra.mxu0 0.0
    %1109 = vmatprep.subr.mxu0 0.0
    %1110 = vmatpush1.msra.mxu0 0.0
    %1111 = vmatprep.subr.mxu0 0.0
    %1112 = vmatpush1.msra.mxu0 0.0
    %1113 = vmatprep.mubr.f32.mxu0 0.0
    %1114 = vmatmul.mubr.f32.gmra.mrb[0].mxu0 %v977
    %v1115 = vpop.f32.mrb[0].mxu0
    %v1116 = vadd.f32 0.0, %v1115
    %v1117 = vpop.f32.mrb[0].mxu0
    %1118 = vdwg.mxu0
    %1119 = vmatprep.subr.mxu0 0.0
    %1120 = vmatpush1.msra.mxu0 %v496
    %1121 = vmatprep.subr.mxu0 0.0
    %1122 = vmatpush1.msra.mxu0 %v497
    %1123 = vmatprep.subr.mxu0 0.0
    %1124 = vmatpush1.msra.mxu0 %v498
    %1125 = vmatprep.subr.mxu0 0.0
    %1126 = vmatpush1.msra.mxu0 %v499
    %1127 = vmatprep.subr.mxu0 0.0
    %1128 = vmatpush1.msra.mxu0 0.0
    %1129 = vmatprep.subr.mxu0 0.0
    %1130 = vmatpush1.msra.mxu0 0.0
    %1131 = vmatprep.subr.mxu0 0.0
    %1132 = vmatpush1.msra.mxu0 0.0
    %1133 = vmatprep.subr.mxu0 0.0
    %1134 = vmatpush1.msra.mxu0 0.0
    %1135 = vmatprep.subr.mxu0 0.0
    %1136 = vmatpush1.msra.mxu0 0.0
    %1137 = vmatprep.subr.mxu0 0.0
    %1138 = vmatpush1.msra.mxu0 0.0
    %1139 = vmatprep.subr.mxu0 0.0
    %1140 = vmatpush1.msra.mxu0 0.0
    %1141 = vmatprep.subr.mxu0 0.0
    %1142 = vmatpush1.msra.mxu0 0.0
    %1143 = vmatprep.subr.mxu0 0.0
    %1144 = vmatpush1.msra.mxu0 0.0
    %1145 = vmatprep.subr.mxu0 0.0
    %1146 = vmatpush1.msra.mxu0 0.0
    %1147 = vmatprep.subr.mxu0 0.0
    %1148 = vmatpush1.msra.mxu0 0.0
    %1149 = vmatprep.subr.mxu0 0.0
    %1150 = vmatpush1.msra.mxu0 0.0
    %1151 = vmatprep.subr.mxu0 0.0
    %1152 = vmatpush1.msra.mxu0 0.0
    %1153 = vmatprep.subr.mxu0 0.0
    %1154 = vmatpush1.msra.mxu0 0.0
    %1155 = vmatprep.subr.mxu0 0.0
    %1156 = vmatpush1.msra.mxu0 0.0
    %1157 = vmatprep.subr.mxu0 0.0
    %1158 = vmatpush1.msra.mxu0 0.0
    %1159 = vmatprep.subr.mxu0 0.0
    %1160 = vmatpush1.msra.mxu0 0.0
    %1161 = vmatprep.subr.mxu0 0.0
    %1162 = vmatpush1.msra.mxu0 0.0
    %1163 = vmatprep.subr.mxu0 0.0
    %1164 = vmatpush1.msra.mxu0 0.0
    %1165 = vmatprep.subr.mxu0 0.0
    %1166 = vmatpush1.msra.mxu0 0.0
    %1167 = vmatprep.subr.mxu0 0.0
    %1168 = vmatpush1.msra.mxu0 0.0
    %1169 = vmatprep.subr.mxu0 0.0
    %1170 = vmatpush1.msra.mxu0 0.0
    %1171 = vmatprep.subr.mxu0 0.0
    %1172 = vmatpush1.msra.mxu0 0.0
    %1173 = vmatprep.subr.mxu0 0.0
    %1174 = vmatpush1.msra.mxu0 0.0
    %1175 = vmatprep.subr.mxu0 0.0
    %1176 = vmatpush1.msra.mxu0 0.0
    %1177 = vmatprep.subr.mxu0 0.0
    %1178 = vmatpush1.msra.mxu0 0.0
    %1179 = vmatprep.subr.mxu0 0.0
    %1180 = vmatpush1.msra.mxu0 0.0
    %1181 = vmatprep.subr.mxu0 0.0
    %1182 = vmatpush1.msra.mxu0 0.0
    %1183 = vmatprep.mubr.f32.mxu0 0.0
    %1184 = vmatmul.mubr.f32.gmra.mrb[0].mxu0 %v977
    %v1185 = vpop.f32.mrb[0].mxu0
    %v1186 = vadd.f32 %v649, %v1185
    %v1187 = vpop.f32.mrb[0].mxu0
    %1188 = vdwg.mxu0
    %v1189 = vadd.f32 %v198, %v1046
    %v1190 = vxor.u32 %v1189, 2147483648
    %v1191 = vmul.f32 %v1190, 1.442695
    %v1192 = vpow.pop %v1191
    %v1193 = vadd.f32 %v1192, 1.0
    %v1194 = vrcp.pop %v1193
    %v1195 = vmul.f32 1.0, %v1194
    %v1196 = vadd.f32 %v323, %v1116
    %v1197 = vxor.u32 %v1196, 2147483648
    %v1198 = vmul.f32 %v1197, 1.442695
    %v1199 = vpow.pop %v1198
    %v1200 = vadd.f32 %v1199, 1.0
    %v1201 = vrcp.pop %v1200
    %v1202 = vmul.f32 1.0, %v1201
    %v1203 = vmul.f32 %v1195, %v1186
    %v1204 = vadd.f32 %v448, %v1203
    %v1205 = vtanh.pop %v1204
    %v1206 = vsub.f32 1.0, %v1202
    %v1207 = vmul.f32 %v1206, %v1205
    %v1208 = vmul.f32 %v1202, %v975
    %v1209 = vadd.f32 %v1207, %v1208
    %v1211 = vsel %vm501, %v1209, 0
    %1213 = vmatprep.subr.mxu0 0.0
    %1214 = vmatpush1.msra.mxu0 %v486
    %1215 = vmatprep.subr.mxu0 0.0
    %1216 = vmatpush1.msra.mxu0 %v487
    %1217 = vmatprep.subr.mxu0 0.0
    %1218 = vmatpush1.msra.mxu0 %v488
    %1219 = vmatprep.subr.mxu0 0.0
    %1220 = vmatpush1.msra.mxu0 %v489
    %1221 = vmatprep.subr.mxu0 0.0
    %1222 = vmatpush1.msra.mxu0 0.0
    %1223 = vmatprep.subr.mxu0 0.0
    %1224 = vmatpush1.msra.mxu0 0.0
    %1225 = vmatprep.subr.mxu0 0.0
    %1226 = vmatpush1.msra.mxu0 0.0
    %1227 = vmatprep.subr.mxu0 0.0
    %1228 = vmatpush1.msra.mxu0 0.0
    %1229 = vmatprep.subr.mxu0 0.0
    %1230 = vmatpush1.msra.mxu0 0.0
    %1231 = vmatprep.subr.mxu0 0.0
    %1232 = vmatpush1.msra.mxu0 0.0
    %1233 = vmatprep.subr.mxu0 0.0
    %1234 = vmatpush1.msra.mxu0 0.0
    %1235 = vmatprep.subr.mxu0 0.0
    %1236 = vmatpush1.msra.mxu0 0.0
    %1237 = vmatprep.subr.mxu0 0.0
    %1238 = vmatpush1.msra.mxu0 0.0
    %1239 = vmatprep.subr.mxu0 0.0
    %1240 = vmatpush1.msra.mxu0 0.0
    %1241 = vmatprep.subr.mxu0 0.0
    %1242 = vmatpush1.msra.mxu0 0.0
    %1243 = vmatprep.subr.mxu0 0.0
    %1244 = vmatpush1.msra.mxu0 0.0
    %1245 = vmatprep.subr.mxu0 0.0
    %1246 = vmatpush1.msra.mxu0 0.0
    %1247 = vmatprep.subr.mxu0 0.0
    %1248 = vmatpush1.msra.mxu0 0.0
    %1249 = vmatprep.subr.mxu0 0.0
    %1250 = vmatpush1.msra.mxu0 0.0
    %1251 = vmatprep.subr.mxu0 0.0
    %1252 = vmatpush1.msra.mxu0 0.0
    %1253 = vmatprep.subr.mxu0 0.0
    %1254 = vmatpush1.msra.mxu0 0.0
    %1255 = vmatprep.subr.mxu0 0.0
    %1256 = vmatpush1.msra.mxu0 0.0
    %1257 = vmatprep.subr.mxu0 0.0
    %1258 = vmatpush1.msra.mxu0 0.0
    %1259 = vmatprep.subr.mxu0 0.0
    %1260 = vmatpush1.msra.mxu0 0.0
    %1261 = vmatprep.subr.mxu0 0.0
    %1262 = vmatpush1.msra.mxu0 0.0
    %1263 = vmatprep.subr.mxu0 0.0
    %1264 = vmatpush1.msra.mxu0 0.0
    %1265 = vmatprep.subr.mxu0 0.0
    %1266 = vmatpush1.msra.mxu0 0.0
    %1267 = vmatprep.subr.mxu0 0.0
    %1268 = vmatpush1.msra.mxu0 0.0
    %1269 = vmatprep.subr.mxu0 0.0
    %1270 = vmatpush1.msra.mxu0 0.0
    %1271 = vmatprep.subr.mxu0 0.0
    %1272 = vmatpush1.msra.mxu0 0.0
    %1273 = vmatprep.subr.mxu0 0.0
    %1274 = vmatpush1.msra.mxu0 0.0
    %1275 = vmatprep.subr.mxu0 0.0
    %1276 = vmatpush1.msra.mxu0 0.0
    %1277 = vmatprep.mubr.f32.mxu0 0.0
    %1278 = vmatmul.mubr.f32.gmra.mrb[0].mxu0 %v1211
    %v1279 = vpop.f32.mrb[0].mxu0
    %v1280 = vadd.f32 0.0, %v1279
    %v1281 = vpop.f32.mrb[0].mxu0
    %1282 = vdwg.mxu0
    %1283 = vmatprep.subr.mxu0 0.0
    %1284 = vmatpush1.msra.mxu0 %v491
    %1285 = vmatprep.subr.mxu0 0.0
    %1286 = vmatpush1.msra.mxu0 %v492
    %1287 = vmatprep.subr.mxu0 0.0
    %1288 = vmatpush1.msra.mxu0 %v493
    %1289 = vmatprep.subr.mxu0 0.0
    %1290 = vmatpush1.msra.mxu0 %v494
    %1291 = vmatprep.subr.mxu0 0.0
    %1292 = vmatpush1.msra.mxu0 0.0
    %1293 = vmatprep.subr.mxu0 0.0
    %1294 = vmatpush1.msra.mxu0 0.0
    %1295 = vmatprep.subr.mxu0 0.0
    %1296 = vmatpush1.msra.mxu0 0.0
    %1297 = vmatprep.subr.mxu0 0.0
    %1298 = vmatpush1.msra.mxu0 0.0
    %1299 = vmatprep.subr.mxu0 0.0
    %1300 = vmatpush1.msra.mxu0 0.0
    %1301 = vmatprep.subr.mxu0 0.0
    %1302 = vmatpush1.msra.mxu0 0.0
    %1303 = vmatprep.subr.mxu0 0.0
    %1304 = vmatpush1.msra.mxu0 0.0
    %1305 = vmatprep.subr.mxu0 0.0
    %1306 = vmatpush1.msra.mxu0 0.0
    %1307 = vmatprep.subr.mxu0 0.0
    %1308 = vmatpush1.msra.mxu0 0.0
    %1309 = vmatprep.subr.mxu0 0.0
    %1310 = vmatpush1.msra.mxu0 0.0
    %1311 = vmatprep.subr.mxu0 0.0
    %1312 = vmatpush1.msra.mxu0 0.0
    %1313 = vmatprep.subr.mxu0 0.0
    %1314 = vmatpush1.msra.mxu0 0.0
    %1315 = vmatprep.subr.mxu0 0.0
    %1316 = vmatpush1.msra.mxu0 0.0
    %1317 = vmatprep.subr.mxu0 0.0
    %1318 = vmatpush1.msra.mxu0 0.0
    %1319 = vmatprep.subr.mxu0 0.0
    %1320 = vmatpush1.msra.mxu0 0.0
    %1321 = vmatprep.subr.mxu0 0.0
    %1322 = vmatpush1.msra.mxu0 0.0
    %1323 = vmatprep.subr.mxu0 0.0
    %1324 = vmatpush1.msra.mxu0 0.0
    %1325 = vmatprep.subr.mxu0 0.0
    %1326 = vmatpush1.msra.mxu0 0.0
    %1327 = vmatprep.subr.mxu0 0.0
    %1328 = vmatpush1.msra.mxu0 0.0
    %1329 = vmatprep.subr.mxu0 0.0
    %1330 = vmatpush1.msra.mxu0 0.0
    %1331 = vmatprep.subr.mxu0 0.0
    %1332 = vmatpush1.msra.mxu0 0.0
    %1333 = vmatprep.subr.mxu0 0.0
    %1334 = vmatpush1.msra.mxu0 0.0
    %1335 = vmatprep.subr.mxu0 0.0
    %1336 = vmatpush1.msra.mxu0 0.0
    %1337 = vmatprep.subr.mxu0 0.0
    %1338 = vmatpush1.msra.mxu0 0.0
    %1339 = vmatprep.subr.mxu0 0.0
    %1340 = vmatpush1.msra.mxu0 0.0
    %1341 = vmatprep.subr.mxu0 0.0
    %1342 = vmatpush1.msra.mxu0 0.0
    %1343 = vmatprep.subr.mxu0 0.0
    %1344 = vmatpush1.msra.mxu0 0.0
    %1345 = vmatprep.subr.mxu0 0.0
    %1346 = vmatpush1.msra.mxu0 0.0
    %1347 = vmatprep.mubr.f32.mxu0 0.0
    %1348 = vmatmul.mubr.f32.gmra.mrb[0].mxu0 %v1211
    %v1349 = vpop.f32.mrb[0].mxu0
    %v1350 = vadd.f32 0.0, %v1349
    %v1351 = vpop.f32.mrb[0].mxu0
    %1352 = vdwg.mxu0
    %1353 = vmatprep.subr.mxu0 0.0
    %1354 = vmatpush1.msra.mxu0 %v496
    %1355 = vmatprep.subr.mxu0 0.0
    %1356 = vmatpush1.msra.mxu0 %v497
    %1357 = vmatprep.subr.mxu0 0.0
    %1358 = vmatpush1.msra.mxu0 %v498
    %1359 = vmatprep.subr.mxu0 0.0
    %1360 = vmatpush1.msra.mxu0 %v499
    %1361 = vmatprep.subr.mxu0 0.0
    %1362 = vmatpush1.msra.mxu0 0.0
    %1363 = vmatprep.subr.mxu0 0.0
    %1364 = vmatpush1.msra.mxu0 0.0
    %1365 = vmatprep.subr.mxu0 0.0
    %1366 = vmatpush1.msra.mxu0 0.0
    %1367 = vmatprep.subr.mxu0 0.0
    %1368 = vmatpush1.msra.mxu0 0.0
    %1369 = vmatprep.subr.mxu0 0.0
    %1370 = vmatpush1.msra.mxu0 0.0
    %1371 = vmatprep.subr.mxu0 0.0
    %1372 = vmatpush1.msra.mxu0 0.0
    %1373 = vmatprep.subr.mxu0 0.0
    %1374 = vmatpush1.msra.mxu0 0.0
    %1375 = vmatprep.subr.mxu0 0.0
    %1376 = vmatpush1.msra.mxu0 0.0
    %1377 = vmatprep.subr.mxu0 0.0
    %1378 = vmatpush1.msra.mxu0 0.0
    %1379 = vmatprep.subr.mxu0 0.0
    %1380 = vmatpush1.msra.mxu0 0.0
    %1381 = vmatprep.subr.mxu0 0.0
    %1382 = vmatpush1.msra.mxu0 0.0
    %1383 = vmatprep.subr.mxu0 0.0
    %1384 = vmatpush1.msra.mxu0 0.0
    %1385 = vmatprep.subr.mxu0 0.0
    %1386 = vmatpush1.msra.mxu0 0.0
    %1387 = vmatprep.subr.mxu0 0.0
    %1388 = vmatpush1.msra.mxu0 0.0
    %1389 = vmatprep.subr.mxu0 0.0
    %1390 = vmatpush1.msra.mxu0 0.0
    %1391 = vmatprep.subr.mxu0 0.0
    %1392 = vmatpush1.msra.mxu0 0.0
    %1393 = vmatprep.subr.mxu0 0.0
    %1394 = vmatpush1.msra.mxu0 0.0
    %1395 = vmatprep.subr.mxu0 0.0
    %1396 = vmatpush1.msra.mxu0 0.0
    %1397 = vmatprep.subr.mxu0 0.0
    %1398 = vmatpush1.msra.mxu0 0.0
    %1399 = vmatprep.subr.mxu0 0.0
    %1400 = vmatpush1.msra.mxu0 0.0
    %1401 = vmatprep.subr.mxu0 0.0
    %1402 = vmatpush1.msra.mxu0 0.0
    %1403 = vmatprep.subr.mxu0 0.0
    %1404 = vmatpush1.msra.mxu0 0.0
    %1405 = vmatprep.subr.mxu0 0.0
    %1406 = vmatpush1.msra.mxu0 0.0
    %1407 = vmatprep.subr.mxu0 0.0
    %1408 = vmatpush1.msra.mxu0 0.0
    %1409 = vmatprep.subr.mxu0 0.0
    %1410 = vmatpush1.msra.mxu0 0.0
    %1411 = vmatprep.subr.mxu0 0.0
    %1412 = vmatpush1.msra.mxu0 0.0
    %1413 = vmatprep.subr.mxu0 0.0
    %1414 = vmatpush1.msra.mxu0 0.0
    %1415 = vmatprep.subr.mxu0 0.0
    %1416 = vmatpush1.msra.mxu0 0.0
    %1417 = vmatprep.mubr.f32.mxu0 0.0
    %1418 = vmatmul.mubr.f32.gmra.mrb[0].mxu0 %v1211
    %v1419 = vpop.f32.mrb[0].mxu0
    %v1420 = vadd.f32 %v649, %v1419
    %v1421 = vpop.f32.mrb[0].mxu0
    %1422 = vdwg.mxu0
    %v1423 = vadd.f32 %v203, %v1280
    %v1424 = vxor.u32 %v1423, 2147483648
    %v1425 = vmul.f32 %v1424, 1.442695
    %v1426 = vpow.pop %v1425
    %v1427 = vadd.f32 %v1426, 1.0
    %v1428 = vrcp.pop %v1427
    %v1429 = vmul.f32 1.0, %v1428
    %v1430 = vadd.f32 %v328, %v1350
    %v1431 = vxor.u32 %v1430, 2147483648
    %v1432 = vmul.f32 %v1431, 1.442695
    %v1433 = vpow.pop %v1432
    %v1434 = vadd.f32 %v1433, 1.0
    %v1435 = vrcp.pop %v1434
    %v1436 = vmul.f32 1.0, %v1435
    %v1437 = vmul.f32 %v1429, %v1420
    %v1438 = vadd.f32 %v453, %v1437
    %v1439 = vtanh.pop %v1438
    %v1440 = vsub.f32 1.0, %v1436
    %v1441 = vmul.f32 %v1440, %v1439
    %v1442 = vmul.f32 %v1436, %v1209
    %v1443 = vadd.f32 %v1441, %v1442
    %v1445 = vsel %vm501, %v1443, 0
    %1447 = vmatprep.subr.mxu0 0.0
    %1448 = vmatpush1.msra.mxu0 %v486
    %1449 = vmatprep.subr.mxu0 0.0
    %1450 = vmatpush1.msra.mxu0 %v487
    %1451 = vmatprep.subr.mxu0 0.0
    %1452 = vmatpush1.msra.mxu0 %v488
    %1453 = vmatprep.subr.mxu0 0.0
    %1454 = vmatpush1.msra.mxu0 %v489
    %1455 = vmatprep.subr.mxu0 0.0
    %1456 = vmatpush1.msra.mxu0 0.0
    %1457 = vmatprep.subr.mxu0 0.0
    %1458 = vmatpush1.msra.mxu0 0.0
    %1459 = vmatprep.subr.mxu0 0.0
    %1460 = vmatpush1.msra.mxu0 0.0
    %1461 = vmatprep.subr.mxu0 0.0
    %1462 = vmatpush1.msra.mxu0 0.0
    %1463 = vmatprep.subr.mxu0 0.0
    %1464 = vmatpush1.msra.mxu0 0.0
    %1465 = vmatprep.subr.mxu0 0.0
    %1466 = vmatpush1.msra.mxu0 0.0
    %1467 = vmatprep.subr.mxu0 0.0
    %1468 = vmatpush1.msra.mxu0 0.0
    %1469 = vmatprep.subr.mxu0 0.0
    %1470 = vmatpush1.msra.mxu0 0.0
    %1471 = vmatprep.subr.mxu0 0.0
    %1472 = vmatpush1.msra.mxu0 0.0
    %1473 = vmatprep.subr.mxu0 0.0
    %1474 = vmatpush1.msra.mxu0 0.0
    %1475 = vmatprep.subr.mxu0 0.0
    %1476 = vmatpush1.msra.mxu0 0.0
    %1477 = vmatprep.subr.mxu0 0.0
    %1478 = vmatpush1.msra.mxu0 0.0
    %1479 = vmatprep.subr.mxu0 0.0
    %1480 = vmatpush1.msra.mxu0 0.0
    %1481 = vmatprep.subr.mxu0 0.0
    %1482 = vmatpush1.msra.mxu0 0.0
    %1483 = vmatprep.subr.mxu0 0.0
    %1484 = vmatpush1.msra.mxu0 0.0
    %1485 = vmatprep.subr.mxu0 0.0
    %1486 = vmatpush1.msra.mxu0 0.0
    %1487 = vmatprep.subr.mxu0 0.0
    %1488 = vmatpush1.msra.mxu0 0.0
    %1489 = vmatprep.subr.mxu0 0.0
    %1490 = vmatpush1.msra.mxu0 0.0
    %1491 = vmatprep.subr.mxu0 0.0
    %1492 = vmatpush1.msra.mxu0 0.0
    %1493 = vmatprep.subr.mxu0 0.0
    %1494 = vmatpush1.msra.mxu0 0.0
    %1495 = vmatprep.subr.mxu0 0.0
    %1496 = vmatpush1.msra.mxu0 0.0
    %1497 = vmatprep.subr.mxu0 0.0
    %1498 = vmatpush1.msra.mxu0 0.0
    %1499 = vmatprep.subr.mxu0 0.0
    %1500 = vmatpush1.msra.mxu0 0.0
    %1501 = vmatprep.subr.mxu0 0.0
    %1502 = vmatpush1.msra.mxu0 0.0
    %1503 = vmatprep.subr.mxu0 0.0
    %1504 = vmatpush1.msra.mxu0 0.0
    %1505 = vmatprep.subr.mxu0 0.0
    %1506 = vmatpush1.msra.mxu0 0.0
    %1507 = vmatprep.subr.mxu0 0.0
    %1508 = vmatpush1.msra.mxu0 0.0
    %1509 = vmatprep.subr.mxu0 0.0
    %1510 = vmatpush1.msra.mxu0 0.0
    %1511 = vmatprep.mubr.f32.mxu0 0.0
    %1512 = vmatmul.mubr.f32.gmra.mrb[0].mxu0 %v1445
    %v1513 = vpop.f32.mrb[0].mxu0
    %v1514 = vadd.f32 0.0, %v1513
    %v1515 = vpop.f32.mrb[0].mxu0
    %1516 = vdwg.mxu0
    %1517 = vmatprep.subr.mxu0 0.0
    %1518 = vmatpush1.msra.mxu0 %v491
    %1519 = vmatprep.subr.mxu0 0.0
    %1520 = vmatpush1.msra.mxu0 %v492
    %1521 = vmatprep.subr.mxu0 0.0
    %1522 = vmatpush1.msra.mxu0 %v493
    %1523 = vmatprep.subr.mxu0 0.0
    %1524 = vmatpush1.msra.mxu0 %v494
    %1525 = vmatprep.subr.mxu0 0.0
    %1526 = vmatpush1.msra.mxu0 0.0
    %1527 = vmatprep.subr.mxu0 0.0
    %1528 = vmatpush1.msra.mxu0 0.0
    %1529 = vmatprep.subr.mxu0 0.0
    %1530 = vmatpush1.msra.mxu0 0.0
    %1531 = vmatprep.subr.mxu0 0.0
    %1532 = vmatpush1.msra.mxu0 0.0
    %1533 = vmatprep.subr.mxu0 0.0
    %1534 = vmatpush1.msra.mxu0 0.0
    %1535 = vmatprep.subr.mxu0 0.0
    %1536 = vmatpush1.msra.mxu0 0.0
    %1537 = vmatprep.subr.mxu0 0.0
    %1538 = vmatpush1.msra.mxu0 0.0
    %1539 = vmatprep.subr.mxu0 0.0
    %1540 = vmatpush1.msra.mxu0 0.0
    %1541 = vmatprep.subr.mxu0 0.0
    %1542 = vmatpush1.msra.mxu0 0.0
    %1543 = vmatprep.subr.mxu0 0.0
    %1544 = vmatpush1.msra.mxu0 0.0
    %1545 = vmatprep.subr.mxu0 0.0
    %1546 = vmatpush1.msra.mxu0 0.0
    %1547 = vmatprep.subr.mxu0 0.0
    %1548 = vmatpush1.msra.mxu0 0.0
    %1549 = vmatprep.subr.mxu0 0.0
    %1550 = vmatpush1.msra.mxu0 0.0
    %1551 = vmatprep.subr.mxu0 0.0
    %1552 = vmatpush1.msra.mxu0 0.0
    %1553 = vmatprep.subr.mxu0 0.0
    %1554 = vmatpush1.msra.mxu0 0.0
    %1555 = vmatprep.subr.mxu0 0.0
    %1556 = vmatpush1.msra.mxu0 0.0
    %1557 = vmatprep.subr.mxu0 0.0
    %1558 = vmatpush1.msra.mxu0 0.0
    %1559 = vmatprep.subr.mxu0 0.0
    %1560 = vmatpush1.msra.mxu0 0.0
    %1561 = vmatprep.subr.mxu0 0.0
    %1562 = vmatpush1.msra.mxu0 0.0
    %1563 = vmatprep.subr.mxu0 0.0
    %1564 = vmatpush1.msra.mxu0 0.0
    %1565 = vmatprep.subr.mxu0 0.0
    %1566 = vmatpush1.msra.mxu0 0.0
    %1567 = vmatprep.subr.mxu0 0.0
    %1568 = vmatpush1.msra.mxu0 0.0
    %1569 = vmatprep.subr.mxu0 0.0
    %1570 = vmatpush1.msra.mxu0 0.0
    %1571 = vmatprep.subr.mxu0 0.0
    %1572 = vmatpush1.msra.mxu0 0.0
    %1573 = vmatprep.subr.mxu0 0.0
    %1574 = vmatpush1.msra.mxu0 0.0
    %1575 = vmatprep.subr.mxu0 0.0
    %1576 = vmatpush1.msra.mxu0 0.0
    %1577 = vmatprep.subr.mxu0 0.0
    %1578 = vmatpush1.msra.mxu0 0.0
    %1579 = vmatprep.subr.mxu0 0.0
    %1580 = vmatpush1.msra.mxu0 0.0
    %1581 = vmatprep.mubr.f32.mxu0 0.0
    %1582 = vmatmul.mubr.f32.gmra.mrb[0].mxu0 %v1445
    %v1583 = vpop.f32.mrb[0].mxu0
    %v1584 = vadd.f32 0.0, %v1583
    %v1585 = vpop.f32.mrb[0].mxu0
    %1586 = vdwg.mxu0
    %1587 = vmatprep.subr.mxu0 0.0
    %1588 = vmatpush1.msra.mxu0 %v496
    %1589 = vmatprep.subr.mxu0 0.0
    %1590 = vmatpush1.msra.mxu0 %v497
    %1591 = vmatprep.subr.mxu0 0.0
    %1592 = vmatpush1.msra.mxu0 %v498
    %1593 = vmatprep.subr.mxu0 0.0
    %1594 = vmatpush1.msra.mxu0 %v499
    %1595 = vmatprep.subr.mxu0 0.0
    %1596 = vmatpush1.msra.mxu0 0.0
    %1597 = vmatprep.subr.mxu0 0.0
    %1598 = vmatpush1.msra.mxu0 0.0
    %1599 = vmatprep.subr.mxu0 0.0
    %1600 = vmatpush1.msra.mxu0 0.0
    %1601 = vmatprep.subr.mxu0 0.0
    %1602 = vmatpush1.msra.mxu0 0.0
    %1603 = vmatprep.subr.mxu0 0.0
    %1604 = vmatpush1.msra.mxu0 0.0
    %1605 = vmatprep.subr.mxu0 0.0
    %1606 = vmatpush1.msra.mxu0 0.0
    %1607 = vmatprep.subr.mxu0 0.0
    %1608 = vmatpush1.msra.mxu0 0.0
    %1609 = vmatprep.subr.mxu0 0.0
    %1610 = vmatpush1.msra.mxu0 0.0
    %1611 = vmatprep.subr.mxu0 0.0
    %1612 = vmatpush1.msra.mxu0 0.0
    %1613 = vmatprep.subr.mxu0 0.0
    %1614 = vmatpush1.msra.mxu0 0.0
    %1615 = vmatprep.subr.mxu0 0.0
    %1616 = vmatpush1.msra.mxu0 0.0
    %1617 = vmatprep.subr.mxu0 0.0
    %1618 = vmatpush1.msra.mxu0 0.0
    %1619 = vmatprep.subr.mxu0 0.0
    %1620 = vmatpush1.msra.mxu0 0.0
    %1621 = vmatprep.subr.mxu0 0.0
    %1622 = vmatpush1.msra.mxu0 0.0
    %1623 = vmatprep.subr.mxu0 0.0
    %1624 = vmatpush1.msra.mxu0 0.0
    %1625 = vmatprep.subr.mxu0 0.0
    %1626 = vmatpush1.msra.mxu0 0.0
    %1627 = vmatprep.subr.mxu0 0.0
    %1628 = vmatpush1.msra.mxu0 0.0
    %1629 = vmatprep.subr.mxu0 0.0
    %1630 = vmatpush1.msra.mxu0 0.0
    %1631 = vmatprep.subr.mxu0 0.0
    %1632 = vmatpush1.msra.mxu0 0.0
    %1633 = vmatprep.subr.mxu0 0.0
    %1634 = vmatpush1.msra.mxu0 0.0
    %1635 = vmatprep.subr.mxu0 0.0
    %1636 = vmatpush1.msra.mxu0 0.0
    %1637 = vmatprep.subr.mxu0 0.0
    %1638 = vmatpush1.msra.mxu0 0.0
    %1639 = vmatprep.subr.mxu0 0.0
    %1640 = vmatpush1.msra.mxu0 0.0
    %1641 = vmatprep.subr.mxu0 0.0
    %1642 = vmatpush1.msra.mxu0 0.0
    %1643 = vmatprep.subr.mxu0 0.0
    %1644 = vmatpush1.msra.mxu0 0.0
    %1645 = vmatprep.subr.mxu0 0.0
    %1646 = vmatpush1.msra.mxu0 0.0
    %1647 = vmatprep.subr.mxu0 0.0
    %1648 = vmatpush1.msra.mxu0 0.0
    %1649 = vmatprep.subr.mxu0 0.0
    %1650 = vmatpush1.msra.mxu0 0.0
    %1651 = vmatprep.mubr.f32.mxu0 0.0
    %1652 = vmatmul.mubr.f32.gmra.mrb[0].mxu0 %v1445
    %v1653 = vpop.f32.mrb[0].mxu0
    %v1654 = vadd.f32 %v649, %v1653
    %v1655 = vpop.f32.mrb[0].mxu0
    %1656 = vdwg.mxu0
    %v1657 = vadd.f32 %v208, %v1514
    %v1658 = vxor.u32 %v1657, 2147483648
    %v1659 = vmul.f32 %v1658, 1.442695
    %v1660 = vpow.pop %v1659
    %v1661 = vadd.f32 %v1660, 1.0
    %v1662 = vrcp.pop %v1661
    %v1663 = vmul.f32 1.0, %v1662
    %v1664 = vadd.f32 %v333, %v1584
    %v1665 = vxor.u32 %v1664, 2147483648
    %v1666 = vmul.f32 %v1665, 1.442695
    %v1667 = vpow.pop %v1666
    %v1668 = vadd.f32 %v1667, 1.0
    %v1669 = vrcp.pop %v1668
    %v1670 = vmul.f32 1.0, %v1669
    %v1671 = vmul.f32 %v1663, %v1654
    %v1672 = vadd.f32 %v458, %v1671
    %v1673 = vtanh.pop %v1672
    %v1674 = vsub.f32 1.0, %v1670
    %v1675 = vmul.f32 %v1674, %v1673
    %v1676 = vmul.f32 %v1670, %v1443
    %v1677 = vadd.f32 %v1675, %v1676
    %v1679 = vsel %vm501, %v1677, 0
    %1681 = vmatprep.subr.mxu0 0.0
    %1682 = vmatpush1.msra.mxu0 %v486
    %1683 = vmatprep.subr.mxu0 0.0
    %1684 = vmatpush1.msra.mxu0 %v487
    %1685 = vmatprep.subr.mxu0 0.0
    %1686 = vmatpush1.msra.mxu0 %v488
    %1687 = vmatprep.subr.mxu0 0.0
    %1688 = vmatpush1.msra.mxu0 %v489
    %1689 = vmatprep.subr.mxu0 0.0
    %1690 = vmatpush1.msra.mxu0 0.0
    %1691 = vmatprep.subr.mxu0 0.0
    %1692 = vmatpush1.msra.mxu0 0.0
    %1693 = vmatprep.subr.mxu0 0.0
    %1694 = vmatpush1.msra.mxu0 0.0
    %1695 = vmatprep.subr.mxu0 0.0
    %1696 = vmatpush1.msra.mxu0 0.0
    %1697 = vmatprep.subr.mxu0 0.0
    %1698 = vmatpush1.msra.mxu0 0.0
    %1699 = vmatprep.subr.mxu0 0.0
    %1700 = vmatpush1.msra.mxu0 0.0
    %1701 = vmatprep.subr.mxu0 0.0
    %1702 = vmatpush1.msra.mxu0 0.0
    %1703 = vmatprep.subr.mxu0 0.0
    %1704 = vmatpush1.msra.mxu0 0.0
    %1705 = vmatprep.subr.mxu0 0.0
    %1706 = vmatpush1.msra.mxu0 0.0
    %1707 = vmatprep.subr.mxu0 0.0
    %1708 = vmatpush1.msra.mxu0 0.0
    %1709 = vmatprep.subr.mxu0 0.0
    %1710 = vmatpush1.msra.mxu0 0.0
    %1711 = vmatprep.subr.mxu0 0.0
    %1712 = vmatpush1.msra.mxu0 0.0
    %1713 = vmatprep.subr.mxu0 0.0
    %1714 = vmatpush1.msra.mxu0 0.0
    %1715 = vmatprep.subr.mxu0 0.0
    %1716 = vmatpush1.msra.mxu0 0.0
    %1717 = vmatprep.subr.mxu0 0.0
    %1718 = vmatpush1.msra.mxu0 0.0
    %1719 = vmatprep.subr.mxu0 0.0
    %1720 = vmatpush1.msra.mxu0 0.0
    %1721 = vmatprep.subr.mxu0 0.0
    %1722 = vmatpush1.msra.mxu0 0.0
    %1723 = vmatprep.subr.mxu0 0.0
    %1724 = vmatpush1.msra.mxu0 0.0
    %1725 = vmatprep.subr.mxu0 0.0
    %1726 = vmatpush1.msra.mxu0 0.0
    %1727 = vmatprep.subr.mxu0 0.0
    %1728 = vmatpush1.msra.mxu0 0.0
    %1729 = vmatprep.subr.mxu0 0.0
    %1730 = vmatpush1.msra.mxu0 0.0
    %1731 = vmatprep.subr.mxu0 0.0
    %1732 = vmatpush1.msra.mxu0 0.0
    %1733 = vmatprep.subr.mxu0 0.0
    %1734 = vmatpush1.msra.mxu0 0.0
    %1735 = vmatprep.subr.mxu0 0.0
    %1736 = vmatpush1.msra.mxu0 0.0
    %1737 = vmatprep.subr.mxu0 0.0
    %1738 = vmatpush1.msra.mxu0 0.0
    %1739 = vmatprep.subr.mxu0 0.0
    %1740 = vmatpush1.msra.mxu0 0.0
    %1741 = vmatprep.subr.mxu0 0.0
    %1742 = vmatpush1.msra.mxu0 0.0
    %1743 = vmatprep.subr.mxu0 0.0
    %1744 = vmatpush1.msra.mxu0 0.0
    %1745 = vmatprep.mubr.f32.mxu0 0.0
    %1746 = vmatmul.mubr.f32.gmra.mrb[0].mxu0 %v1679
    %v1747 = vpop.f32.mrb[0].mxu0
    %v1748 = vadd.f32 0.0, %v1747
    %v1749 = vpop.f32.mrb[0].mxu0
    %1750 = vdwg.mxu0
    %1751 = vmatprep.subr.mxu0 0.0
    %1752 = vmatpush1.msra.mxu0 %v491
    %1753 = vmatprep.subr.mxu0 0.0
    %1754 = vmatpush1.msra.mxu0 %v492
    %1755 = vmatprep.subr.mxu0 0.0
    %1756 = vmatpush1.msra.mxu0 %v493
    %1757 = vmatprep.subr.mxu0 0.0
    %1758 = vmatpush1.msra.mxu0 %v494
    %1759 = vmatprep.subr.mxu0 0.0
    %1760 = vmatpush1.msra.mxu0 0.0
    %1761 = vmatprep.subr.mxu0 0.0
    %1762 = vmatpush1.msra.mxu0 0.0
    %1763 = vmatprep.subr.mxu0 0.0
    %1764 = vmatpush1.msra.mxu0 0.0
    %1765 = vmatprep.subr.mxu0 0.0
    %1766 = vmatpush1.msra.mxu0 0.0
    %1767 = vmatprep.subr.mxu0 0.0
    %1768 = vmatpush1.msra.mxu0 0.0
    %1769 = vmatprep.subr.mxu0 0.0
    %1770 = vmatpush1.msra.mxu0 0.0
    %1771 = vmatprep.subr.mxu0 0.0
    %1772 = vmatpush1.msra.mxu0 0.0
    %1773 = vmatprep.subr.mxu0 0.0
    %1774 = vmatpush1.msra.mxu0 0.0
    %1775 = vmatprep.subr.mxu0 0.0
    %1776 = vmatpush1.msra.mxu0 0.0
    %1777 = vmatprep.subr.mxu0 0.0
    %1778 = vmatpush1.msra.mxu0 0.0
    %1779 = vmatprep.subr.mxu0 0.0
    %1780 = vmatpush1.msra.mxu0 0.0
    %1781 = vmatprep.subr.mxu0 0.0
    %1782 = vmatpush1.msra.mxu0 0.0
    %1783 = vmatprep.subr.mxu0 0.0
    %1784 = vmatpush1.msra.mxu0 0.0
    %1785 = vmatprep.subr.mxu0 0.0
    %1786 = vmatpush1.msra.mxu0 0.0
    %1787 = vmatprep.subr.mxu0 0.0
    %1788 = vmatpush1.msra.mxu0 0.0
    %1789 = vmatprep.subr.mxu0 0.0
    %1790 = vmatpush1.msra.mxu0 0.0
    %1791 = vmatprep.subr.mxu0 0.0
    %1792 = vmatpush1.msra.mxu0 0.0
    %1793 = vmatprep.subr.mxu0 0.0
    %1794 = vmatpush1.msra.mxu0 0.0
    %1795 = vmatprep.subr.mxu0 0.0
    %1796 = vmatpush1.msra.mxu0 0.0
    %1797 = vmatprep.subr.mxu0 0.0
    %1798 = vmatpush1.msra.mxu0 0.0
    %1799 = vmatprep.subr.mxu0 0.0
    %1800 = vmatpush1.msra.mxu0 0.0
    %1801 = vmatprep.subr.mxu0 0.0
    %1802 = vmatpush1.msra.mxu0 0.0
    %1803 = vmatprep.subr.mxu0 0.0
    %1804 = vmatpush1.msra.mxu0 0.0
    %1805 = vmatprep.subr.mxu0 0.0
    %1806 = vmatpush1.msra.mxu0 0.0
    %1807 = vmatprep.subr.mxu0 0.0
    %1808 = vmatpush1.msra.mxu0 0.0
    %1809 = vmatprep.subr.mxu0 0.0
    %1810 = vmatpush1.msra.mxu0 0.0
    %1811 = vmatprep.subr.mxu0 0.0
    %1812 = vmatpush1.msra.mxu0 0.0
    %1813 = vmatprep.subr.mxu0 0.0
    %1814 = vmatpush1.msra.mxu0 0.0
    %1815 = vmatprep.mubr.f32.mxu0 0.0
    %1816 = vmatmul.mubr.f32.gmra.mrb[0].mxu0 %v1679
    %v1817 = vpop.f32.mrb[0].mxu0
    %v1818 = vadd.f32 0.0, %v1817
    %v1819 = vpop.f32.mrb[0].mxu0
    %1820 = vdwg.mxu0
    %1821 = vmatprep.subr.mxu0 0.0
    %1822 = vmatpush1.msra.mxu0 %v496
    %1823 = vmatprep.subr.mxu0 0.0
    %1824 = vmatpush1.msra.mxu0 %v497
    %1825 = vmatprep.subr.mxu0 0.0
    %1826 = vmatpush1.msra.mxu0 %v498
    %1827 = vmatprep.subr.mxu0 0.0
    %1828 = vmatpush1.msra.mxu0 %v499
    %1829 = vmatprep.subr.mxu0 0.0
    %1830 = vmatpush1.msra.mxu0 0.0
    %1831 = vmatprep.subr.mxu0 0.0
    %1832 = vmatpush1.msra.mxu0 0.0
    %1833 = vmatprep.subr.mxu0 0.0
    %1834 = vmatpush1.msra.mxu0 0.0
    %1835 = vmatprep.subr.mxu0 0.0
    %1836 = vmatpush1.msra.mxu0 0.0
    %1837 = vmatprep.subr.mxu0 0.0
    %1838 = vmatpush1.msra.mxu0 0.0
    %1839 = vmatprep.subr.mxu0 0.0
    %1840 = vmatpush1.msra.mxu0 0.0
    %1841 = vmatprep.subr.mxu0 0.0
    %1842 = vmatpush1.msra.mxu0 0.0
    %1843 = vmatprep.subr.mxu0 0.0
    %1844 = vmatpush1.msra.mxu0 0.0
    %1845 = vmatprep.subr.mxu0 0.0
    %1846 = vmatpush1.msra.mxu0 0.0
    %1847 = vmatprep.subr.mxu0 0.0
    %1848 = vmatpush1.msra.mxu0 0.0
    %1849 = vmatprep.subr.mxu0 0.0
    %1850 = vmatpush1.msra.mxu0 0.0
    %1851 = vmatprep.subr.mxu0 0.0
    %1852 = vmatpush1.msra.mxu0 0.0
    %1853 = vmatprep.subr.mxu0 0.0
    %1854 = vmatpush1.msra.mxu0 0.0
    %1855 = vmatprep.subr.mxu0 0.0
    %1856 = vmatpush1.msra.mxu0 0.0
    %1857 = vmatprep.subr.mxu0 0.0
    %1858 = vmatpush1.msra.mxu0 0.0
    %1859 = vmatprep.subr.mxu0 0.0
    %1860 = vmatpush1.msra.mxu0 0.0
    %1861 = vmatprep.subr.mxu0 0.0
    %1862 = vmatpush1.msra.mxu0 0.0
    %1863 = vmatprep.subr.mxu0 0.0
    %1864 = vmatpush1.msra.mxu0 0.0
    %1865 = vmatprep.subr.mxu0 0.0
    %1866 = vmatpush1.msra.mxu0 0.0
    %1867 = vmatprep.subr.mxu0 0.0
    %1868 = vmatpush1.msra.mxu0 0.0
    %1869 = vmatprep.subr.mxu0 0.0
    %1870 = vmatpush1.msra.mxu0 0.0
    %1871 = vmatprep.subr.mxu0 0.0
    %1872 = vmatpush1.msra.mxu0 0.0
    %1873 = vmatprep.subr.mxu0 0.0
    %1874 = vmatpush1.msra.mxu0 0.0
    %1875 = vmatprep.subr.mxu0 0.0
    %1876 = vmatpush1.msra.mxu0 0.0
    %1877 = vmatprep.subr.mxu0 0.0
    %1878 = vmatpush1.msra.mxu0 0.0
    %1879 = vmatprep.subr.mxu0 0.0
    %1880 = vmatpush1.msra.mxu0 0.0
    %1881 = vmatprep.subr.mxu0 0.0
    %1882 = vmatpush1.msra.mxu0 0.0
    %1883 = vmatprep.subr.mxu0 0.0
    %1884 = vmatpush1.msra.mxu0 0.0
    %1885 = vmatprep.mubr.f32.mxu0 0.0
    %1886 = vmatmul.mubr.f32.gmra.mrb[0].mxu0 %v1679
    %v1887 = vpop.f32.mrb[0].mxu0
    %v1888 = vadd.f32 %v649, %v1887
    %v1889 = vpop.f32.mrb[0].mxu0
    %1890 = vdwg.mxu0
    %v1891 = vadd.f32 %v213, %v1748
    %v1892 = vxor.u32 %v1891, 2147483648
    %v1893 = vmul.f32 %v1892, 1.442695
    %v1894 = vpow.pop %v1893
    %v1895 = vadd.f32 %v1894, 1.0
    %v1896 = vrcp.pop %v1895
    %v1897 = vmul.f32 1.0, %v1896
    %v1898 = vadd.f32 %v338, %v1818
    %v1899 = vxor.u32 %v1898, 2147483648
    %v1900 = vmul.f32 %v1899, 1.442695
    %v1901 = vpow.pop %v1900
    %v1902 = vadd.f32 %v1901, 1.0
    %v1903 = vrcp.pop %v1902
    %v1904 = vmul.f32 1.0, %v1903
    %v1905 = vmul.f32 %v1897, %v1888
    %v1906 = vadd.f32 %v463, %v1905
    %v1907 = vtanh.pop %v1906
    %v1908 = vsub.f32 1.0, %v1904
    %v1909 = vmul.f32 %v1908, %v1907
    %v1910 = vmul.f32 %v1904, %v1677
    %v1911 = vadd.f32 %v1909, %v1910
    %v1913 = vsel %vm501, %v1911, 0
    %1915 = vmatprep.subr.mxu0 0.0
    %1916 = vmatpush1.msra.mxu0 %v486
    %1917 = vmatprep.subr.mxu0 0.0
    %1918 = vmatpush1.msra.mxu0 %v487
    %1919 = vmatprep.subr.mxu0 0.0
    %1920 = vmatpush1.msra.mxu0 %v488
    %1921 = vmatprep.subr.mxu0 0.0
    %1922 = vmatpush1.msra.mxu0 %v489
    %1923 = vmatprep.subr.mxu0 0.0
    %1924 = vmatpush1.msra.mxu0 0.0
    %1925 = vmatprep.subr.mxu0 0.0
    %1926 = vmatpush1.msra.mxu0 0.0
    %1927 = vmatprep.subr.mxu0 0.0
    %1928 = vmatpush1.msra.mxu0 0.0
    %1929 = vmatprep.subr.mxu0 0.0
    %1930 = vmatpush1.msra.mxu0 0.0
    %1931 = vmatprep.subr.mxu0 0.0
    %1932 = vmatpush1.msra.mxu0 0.0
    %1933 = vmatprep.subr.mxu0 0.0
    %1934 = vmatpush1.msra.mxu0 0.0
    %1935 = vmatprep.subr.mxu0 0.0
    %1936 = vmatpush1.msra.mxu0 0.0
    %1937 = vmatprep.subr.mxu0 0.0
    %1938 = vmatpush1.msra.mxu0 0.0
    %1939 = vmatprep.subr.mxu0 0.0
    %1940 = vmatpush1.msra.mxu0 0.0
    %1941 = vmatprep.subr.mxu0 0.0
    %1942 = vmatpush1.msra.mxu0 0.0
    %1943 = vmatprep.subr.mxu0 0.0
    %1944 = vmatpush1.msra.mxu0 0.0
    %1945 = vmatprep.subr.mxu0 0.0
    %1946 = vmatpush1.msra.mxu0 0.0
    %1947 = vmatprep.subr.mxu0 0.0
    %1948 = vmatpush1.msra.mxu0 0.0
    %1949 = vmatprep.subr.mxu0 0.0
    %1950 = vmatpush1.msra.mxu0 0.0
    %1951 = vmatprep.subr.mxu0 0.0
    %1952 = vmatpush1.msra.mxu0 0.0
    %1953 = vmatprep.subr.mxu0 0.0
    %1954 = vmatpush1.msra.mxu0 0.0
    %1955 = vmatprep.subr.mxu0 0.0
    %1956 = vmatpush1.msra.mxu0 0.0
    %1957 = vmatprep.subr.mxu0 0.0
    %1958 = vmatpush1.msra.mxu0 0.0
    %1959 = vmatprep.subr.mxu0 0.0
    %1960 = vmatpush1.msra.mxu0 0.0
    %1961 = vmatprep.subr.mxu0 0.0
    %1962 = vmatpush1.msra.mxu0 0.0
    %1963 = vmatprep.subr.mxu0 0.0
    %1964 = vmatpush1.msra.mxu0 0.0
    %1965 = vmatprep.subr.mxu0 0.0
    %1966 = vmatpush1.msra.mxu0 0.0
    %1967 = vmatprep.subr.mxu0 0.0
    %1968 = vmatpush1.msra.mxu0 0.0
    %1969 = vmatprep.subr.mxu0 0.0
    %1970 = vmatpush1.msra.mxu0 0.0
    %1971 = vmatprep.subr.mxu0 0.0
    %1972 = vmatpush1.msra.mxu0 0.0
    %1973 = vmatprep.subr.mxu0 0.0
    %1974 = vmatpush1.msra.mxu0 0.0
    %1975 = vmatprep.subr.mxu0 0.0
    %1976 = vmatpush1.msra.mxu0 0.0
    %1977 = vmatprep.subr.mxu0 0.0
    %1978 = vmatpush1.msra.mxu0 0.0
    %1979 = vmatprep.mubr.f32.mxu0 0.0
    %1980 = vmatmul.mubr.f32.gmra.mrb[0].mxu0 %v1913
    %v1981 = vpop.f32.mrb[0].mxu0
    %v1982 = vadd.f32 0.0, %v1981
    %v1983 = vpop.f32.mrb[0].mxu0
    %1984 = vdwg.mxu0
    %1985 = vmatprep.subr.mxu0 0.0
    %1986 = vmatpush1.msra.mxu0 %v491
    %1987 = vmatprep.subr.mxu0 0.0
    %1988 = vmatpush1.msra.mxu0 %v492
    %1989 = vmatprep.subr.mxu0 0.0
    %1990 = vmatpush1.msra.mxu0 %v493
    %1991 = vmatprep.subr.mxu0 0.0
    %1992 = vmatpush1.msra.mxu0 %v494
    %1993 = vmatprep.subr.mxu0 0.0
    %1994 = vmatpush1.msra.mxu0 0.0
    %1995 = vmatprep.subr.mxu0 0.0
    %1996 = vmatpush1.msra.mxu0 0.0
    %1997 = vmatprep.subr.mxu0 0.0
    %1998 = vmatpush1.msra.mxu0 0.0
    %1999 = vmatprep.subr.mxu0 0.0
    %2000 = vmatpush1.msra.mxu0 0.0
    %2001 = vmatprep.subr.mxu0 0.0
    %2002 = vmatpush1.msra.mxu0 0.0
    %2003 = vmatprep.subr.mxu0 0.0
    %2004 = vmatpush1.msra.mxu0 0.0
    %2005 = vmatprep.subr.mxu0 0.0
    %2006 = vmatpush1.msra.mxu0 0.0
    %2007 = vmatprep.subr.mxu0 0.0
    %2008 = vmatpush1.msra.mxu0 0.0
    %2009 = vmatprep.subr.mxu0 0.0
    %2010 = vmatpush1.msra.mxu0 0.0
    %2011 = vmatprep.subr.mxu0 0.0
    %2012 = vmatpush1.msra.mxu0 0.0
    %2013 = vmatprep.subr.mxu0 0.0
    %2014 = vmatpush1.msra.mxu0 0.0
    %2015 = vmatprep.subr.mxu0 0.0
    %2016 = vmatpush1.msra.mxu0 0.0
    %2017 = vmatprep.subr.mxu0 0.0
    %2018 = vmatpush1.msra.mxu0 0.0
    %2019 = vmatprep.subr.mxu0 0.0
    %2020 = vmatpush1.msra.mxu0 0.0
    %2021 = vmatprep.subr.mxu0 0.0
    %2022 = vmatpush1.msra.mxu0 0.0
    %2023 = vmatprep.subr.mxu0 0.0
    %2024 = vmatpush1.msra.mxu0 0.0
    %2025 = vmatprep.subr.mxu0 0.0
    %2026 = vmatpush1.msra.mxu0 0.0
    %2027 = vmatprep.subr.mxu0 0.0
    %2028 = vmatpush1.msra.mxu0 0.0
    %2029 = vmatprep.subr.mxu0 0.0
    %2030 = vmatpush1.msra.mxu0 0.0
    %2031 = vmatprep.subr.mxu0 0.0
    %2032 = vmatpush1.msra.mxu0 0.0
    %2033 = vmatprep.subr.mxu0 0.0
    %2034 = vmatpush1.msra.mxu0 0.0
    %2035 = vmatprep.subr.mxu0 0.0
    %2036 = vmatpush1.msra.mxu0 0.0
    %2037 = vmatprep.subr.mxu0 0.0
    %2038 = vmatpush1.msra.mxu0 0.0
    %2039 = vmatprep.subr.mxu0 0.0
    %2040 = vmatpush1.msra.mxu0 0.0
    %2041 = vmatprep.subr.mxu0 0.0
    %2042 = vmatpush1.msra.mxu0 0.0
    %2043 = vmatprep.subr.mxu0 0.0
    %2044 = vmatpush1.msra.mxu0 0.0
    %2045 = vmatprep.subr.mxu0 0.0
    %2046 = vmatpush1.msra.mxu0 0.0
    %2047 = vmatprep.subr.mxu0 0.0
    %2048 = vmatpush1.msra.mxu0 0.0
    %2049 = vmatprep.mubr.f32.mxu0 0.0
    %2050 = vmatmul.mubr.f32.gmra.mrb[0].mxu0 %v1913
    %v2051 = vpop.f32.mrb[0].mxu0
    %v2052 = vadd.f32 0.0, %v2051
    %v2053 = vpop.f32.mrb[0].mxu0
    %2054 = vdwg.mxu0
    %2055 = vmatprep.subr.mxu0 0.0
    %2056 = vmatpush1.msra.mxu0 %v496
    %2057 = vmatprep.subr.mxu0 0.0
    %2058 = vmatpush1.msra.mxu0 %v497
    %2059 = vmatprep.subr.mxu0 0.0
    %2060 = vmatpush1.msra.mxu0 %v498
    %2061 = vmatprep.subr.mxu0 0.0
    %2062 = vmatpush1.msra.mxu0 %v499
    %2063 = vmatprep.subr.mxu0 0.0
    %2064 = vmatpush1.msra.mxu0 0.0
    %2065 = vmatprep.subr.mxu0 0.0
    %2066 = vmatpush1.msra.mxu0 0.0
    %2067 = vmatprep.subr.mxu0 0.0
    %2068 = vmatpush1.msra.mxu0 0.0
    %2069 = vmatprep.subr.mxu0 0.0
    %2070 = vmatpush1.msra.mxu0 0.0
    %2071 = vmatprep.subr.mxu0 0.0
    %2072 = vmatpush1.msra.mxu0 0.0
    %2073 = vmatprep.subr.mxu0 0.0
    %2074 = vmatpush1.msra.mxu0 0.0
    %2075 = vmatprep.subr.mxu0 0.0
    %2076 = vmatpush1.msra.mxu0 0.0
    %2077 = vmatprep.subr.mxu0 0.0
    %2078 = vmatpush1.msra.mxu0 0.0
    %2079 = vmatprep.subr.mxu0 0.0
    %2080 = vmatpush1.msra.mxu0 0.0
    %2081 = vmatprep.subr.mxu0 0.0
    %2082 = vmatpush1.msra.mxu0 0.0
    %2083 = vmatprep.subr.mxu0 0.0
    %2084 = vmatpush1.msra.mxu0 0.0
    %2085 = vmatprep.subr.mxu0 0.0
    %2086 = vmatpush1.msra.mxu0 0.0
    %2087 = vmatprep.subr.mxu0 0.0
    %2088 = vmatpush1.msra.mxu0 0.0
    %2089 = vmatprep.subr.mxu0 0.0
    %2090 = vmatpush1.msra.mxu0 0.0
    %2091 = vmatprep.subr.mxu0 0.0
    %2092 = vmatpush1.msra.mxu0 0.0
    %2093 = vmatprep.subr.mxu0 0.0
    %2094 = vmatpush1.msra.mxu0 0.0
    %2095 = vmatprep.subr.mxu0 0.0
    %2096 = vmatpush1.msra.mxu0 0.0
    %2097 = vmatprep.subr.mxu0 0.0
    %2098 = vmatpush1.msra.mxu0 0.0
    %2099 = vmatprep.subr.mxu0 0.0
    %2100 = vmatpush1.msra.mxu0 0.0
    %2101 = vmatprep.subr.mxu0 0.0
    %2102 = vmatpush1.msra.mxu0 0.0
    %2103 = vmatprep.subr.mxu0 0.0
    %2104 = vmatpush1.msra.mxu0 0.0
    %2105 = vmatprep.subr.mxu0 0.0
    %2106 = vmatpush1.msra.mxu0 0.0
    %2107 = vmatprep.subr.mxu0 0.0
    %2108 = vmatpush1.msra.mxu0 0.0
    %2109 = vmatprep.subr.mxu0 0.0
    %2110 = vmatpush1.msra.mxu0 0.0
    %2111 = vmatprep.subr.mxu0 0.0
    %2112 = vmatpush1.msra.mxu0 0.0
    %2113 = vmatprep.subr.mxu0 0.0
    %2114 = vmatpush1.msra.mxu0 0.0
    %2115 = vmatprep.subr.mxu0 0.0
    %2116 = vmatpush1.msra.mxu0 0.0
    %2117 = vmatprep.subr.mxu0 0.0
    %2118 = vmatpush1.msra.mxu0 0.0
    %2119 = vmatprep.mubr.f32.mxu0 0.0
    %2120 = vmatmul.mubr.f32.gmra.mrb[0].mxu0 %v1913
    %v2121 = vpop.f32.mrb[0].mxu0
    %v2122 = vadd.f32 %v649, %v2121
    %v2123 = vpop.f32.mrb[0].mxu0
    %2124 = vdwg.mxu0
    %v2125 = vadd.f32 %v218, %v1982
    %v2126 = vxor.u32 %v2125, 2147483648
    %v2127 = vmul.f32 %v2126, 1.442695
    %v2128 = vpow.pop %v2127
    %v2129 = vadd.f32 %v2128, 1.0
    %v2130 = vrcp.pop %v2129
    %v2131 = vmul.f32 1.0, %v2130
    %v2132 = vadd.f32 %v343, %v2052
    %v2133 = vxor.u32 %v2132, 2147483648
    %v2134 = vmul.f32 %v2133, 1.442695
    %v2135 = vpow.pop %v2134
    %v2136 = vadd.f32 %v2135, 1.0
    %v2137 = vrcp.pop %v2136
    %v2138 = vmul.f32 1.0, %v2137
    %v2139 = vmul.f32 %v2131, %v2122
    %v2140 = vadd.f32 %v468, %v2139
    %v2141 = vtanh.pop %v2140
    %v2142 = vsub.f32 1.0, %v2138
    %v2143 = vmul.f32 %v2142, %v2141
    %v2144 = vmul.f32 %v2138, %v1911
    %v2145 = vadd.f32 %v2143, %v2144
    %v2147 = vsel %vm501, %v2145, 0
    %2149 = vmatprep.subr.mxu0 0.0
    %2150 = vmatpush1.msra.mxu0 %v486
    %2151 = vmatprep.subr.mxu0 0.0
    %2152 = vmatpush1.msra.mxu0 %v487
    %2153 = vmatprep.subr.mxu0 0.0
    %2154 = vmatpush1.msra.mxu0 %v488
    %2155 = vmatprep.subr.mxu0 0.0
    %2156 = vmatpush1.msra.mxu0 %v489
    %2157 = vmatprep.subr.mxu0 0.0
    %2158 = vmatpush1.msra.mxu0 0.0
    %2159 = vmatprep.subr.mxu0 0.0
    %2160 = vmatpush1.msra.mxu0 0.0
    %2161 = vmatprep.subr.mxu0 0.0
    %2162 = vmatpush1.msra.mxu0 0.0
    %2163 = vmatprep.subr.mxu0 0.0
    %2164 = vmatpush1.msra.mxu0 0.0
    %2165 = vmatprep.subr.mxu0 0.0
    %2166 = vmatpush1.msra.mxu0 0.0
    %2167 = vmatprep.subr.mxu0 0.0
    %2168 = vmatpush1.msra.mxu0 0.0
    %2169 = vmatprep.subr.mxu0 0.0
    %2170 = vmatpush1.msra.mxu0 0.0
    %2171 = vmatprep.subr.mxu0 0.0
    %2172 = vmatpush1.msra.mxu0 0.0
    %2173 = vmatprep.subr.mxu0 0.0
    %2174 = vmatpush1.msra.mxu0 0.0
    %2175 = vmatprep.subr.mxu0 0.0
    %2176 = vmatpush1.msra.mxu0 0.0
    %2177 = vmatprep.subr.mxu0 0.0
    %2178 = vmatpush1.msra.mxu0 0.0
    %2179 = vmatprep.subr.mxu0 0.0
    %2180 = vmatpush1.msra.mxu0 0.0
    %2181 = vmatprep.subr.mxu0 0.0
    %2182 = vmatpush1.msra.mxu0 0.0
    %2183 = vmatprep.subr.mxu0 0.0
    %2184 = vmatpush1.msra.mxu0 0.0
    %2185 = vmatprep.subr.mxu0 0.0
    %2186 = vmatpush1.msra.mxu0 0.0
    %2187 = vmatprep.subr.mxu0 0.0
    %2188 = vmatpush1.msra.mxu0 0.0
    %2189 = vmatprep.subr.mxu0 0.0
    %2190 = vmatpush1.msra.mxu0 0.0
    %2191 = vmatprep.subr.mxu0 0.0
    %2192 = vmatpush1.msra.mxu0 0.0
    %2193 = vmatprep.subr.mxu0 0.0
    %2194 = vmatpush1.msra.mxu0 0.0
    %2195 = vmatprep.subr.mxu0 0.0
    %2196 = vmatpush1.msra.mxu0 0.0
    %2197 = vmatprep.subr.mxu0 0.0
    %2198 = vmatpush1.msra.mxu0 0.0
    %2199 = vmatprep.subr.mxu0 0.0
    %2200 = vmatpush1.msra.mxu0 0.0
    %2201 = vmatprep.subr.mxu0 0.0
    %2202 = vmatpush1.msra.mxu0 0.0
    %2203 = vmatprep.subr.mxu0 0.0
    %2204 = vmatpush1.msra.mxu0 0.0
    %2205 = vmatprep.subr.mxu0 0.0
    %2206 = vmatpush1.msra.mxu0 0.0
    %2207 = vmatprep.subr.mxu0 0.0
    %2208 = vmatpush1.msra.mxu0 0.0
    %2209 = vmatprep.subr.mxu0 0.0
    %2210 = vmatpush1.msra.mxu0 0.0
    %2211 = vmatprep.subr.mxu0 0.0
    %2212 = vmatpush1.msra.mxu0 0.0
    %2213 = vmatprep.mubr.f32.mxu0 0.0
    %2214 = vmatmul.mubr.f32.gmra.mrb[0].mxu0 %v2147
    %v2215 = vpop.f32.mrb[0].mxu0
    %v2216 = vadd.f32 0.0, %v2215
    %v2217 = vpop.f32.mrb[0].mxu0
    %2218 = vdwg.mxu0
    %2219 = vmatprep.subr.mxu0 0.0
    %2220 = vmatpush1.msra.mxu0 %v491
    %2221 = vmatprep.subr.mxu0 0.0
    %2222 = vmatpush1.msra.mxu0 %v492
    %2223 = vmatprep.subr.mxu0 0.0
    %2224 = vmatpush1.msra.mxu0 %v493
    %2225 = vmatprep.subr.mxu0 0.0
    %2226 = vmatpush1.msra.mxu0 %v494
    %2227 = vmatprep.subr.mxu0 0.0
    %2228 = vmatpush1.msra.mxu0 0.0
    %2229 = vmatprep.subr.mxu0 0.0
    %2230 = vmatpush1.msra.mxu0 0.0
    %2231 = vmatprep.subr.mxu0 0.0
    %2232 = vmatpush1.msra.mxu0 0.0
    %2233 = vmatprep.subr.mxu0 0.0
    %2234 = vmatpush1.msra.mxu0 0.0
    %2235 = vmatprep.subr.mxu0 0.0
    %2236 = vmatpush1.msra.mxu0 0.0
    %2237 = vmatprep.subr.mxu0 0.0
    %2238 = vmatpush1.msra.mxu0 0.0
    %2239 = vmatprep.subr.mxu0 0.0
    %2240 = vmatpush1.msra.mxu0 0.0
    %2241 = vmatprep.subr.mxu0 0.0
    %2242 = vmatpush1.msra.mxu0 0.0
    %2243 = vmatprep.subr.mxu0 0.0
    %2244 = vmatpush1.msra.mxu0 0.0
    %2245 = vmatprep.subr.mxu0 0.0
    %2246 = vmatpush1.msra.mxu0 0.0
    %2247 = vmatprep.subr.mxu0 0.0
    %2248 = vmatpush1.msra.mxu0 0.0
    %2249 = vmatprep.subr.mxu0 0.0
    %2250 = vmatpush1.msra.mxu0 0.0
    %2251 = vmatprep.subr.mxu0 0.0
    %2252 = vmatpush1.msra.mxu0 0.0
    %2253 = vmatprep.subr.mxu0 0.0
    %2254 = vmatpush1.msra.mxu0 0.0
    %2255 = vmatprep.subr.mxu0 0.0
    %2256 = vmatpush1.msra.mxu0 0.0
    %2257 = vmatprep.subr.mxu0 0.0
    %2258 = vmatpush1.msra.mxu0 0.0
    %2259 = vmatprep.subr.mxu0 0.0
    %2260 = vmatpush1.msra.mxu0 0.0
    %2261 = vmatprep.subr.mxu0 0.0
    %2262 = vmatpush1.msra.mxu0 0.0
    %2263 = vmatprep.subr.mxu0 0.0
    %2264 = vmatpush1.msra.mxu0 0.0
    %2265 = vmatprep.subr.mxu0 0.0
    %2266 = vmatpush1.msra.mxu0 0.0
    %2267 = vmatprep.subr.mxu0 0.0
    %2268 = vmatpush1.msra.mxu0 0.0
    %2269 = vmatprep.subr.mxu0 0.0
    %2270 = vmatpush1.msra.mxu0 0.0
    %2271 = vmatprep.subr.mxu0 0.0
    %2272 = vmatpush1.msra.mxu0 0.0
    %2273 = vmatprep.subr.mxu0 0.0
    %2274 = vmatpush1.msra.mxu0 0.0
    %2275 = vmatprep.subr.mxu0 0.0
    %2276 = vmatpush1.msra.mxu0 0.0
    %2277 = vmatprep.subr.mxu0 0.0
    %2278 = vmatpush1.msra.mxu0 0.0
    %2279 = vmatprep.subr.mxu0 0.0
    %2280 = vmatpush1.msra.mxu0 0.0
    %2281 = vmatprep.subr.mxu0 0.0
    %2282 = vmatpush1.msra.mxu0 0.0
    %2283 = vmatprep.mubr.f32.mxu0 0.0
    %2284 = vmatmul.mubr.f32.gmra.mrb[0].mxu0 %v2147
    %v2285 = vpop.f32.mrb[0].mxu0
    %v2286 = vadd.f32 0.0, %v2285
    %v2287 = vpop.f32.mrb[0].mxu0
    %2288 = vdwg.mxu0
    %2289 = vmatprep.subr.mxu0 0.0
    %2290 = vmatpush1.msra.mxu0 %v496
    %2291 = vmatprep.subr.mxu0 0.0
    %2292 = vmatpush1.msra.mxu0 %v497
    %2293 = vmatprep.subr.mxu0 0.0
    %2294 = vmatpush1.msra.mxu0 %v498
    %2295 = vmatprep.subr.mxu0 0.0
    %2296 = vmatpush1.msra.mxu0 %v499
    %2297 = vmatprep.subr.mxu0 0.0
    %2298 = vmatpush1.msra.mxu0 0.0
    %2299 = vmatprep.subr.mxu0 0.0
    %2300 = vmatpush1.msra.mxu0 0.0
    %2301 = vmatprep.subr.mxu0 0.0
    %2302 = vmatpush1.msra.mxu0 0.0
    %2303 = vmatprep.subr.mxu0 0.0
    %2304 = vmatpush1.msra.mxu0 0.0
    %2305 = vmatprep.subr.mxu0 0.0
    %2306 = vmatpush1.msra.mxu0 0.0
    %2307 = vmatprep.subr.mxu0 0.0
    %2308 = vmatpush1.msra.mxu0 0.0
    %2309 = vmatprep.subr.mxu0 0.0
    %2310 = vmatpush1.msra.mxu0 0.0
    %2311 = vmatprep.subr.mxu0 0.0
    %2312 = vmatpush1.msra.mxu0 0.0
    %2313 = vmatprep.subr.mxu0 0.0
    %2314 = vmatpush1.msra.mxu0 0.0
    %2315 = vmatprep.subr.mxu0 0.0
    %2316 = vmatpush1.msra.mxu0 0.0
    %2317 = vmatprep.subr.mxu0 0.0
    %2318 = vmatpush1.msra.mxu0 0.0
    %2319 = vmatprep.subr.mxu0 0.0
    %2320 = vmatpush1.msra.mxu0 0.0
    %2321 = vmatprep.subr.mxu0 0.0
    %2322 = vmatpush1.msra.mxu0 0.0
    %2323 = vmatprep.subr.mxu0 0.0
    %2324 = vmatpush1.msra.mxu0 0.0
    %2325 = vmatprep.subr.mxu0 0.0
    %2326 = vmatpush1.msra.mxu0 0.0
    %2327 = vmatprep.subr.mxu0 0.0
    %2328 = vmatpush1.msra.mxu0 0.0
    %2329 = vmatprep.subr.mxu0 0.0
    %2330 = vmatpush1.msra.mxu0 0.0
    %2331 = vmatprep.subr.mxu0 0.0
    %2332 = vmatpush1.msra.mxu0 0.0
    %2333 = vmatprep.subr.mxu0 0.0
    %2334 = vmatpush1.msra.mxu0 0.0
    %2335 = vmatprep.subr.mxu0 0.0
    %2336 = vmatpush1.msra.mxu0 0.0
    %2337 = vmatprep.subr.mxu0 0.0
    %2338 = vmatpush1.msra.mxu0 0.0
    %2339 = vmatprep.subr.mxu0 0.0
    %2340 = vmatpush1.msra.mxu0 0.0
    %2341 = vmatprep.subr.mxu0 0.0
    %2342 = vmatpush1.msra.mxu0 0.0
    %2343 = vmatprep.subr.mxu0 0.0
    %2344 = vmatpush1.msra.mxu0 0.0
    %2345 = vmatprep.subr.mxu0 0.0
    %2346 = vmatpush1.msra.mxu0 0.0
    %2347 = vmatprep.subr.mxu0 0.0
    %2348 = vmatpush1.msra.mxu0 0.0
    %2349 = vmatprep.subr.mxu0 0.0
    %2350 = vmatpush1.msra.mxu0 0.0
    %2351 = vmatprep.subr.mxu0 0.0
    %2352 = vmatpush1.msra.mxu0 0.0
    %2353 = vmatprep.mubr.f32.mxu0 0.0
    %2354 = vmatmul.mubr.f32.gmra.mrb[0].mxu0 %v2147
    %v2355 = vpop.f32.mrb[0].mxu0
    %v2356 = vadd.f32 %v649, %v2355
    %v2357 = vpop.f32.mrb[0].mxu0
    %2358 = vdwg.mxu0
    %v2359 = vadd.f32 %v223, %v2216
    %v2360 = vxor.u32 %v2359, 2147483648
    %v2361 = vmul.f32 %v2360, 1.442695
    %v2362 = vpow.pop %v2361
    %v2363 = vadd.f32 %v2362, 1.0
    %v2364 = vrcp.pop %v2363
    %v2365 = vmul.f32 1.0, %v2364
    %v2366 = vadd.f32 %v348, %v2286
    %v2367 = vxor.u32 %v2366, 2147483648
    %v2368 = vmul.f32 %v2367, 1.442695
    %v2369 = vpow.pop %v2368
    %v2370 = vadd.f32 %v2369, 1.0
    %v2371 = vrcp.pop %v2370
    %v2372 = vmul.f32 1.0, %v2371
    %v2373 = vmul.f32 %v2365, %v2356
    %v2374 = vadd.f32 %v473, %v2373
    %v2375 = vtanh.pop %v2374
    %v2376 = vsub.f32 1.0, %v2372
    %v2377 = vmul.f32 %v2376, %v2375
    %v2378 = vmul.f32 %v2372, %v2145
    %v2379 = vadd.f32 %v2377, %v2378
    %v2381 = vsel %vm501, %v2379, 0
    %2383 = vmatprep.subr.mxu0 0.0
    %2384 = vmatpush1.msra.mxu0 %v486
    %2385 = vmatprep.subr.mxu0 0.0
    %2386 = vmatpush1.msra.mxu0 %v487
    %2387 = vmatprep.subr.mxu0 0.0
    %2388 = vmatpush1.msra.mxu0 %v488
    %2389 = vmatprep.subr.mxu0 0.0
    %2390 = vmatpush1.msra.mxu0 %v489
    %2391 = vmatprep.subr.mxu0 0.0
    %2392 = vmatpush1.msra.mxu0 0.0
    %2393 = vmatprep.subr.mxu0 0.0
    %2394 = vmatpush1.msra.mxu0 0.0
    %2395 = vmatprep.subr.mxu0 0.0
    %2396 = vmatpush1.msra.mxu0 0.0
    %2397 = vmatprep.subr.mxu0 0.0
    %2398 = vmatpush1.msra.mxu0 0.0
    %2399 = vmatprep.subr.mxu0 0.0
    %2400 = vmatpush1.msra.mxu0 0.0
    %2401 = vmatprep.subr.mxu0 0.0
    %2402 = vmatpush1.msra.mxu0 0.0
    %2403 = vmatprep.subr.mxu0 0.0
    %2404 = vmatpush1.msra.mxu0 0.0
    %2405 = vmatprep.subr.mxu0 0.0
    %2406 = vmatpush1.msra.mxu0 0.0
    %2407 = vmatprep.subr.mxu0 0.0
    %2408 = vmatpush1.msra.mxu0 0.0
    %2409 = vmatprep.subr.mxu0 0.0
    %2410 = vmatpush1.msra.mxu0 0.0
    %2411 = vmatprep.subr.mxu0 0.0
    %2412 = vmatpush1.msra.mxu0 0.0
    %2413 = vmatprep.subr.mxu0 0.0
    %2414 = vmatpush1.msra.mxu0 0.0
    %2415 = vmatprep.subr.mxu0 0.0
    %2416 = vmatpush1.msra.mxu0 0.0
    %2417 = vmatprep.subr.mxu0 0.0
    %2418 = vmatpush1.msra.mxu0 0.0
    %2419 = vmatprep.subr.mxu0 0.0
    %2420 = vmatpush1.msra.mxu0 0.0
    %2421 = vmatprep.subr.mxu0 0.0
    %2422 = vmatpush1.msra.mxu0 0.0
    %2423 = vmatprep.subr.mxu0 0.0
    %2424 = vmatpush1.msra.mxu0 0.0
    %2425 = vmatprep.subr.mxu0 0.0
    %2426 = vmatpush1.msra.mxu0 0.0
    %2427 = vmatprep.subr.mxu0 0.0
    %2428 = vmatpush1.msra.mxu0 0.0
    %2429 = vmatprep.subr.mxu0 0.0
    %2430 = vmatpush1.msra.mxu0 0.0
    %2431 = vmatprep.subr.mxu0 0.0
    %2432 = vmatpush1.msra.mxu0 0.0
    %2433 = vmatprep.subr.mxu0 0.0
    %2434 = vmatpush1.msra.mxu0 0.0
    %2435 = vmatprep.subr.mxu0 0.0
    %2436 = vmatpush1.msra.mxu0 0.0
    %2437 = vmatprep.subr.mxu0 0.0
    %2438 = vmatpush1.msra.mxu0 0.0
    %2439 = vmatprep.subr.mxu0 0.0
    %2440 = vmatpush1.msra.mxu0 0.0
    %2441 = vmatprep.subr.mxu0 0.0
    %2442 = vmatpush1.msra.mxu0 0.0
    %2443 = vmatprep.subr.mxu0 0.0
    %2444 = vmatpush1.msra.mxu0 0.0
    %2445 = vmatprep.subr.mxu0 0.0
    %2446 = vmatpush1.msra.mxu0 0.0
    %2447 = vmatprep.mubr.f32.mxu0 0.0
    %2448 = vmatmul.mubr.f32.gmra.mrb[0].mxu0 %v2381
    %v2449 = vpop.f32.mrb[0].mxu0
    %v2450 = vadd.f32 0.0, %v2449
    %v2451 = vpop.f32.mrb[0].mxu0
    %2452 = vdwg.mxu0
    %2453 = vmatprep.subr.mxu0 0.0
    %2454 = vmatpush1.msra.mxu0 %v491
    %2455 = vmatprep.subr.mxu0 0.0
    %2456 = vmatpush1.msra.mxu0 %v492
    %2457 = vmatprep.subr.mxu0 0.0
    %2458 = vmatpush1.msra.mxu0 %v493
    %2459 = vmatprep.subr.mxu0 0.0
    %2460 = vmatpush1.msra.mxu0 %v494
    %2461 = vmatprep.subr.mxu0 0.0
    %2462 = vmatpush1.msra.mxu0 0.0
    %2463 = vmatprep.subr.mxu0 0.0
    %2464 = vmatpush1.msra.mxu0 0.0
    %2465 = vmatprep.subr.mxu0 0.0
    %2466 = vmatpush1.msra.mxu0 0.0
    %2467 = vmatprep.subr.mxu0 0.0
    %2468 = vmatpush1.msra.mxu0 0.0
    %2469 = vmatprep.subr.mxu0 0.0
    %2470 = vmatpush1.msra.mxu0 0.0
    %2471 = vmatprep.subr.mxu0 0.0
    %2472 = vmatpush1.msra.mxu0 0.0
    %2473 = vmatprep.subr.mxu0 0.0
    %2474 = vmatpush1.msra.mxu0 0.0
    %2475 = vmatprep.subr.mxu0 0.0
    %2476 = vmatpush1.msra.mxu0 0.0
    %2477 = vmatprep.subr.mxu0 0.0
    %2478 = vmatpush1.msra.mxu0 0.0
    %2479 = vmatprep.subr.mxu0 0.0
    %2480 = vmatpush1.msra.mxu0 0.0
    %2481 = vmatprep.subr.mxu0 0.0
    %2482 = vmatpush1.msra.mxu0 0.0
    %2483 = vmatprep.subr.mxu0 0.0
    %2484 = vmatpush1.msra.mxu0 0.0
    %2485 = vmatprep.subr.mxu0 0.0
    %2486 = vmatpush1.msra.mxu0 0.0
    %2487 = vmatprep.subr.mxu0 0.0
    %2488 = vmatpush1.msra.mxu0 0.0
    %2489 = vmatprep.subr.mxu0 0.0
    %2490 = vmatpush1.msra.mxu0 0.0
    %2491 = vmatprep.subr.mxu0 0.0
    %2492 = vmatpush1.msra.mxu0 0.0
    %2493 = vmatprep.subr.mxu0 0.0
    %2494 = vmatpush1.msra.mxu0 0.0
    %2495 = vmatprep.subr.mxu0 0.0
    %2496 = vmatpush1.msra.mxu0 0.0
    %2497 = vmatprep.subr.mxu0 0.0
    %2498 = vmatpush1.msra.mxu0 0.0
    %2499 = vmatprep.subr.mxu0 0.0
    %2500 = vmatpush1.msra.mxu0 0.0
    %2501 = vmatprep.subr.mxu0 0.0
    %2502 = vmatpush1.msra.mxu0 0.0
    %2503 = vmatprep.subr.mxu0 0.0
    %2504 = vmatpush1.msra.mxu0 0.0
    %2505 = vmatprep.subr.mxu0 0.0
    %2506 = vmatpush1.msra.mxu0 0.0
    %2507 = vmatprep.subr.mxu0 0.0
    %2508 = vmatpush1.msra.mxu0 0.0
    %2509 = vmatprep.subr.mxu0 0.0
    %2510 = vmatpush1.msra.mxu0 0.0
    %2511 = vmatprep.subr.mxu0 0.0
    %2512 = vmatpush1.msra.mxu0 0.0
    %2513 = vmatprep.subr.mxu0 0.0
    %2514 = vmatpush1.msra.mxu0 0.0
    %2515 = vmatprep.subr.mxu0 0.0
    %2516 = vmatpush1.msra.mxu0 0.0
    %2517 = vmatprep.mubr.f32.mxu0 0.0
    %2518 = vmatmul.mubr.f32.gmra.mrb[0].mxu0 %v2381
    %v2519 = vpop.f32.mrb[0].mxu0
    %v2520 = vadd.f32 0.0, %v2519
    %v2521 = vpop.f32.mrb[0].mxu0
    %2522 = vdwg.mxu0
    %2523 = vmatprep.subr.mxu0 0.0
    %2524 = vmatpush1.msra.mxu0 %v496
    %2525 = vmatprep.subr.mxu0 0.0
    %2526 = vmatpush1.msra.mxu0 %v497
    %2527 = vmatprep.subr.mxu0 0.0
    %2528 = vmatpush1.msra.mxu0 %v498
    %2529 = vmatprep.subr.mxu0 0.0
    %2530 = vmatpush1.msra.mxu0 %v499
    %2531 = vmatprep.subr.mxu0 0.0
    %2532 = vmatpush1.msra.mxu0 0.0
    %2533 = vmatprep.subr.mxu0 0.0
    %2534 = vmatpush1.msra.mxu0 0.0
    %2535 = vmatprep.subr.mxu0 0.0
    %2536 = vmatpush1.msra.mxu0 0.0
    %2537 = vmatprep.subr.mxu0 0.0
    %2538 = vmatpush1.msra.mxu0 0.0
    %2539 = vmatprep.subr.mxu0 0.0
    %2540 = vmatpush1.msra.mxu0 0.0
    %2541 = vmatprep.subr.mxu0 0.0
    %2542 = vmatpush1.msra.mxu0 0.0
    %2543 = vmatprep.subr.mxu0 0.0
    %2544 = vmatpush1.msra.mxu0 0.0
    %2545 = vmatprep.subr.mxu0 0.0
    %2546 = vmatpush1.msra.mxu0 0.0
    %2547 = vmatprep.subr.mxu0 0.0
    %2548 = vmatpush1.msra.mxu0 0.0
    %2549 = vmatprep.subr.mxu0 0.0
    %2550 = vmatpush1.msra.mxu0 0.0
    %2551 = vmatprep.subr.mxu0 0.0
    %2552 = vmatpush1.msra.mxu0 0.0
    %2553 = vmatprep.subr.mxu0 0.0
    %2554 = vmatpush1.msra.mxu0 0.0
    %2555 = vmatprep.subr.mxu0 0.0
    %2556 = vmatpush1.msra.mxu0 0.0
    %2557 = vmatprep.subr.mxu0 0.0
    %2558 = vmatpush1.msra.mxu0 0.0
    %2559 = vmatprep.subr.mxu0 0.0
    %2560 = vmatpush1.msra.mxu0 0.0
    %2561 = vmatprep.subr.mxu0 0.0
    %2562 = vmatpush1.msra.mxu0 0.0
    %2563 = vmatprep.subr.mxu0 0.0
    %2564 = vmatpush1.msra.mxu0 0.0
    %2565 = vmatprep.subr.mxu0 0.0
    %2566 = vmatpush1.msra.mxu0 0.0
    %2567 = vmatprep.subr.mxu0 0.0
    %2568 = vmatpush1.msra.mxu0 0.0
    %2569 = vmatprep.subr.mxu0 0.0
    %2570 = vmatpush1.msra.mxu0 0.0
    %2571 = vmatprep.subr.mxu0 0.0
    %2572 = vmatpush1.msra.mxu0 0.0
    %2573 = vmatprep.subr.mxu0 0.0
    %2574 = vmatpush1.msra.mxu0 0.0
    %2575 = vmatprep.subr.mxu0 0.0
    %2576 = vmatpush1.msra.mxu0 0.0
    %2577 = vmatprep.subr.mxu0 0.0
    %2578 = vmatpush1.msra.mxu0 0.0
    %2579 = vmatprep.subr.mxu0 0.0
    %2580 = vmatpush1.msra.mxu0 0.0
    %2581 = vmatprep.subr.mxu0 0.0
    %2582 = vmatpush1.msra.mxu0 0.0
    %2583 = vmatprep.subr.mxu0 0.0
    %2584 = vmatpush1.msra.mxu0 0.0
    %2585 = vmatprep.subr.mxu0 0.0
    %2586 = vmatpush1.msra.mxu0 0.0
    %2587 = vmatprep.mubr.f32.mxu0 0.0
    %2588 = vmatmul.mubr.f32.gmra.mrb[0].mxu0 %v2381
    %v2589 = vpop.f32.mrb[0].mxu0
    %v2590 = vadd.f32 %v649, %v2589
    %v2591 = vpop.f32.mrb[0].mxu0
    %2592 = vdwg.mxu0
    %v2593 = vadd.f32 %v228, %v2450
    %v2594 = vxor.u32 %v2593, 2147483648
    %v2595 = vmul.f32 %v2594, 1.442695
    %v2596 = vpow.pop %v2595
    %v2597 = vadd.f32 %v2596, 1.0
    %v2598 = vrcp.pop %v2597
    %v2599 = vmul.f32 1.0, %v2598
    %v2600 = vadd.f32 %v353, %v2520
    %v2601 = vxor.u32 %v2600, 2147483648
    %v2602 = vmul.f32 %v2601, 1.442695
    %v2603 = vpow.pop %v2602
    %v2604 = vadd.f32 %v2603, 1.0
    %v2605 = vrcp.pop %v2604
    %v2606 = vmul.f32 1.0, %v2605
    %v2607 = vmul.f32 %v2599, %v2590
    %v2608 = vadd.f32 %v478, %v2607
    %v2609 = vtanh.pop %v2608
    %v2610 = vsub.f32 1.0, %v2606
    %v2611 = vmul.f32 %v2610, %v2609
    %v2612 = vmul.f32 %v2606, %v2379
    %v2613 = vadd.f32 %v2611, %v2612
    %v2615 = vsel %vm501, %v2613, 0
    %2617 = vmatprep.subr.mxu0 0.0
    %2618 = vmatpush1.msra.mxu0 %v486
    %2619 = vmatprep.subr.mxu0 0.0
    %2620 = vmatpush1.msra.mxu0 %v487
    %2621 = vmatprep.subr.mxu0 0.0
    %2622 = vmatpush1.msra.mxu0 %v488
    %2623 = vmatprep.subr.mxu0 0.0
    %2624 = vmatpush1.msra.mxu0 %v489
    %2625 = vmatprep.subr.mxu0 0.0
    %2626 = vmatpush1.msra.mxu0 0.0
    %2627 = vmatprep.subr.mxu0 0.0
    %2628 = vmatpush1.msra.mxu0 0.0
    %2629 = vmatprep.subr.mxu0 0.0
    %2630 = vmatpush1.msra.mxu0 0.0
    %2631 = vmatprep.subr.mxu0 0.0
    %2632 = vmatpush1.msra.mxu0 0.0
    %2633 = vmatprep.subr.mxu0 0.0
    %2634 = vmatpush1.msra.mxu0 0.0
    %2635 = vmatprep.subr.mxu0 0.0
    %2636 = vmatpush1.msra.mxu0 0.0
    %2637 = vmatprep.subr.mxu0 0.0
    %2638 = vmatpush1.msra.mxu0 0.0
    %2639 = vmatprep.subr.mxu0 0.0
    %2640 = vmatpush1.msra.mxu0 0.0
    %2641 = vmatprep.subr.mxu0 0.0
    %2642 = vmatpush1.msra.mxu0 0.0
    %2643 = vmatprep.subr.mxu0 0.0
    %2644 = vmatpush1.msra.mxu0 0.0
    %2645 = vmatprep.subr.mxu0 0.0
    %2646 = vmatpush1.msra.mxu0 0.0
    %2647 = vmatprep.subr.mxu0 0.0
    %2648 = vmatpush1.msra.mxu0 0.0
    %2649 = vmatprep.subr.mxu0 0.0
    %2650 = vmatpush1.msra.mxu0 0.0
    %2651 = vmatprep.subr.mxu0 0.0
    %2652 = vmatpush1.msra.mxu0 0.0
    %2653 = vmatprep.subr.mxu0 0.0
    %2654 = vmatpush1.msra.mxu0 0.0
    %2655 = vmatprep.subr.mxu0 0.0
    %2656 = vmatpush1.msra.mxu0 0.0
    %2657 = vmatprep.subr.mxu0 0.0
    %2658 = vmatpush1.msra.mxu0 0.0
    %2659 = vmatprep.subr.mxu0 0.0
    %2660 = vmatpush1.msra.mxu0 0.0
    %2661 = vmatprep.subr.mxu0 0.0
    %2662 = vmatpush1.msra.mxu0 0.0
    %2663 = vmatprep.subr.mxu0 0.0
    %2664 = vmatpush1.msra.mxu0 0.0
    %2665 = vmatprep.subr.mxu0 0.0
    %2666 = vmatpush1.msra.mxu0 0.0
    %2667 = vmatprep.subr.mxu0 0.0
    %2668 = vmatpush1.msra.mxu0 0.0
    %2669 = vmatprep.subr.mxu0 0.0
    %2670 = vmatpush1.msra.mxu0 0.0
    %2671 = vmatprep.subr.mxu0 0.0
    %2672 = vmatpush1.msra.mxu0 0.0
    %2673 = vmatprep.subr.mxu0 0.0
    %2674 = vmatpush1.msra.mxu0 0.0
    %2675 = vmatprep.subr.mxu0 0.0
    %2676 = vmatpush1.msra.mxu0 0.0
    %2677 = vmatprep.subr.mxu0 0.0
    %2678 = vmatpush1.msra.mxu0 0.0
    %2679 = vmatprep.subr.mxu0 0.0
    %2680 = vmatpush1.msra.mxu0 0.0
    %2681 = vmatprep.mubr.f32.mxu0 0.0
    %2682 = vmatmul.mubr.f32.gmra.mrb[0].mxu0 %v2615
    %v2683 = vpop.f32.mrb[0].mxu0
    %v2684 = vadd.f32 0.0, %v2683
    %v2685 = vpop.f32.mrb[0].mxu0
    %2686 = vdwg.mxu0
    %2687 = vmatprep.subr.mxu0 0.0
    %2688 = vmatpush1.msra.mxu0 %v491
    %2689 = vmatprep.subr.mxu0 0.0
    %2690 = vmatpush1.msra.mxu0 %v492
    %2691 = vmatprep.subr.mxu0 0.0
    %2692 = vmatpush1.msra.mxu0 %v493
    %2693 = vmatprep.subr.mxu0 0.0
    %2694 = vmatpush1.msra.mxu0 %v494
    %2695 = vmatprep.subr.mxu0 0.0
    %2696 = vmatpush1.msra.mxu0 0.0
    %2697 = vmatprep.subr.mxu0 0.0
    %2698 = vmatpush1.msra.mxu0 0.0
    %2699 = vmatprep.subr.mxu0 0.0
    %2700 = vmatpush1.msra.mxu0 0.0
    %2701 = vmatprep.subr.mxu0 0.0
    %2702 = vmatpush1.msra.mxu0 0.0
    %2703 = vmatprep.subr.mxu0 0.0
    %2704 = vmatpush1.msra.mxu0 0.0
    %2705 = vmatprep.subr.mxu0 0.0
    %2706 = vmatpush1.msra.mxu0 0.0
    %2707 = vmatprep.subr.mxu0 0.0
    %2708 = vmatpush1.msra.mxu0 0.0
    %2709 = vmatprep.subr.mxu0 0.0
    %2710 = vmatpush1.msra.mxu0 0.0
    %2711 = vmatprep.subr.mxu0 0.0
    %2712 = vmatpush1.msra.mxu0 0.0
    %2713 = vmatprep.subr.mxu0 0.0
    %2714 = vmatpush1.msra.mxu0 0.0
    %2715 = vmatprep.subr.mxu0 0.0
    %2716 = vmatpush1.msra.mxu0 0.0
    %2717 = vmatprep.subr.mxu0 0.0
    %2718 = vmatpush1.msra.mxu0 0.0
    %2719 = vmatprep.subr.mxu0 0.0
    %2720 = vmatpush1.msra.mxu0 0.0
    %2721 = vmatprep.subr.mxu0 0.0
    %2722 = vmatpush1.msra.mxu0 0.0
    %2723 = vmatprep.subr.mxu0 0.0
    %2724 = vmatpush1.msra.mxu0 0.0
    %2725 = vmatprep.subr.mxu0 0.0
    %2726 = vmatpush1.msra.mxu0 0.0
    %2727 = vmatprep.subr.mxu0 0.0
    %2728 = vmatpush1.msra.mxu0 0.0
    %2729 = vmatprep.subr.mxu0 0.0
    %2730 = vmatpush1.msra.mxu0 0.0
    %2731 = vmatprep.subr.mxu0 0.0
    %2732 = vmatpush1.msra.mxu0 0.0
    %2733 = vmatprep.subr.mxu0 0.0
    %2734 = vmatpush1.msra.mxu0 0.0
    %2735 = vmatprep.subr.mxu0 0.0
    %2736 = vmatpush1.msra.mxu0 0.0
    %2737 = vmatprep.subr.mxu0 0.0
    %2738 = vmatpush1.msra.mxu0 0.0
    %2739 = vmatprep.subr.mxu0 0.0
    %2740 = vmatpush1.msra.mxu0 0.0
    %2741 = vmatprep.subr.mxu0 0.0
    %2742 = vmatpush1.msra.mxu0 0.0
    %2743 = vmatprep.subr.mxu0 0.0
    %2744 = vmatpush1.msra.mxu0 0.0
    %2745 = vmatprep.subr.mxu0 0.0
    %2746 = vmatpush1.msra.mxu0 0.0
    %2747 = vmatprep.subr.mxu0 0.0
    %2748 = vmatpush1.msra.mxu0 0.0
    %2749 = vmatprep.subr.mxu0 0.0
    %2750 = vmatpush1.msra.mxu0 0.0
    %2751 = vmatprep.mubr.f32.mxu0 0.0
    %2752 = vmatmul.mubr.f32.gmra.mrb[0].mxu0 %v2615
    %v2753 = vpop.f32.mrb[0].mxu0
    %v2754 = vadd.f32 0.0, %v2753
    %v2755 = vpop.f32.mrb[0].mxu0
    %2756 = vdwg.mxu0
    %2757 = vmatprep.subr.mxu0 0.0
    %2758 = vmatpush1.msra.mxu0 %v496
    %2759 = vmatprep.subr.mxu0 0.0
    %2760 = vmatpush1.msra.mxu0 %v497
    %2761 = vmatprep.subr.mxu0 0.0
    %2762 = vmatpush1.msra.mxu0 %v498
    %2763 = vmatprep.subr.mxu0 0.0
    %2764 = vmatpush1.msra.mxu0 %v499
    %2765 = vmatprep.subr.mxu0 0.0
    %2766 = vmatpush1.msra.mxu0 0.0
    %2767 = vmatprep.subr.mxu0 0.0
    %2768 = vmatpush1.msra.mxu0 0.0
    %2769 = vmatprep.subr.mxu0 0.0
    %2770 = vmatpush1.msra.mxu0 0.0
    %2771 = vmatprep.subr.mxu0 0.0
    %2772 = vmatpush1.msra.mxu0 0.0
    %2773 = vmatprep.subr.mxu0 0.0
    %2774 = vmatpush1.msra.mxu0 0.0
    %2775 = vmatprep.subr.mxu0 0.0
    %2776 = vmatpush1.msra.mxu0 0.0
    %2777 = vmatprep.subr.mxu0 0.0
    %2778 = vmatpush1.msra.mxu0 0.0
    %2779 = vmatprep.subr.mxu0 0.0
    %2780 = vmatpush1.msra.mxu0 0.0
    %2781 = vmatprep.subr.mxu0 0.0
    %2782 = vmatpush1.msra.mxu0 0.0
    %2783 = vmatprep.subr.mxu0 0.0
    %2784 = vmatpush1.msra.mxu0 0.0
    %2785 = vmatprep.subr.mxu0 0.0
    %2786 = vmatpush1.msra.mxu0 0.0
    %2787 = vmatprep.subr.mxu0 0.0
    %2788 = vmatpush1.msra.mxu0 0.0
    %2789 = vmatprep.subr.mxu0 0.0
    %2790 = vmatpush1.msra.mxu0 0.0
    %2791 = vmatprep.subr.mxu0 0.0
    %2792 = vmatpush1.msra.mxu0 0.0
    %2793 = vmatprep.subr.mxu0 0.0
    %2794 = vmatpush1.msra.mxu0 0.0
    %2795 = vmatprep.subr.mxu0 0.0
    %2796 = vmatpush1.msra.mxu0 0.0
    %2797 = vmatprep.subr.mxu0 0.0
    %2798 = vmatpush1.msra.mxu0 0.0
    %2799 = vmatprep.subr.mxu0 0.0
    %2800 = vmatpush1.msra.mxu0 0.0
    %2801 = vmatprep.subr.mxu0 0.0
    %2802 = vmatpush1.msra.mxu0 0.0
    %2803 = vmatprep.subr.mxu0 0.0
    %2804 = vmatpush1.msra.mxu0 0.0
    %2805 = vmatprep.subr.mxu0 0.0
    %2806 = vmatpush1.msra.mxu0 0.0
    %2807 = vmatprep.subr.mxu0 0.0
    %2808 = vmatpush1.msra.mxu0 0.0
    %2809 = vmatprep.subr.mxu0 0.0
    %2810 = vmatpush1.msra.mxu0 0.0
    %2811 = vmatprep.subr.mxu0 0.0
    %2812 = vmatpush1.msra.mxu0 0.0
    %2813 = vmatprep.subr.mxu0 0.0
    %2814 = vmatpush1.msra.mxu0 0.0
    %2815 = vmatprep.subr.mxu0 0.0
    %2816 = vmatpush1.msra.mxu0 0.0
    %2817 = vmatprep.subr.mxu0 0.0
    %2818 = vmatpush1.msra.mxu0 0.0
    %2819 = vmatprep.subr.mxu0 0.0
    %2820 = vmatpush1.msra.mxu0 0.0
    %2821 = vmatprep.mubr.f32.mxu0 0.0
    %2822 = vmatmul.mubr.f32.gmra.mrb[0].mxu0 %v2615
    %v2823 = vpop.f32.mrb[0].mxu0
    %v2824 = vadd.f32 %v649, %v2823
    %v2825 = vpop.f32.mrb[0].mxu0
    %2826 = vdwg.mxu0
    %v2827 = vadd.f32 %v233, %v2684
    %v2828 = vxor.u32 %v2827, 2147483648
    %v2829 = vmul.f32 %v2828, 1.442695
    %v2830 = vpow.pop %v2829
    %v2831 = vadd.f32 %v2830, 1.0
    %v2832 = vrcp.pop %v2831
    %v2833 = vmul.f32 1.0, %v2832
    %v2834 = vadd.f32 %v358, %v2754
    %v2835 = vxor.u32 %v2834, 2147483648
    %v2836 = vmul.f32 %v2835, 1.442695
    %v2837 = vpow.pop %v2836
    %v2838 = vadd.f32 %v2837, 1.0
    %v2839 = vrcp.pop %v2838
    %v2840 = vmul.f32 1.0, %v2839
    %v2841 = vmul.f32 %v2833, %v2824
    %v2842 = vadd.f32 %v483, %v2841
    %v2843 = vtanh.pop %v2842
    %v2844 = vsub.f32 1.0, %v2840
    %v2845 = vmul.f32 %v2844, %v2843
    %v2846 = vmul.f32 %v2840, %v2613
    %v2847 = vadd.f32 %v2845, %v2846
    %2848 = vst.msk [vmem:[#allocation7] sm:$0xff] %vm501, %v2847
    %v2849 = vld [vmem:[%s1] sm:$0xff]
    %v2850 = vld [vmem:[%s1 + $0x8] sm:$0xff]
    %v2851 = vld [vmem:[%s1 + $0x10] sm:$0xff]
    %v2852 = vld [vmem:[%s1 + $0x18] sm:$0xff]
    %v2853 = vld [vmem:[%s1 + $0x20] sm:$0xff]
    %v2854 = vld [vmem:[%s1 + $0x28] sm:$0xff]
    %v2855 = vld [vmem:[%s1 + $0x30] sm:$0xff]
    %v2856 = vld [vmem:[%s1 + $0x38] sm:$0xff]
    %v2857 = vld [vmem:[%s6] sm:$0xff]
    %v2858 = vld [vmem:[%s8] sm:$0x1]
    %v2860 = vlaneseq
    %v2861 = vshrl.u32 %v2860, 7
    %v2862 = vsub.s32 0, %v2861
    %v2863 = vrot.slane %v2858, %v2862
    %v2866 = vsel %vm90, %v2849, 0
    %v2869 = vsel %vm90, %v2850, 0
    %v2872 = vsel %vm90, %v2851, 0
    %v2875 = vsel %vm90, %v2852, 0
    %v2878 = vsel %vm90, %v2853, 0
    %v2881 = vsel %vm90, %v2854, 0
    %v2884 = vsel %vm90, %v2855, 0
    %v2887 = vsel %vm90, %v2856, 0
    %2889 = vmatprep.subr.mxu0 0.0
    %2890 = vmatpush1.msra.mxu0 %v2857
    %2891 = vmatprep.subr.mxu0 0.0
    %2892 = vmatpush1.msra.mxu0 0.0
    %2893 = vmatprep.subr.mxu0 0.0
    %2894 = vmatpush1.msra.mxu0 0.0
    %2895 = vmatprep.subr.mxu0 0.0
    %2896 = vmatpush1.msra.mxu0 0.0
    %2897 = vmatprep.subr.mxu0 0.0
    %2898 = vmatpush1.msra.mxu0 0.0
    %2899 = vmatprep.subr.mxu0 0.0
    %2900 = vmatpush1.msra.mxu0 0.0
    %2901 = vmatprep.subr.mxu0 0.0
    %2902 = vmatpush1.msra.mxu0 0.0
    %2903 = vmatprep.subr.mxu0 0.0
    %2904 = vmatpush1.msra.mxu0 0.0
    %2905 = vmatprep.subr.mxu0 0.0
    %2906 = vmatpush1.msra.mxu0 0.0
    %2907 = vmatprep.subr.mxu0 0.0
    %2908 = vmatpush1.msra.mxu0 0.0
    %2909 = vmatprep.subr.mxu0 0.0
    %2910 = vmatpush1.msra.mxu0 0.0
    %2911 = vmatprep.subr.mxu0 0.0
    %2912 = vmatpush1.msra.mxu0 0.0
    %2913 = vmatprep.subr.mxu0 0.0
    %2914 = vmatpush1.msra.mxu0 0.0
    %2915 = vmatprep.subr.mxu0 0.0
    %2916 = vmatpush1.msra.mxu0 0.0
    %2917 = vmatprep.subr.mxu0 0.0
    %2918 = vmatpush1.msra.mxu0 0.0
    %2919 = vmatprep.subr.mxu0 0.0
    %2920 = vmatpush1.msra.mxu0 0.0
    %2921 = vmatprep.subr.mxu0 0.0
    %2922 = vmatpush1.msra.mxu0 0.0
    %2923 = vmatprep.subr.mxu0 0.0
    %2924 = vmatpush1.msra.mxu0 0.0
    %2925 = vmatprep.subr.mxu0 0.0
    %2926 = vmatpush1.msra.mxu0 0.0
    %2927 = vmatprep.subr.mxu0 0.0
    %2928 = vmatpush1.msra.mxu0 0.0
    %2929 = vmatprep.subr.mxu0 0.0
    %2930 = vmatpush1.msra.mxu0 0.0
    %2931 = vmatprep.subr.mxu0 0.0
    %2932 = vmatpush1.msra.mxu0 0.0
    %2933 = vmatprep.subr.mxu0 0.0
    %2934 = vmatpush1.msra.mxu0 0.0
    %2935 = vmatprep.subr.mxu0 0.0
    %2936 = vmatpush1.msra.mxu0 0.0
    %2937 = vmatprep.subr.mxu0 0.0
    %2938 = vmatpush1.msra.mxu0 0.0
    %2939 = vmatprep.subr.mxu0 0.0
    %2940 = vmatpush1.msra.mxu0 0.0
    %2941 = vmatprep.subr.mxu0 0.0
    %2942 = vmatpush1.msra.mxu0 0.0
    %2943 = vmatprep.subr.mxu0 0.0
    %2944 = vmatpush1.msra.mxu0 0.0
    %2945 = vmatprep.subr.mxu0 0.0
    %2946 = vmatpush1.msra.mxu0 0.0
    %2947 = vmatprep.subr.mxu0 0.0
    %2948 = vmatpush1.msra.mxu0 0.0
    %2949 = vmatprep.subr.mxu0 0.0
    %2950 = vmatpush1.msra.mxu0 0.0
    %2951 = vmatprep.subr.mxu0 0.0
    %2952 = vmatpush1.msra.mxu0 0.0
    %2953 = vmatprep.mubr.f32.mxu0 0.0
    %2954 = vmatmul.mubr.f32.gmra.mrb[0].mxu0 %v2866
    %v2955 = vpop.f32.mrb[0].mxu0
    %v2956 = vadd.f32 %v2863, %v2955
    %v2957 = vpop.f32.mrb[0].mxu0
    %2958 = vmatprep.mubr.f32.mxu0 0.0
    %2959 = vmatmul.mubr.f32.gmra.mrb[0].mxu0 %v2869
    %v2960 = vpop.f32.mrb[0].mxu0
    %v2961 = vadd.f32 %v2863, %v2960
    %v2962 = vpop.f32.mrb[0].mxu0
    %2963 = vmatprep.mubr.f32.mxu0 0.0
    %2964 = vmatmul.mubr.f32.gmra.mrb[0].mxu0 %v2872
    %v2965 = vpop.f32.mrb[0].mxu0
    %v2966 = vadd.f32 %v2863, %v2965
    %v2967 = vpop.f32.mrb[0].mxu0
    %2968 = vmatprep.mubr.f32.mxu0 0.0
    %2969 = vmatmul.mubr.f32.gmra.mrb[0].mxu0 %v2875
    %v2970 = vpop.f32.mrb[0].mxu0
    %v2971 = vadd.f32 %v2863, %v2970
    %v2972 = vpop.f32.mrb[0].mxu0
    %2973 = vmatprep.mubr.f32.mxu0 0.0
    %2974 = vmatmul.mubr.f32.gmra.mrb[0].mxu0 %v2878
    %v2975 = vpop.f32.mrb[0].mxu0
    %v2976 = vadd.f32 %v2863, %v2975
    %v2977 = vpop.f32.mrb[0].mxu0
    %2978 = vmatprep.mubr.f32.mxu0 0.0
    %2979 = vmatmul.mubr.f32.gmra.mrb[0].mxu0 %v2881
    %v2980 = vpop.f32.mrb[0].mxu0
    %v2981 = vadd.f32 %v2863, %v2980
    %v2982 = vpop.f32.mrb[0].mxu0
    %2983 = vmatprep.mubr.f32.mxu0 0.0
    %2984 = vmatmul.mubr.f32.gmra.mrb[0].mxu0 %v2884
    %v2985 = vpop.f32.mrb[0].mxu0
    %v2986 = vadd.f32 %v2863, %v2985
    %v2987 = vpop.f32.mrb[0].mxu0
    %2988 = vmatprep.mubr.f32.mxu0 0.0
    %2989 = vmatmul.mubr.f32.gmra.mrb[0].mxu0 %v2887
    %v2990 = vpop.f32.mrb[0].mxu0
    %v2991 = vadd.f32 %v2863, %v2990
    %v2992 = vpop.f32.mrb[0].mxu0
    %2993 = vdwg.mxu0
    %s2994 = scalar_lea.vmem %s6, 8
    %v2995 = vld [vmem:[%s2994] sm:$0xff]
    %s2996 = scalar_lea.vmem %s8, 1
    %v2997 = vld [vmem:[%s2996] sm:$0x1]
    %v2999 = vlaneseq
    %v3000 = vshrl.u32 %v2999, 7
    %v3001 = vsub.s32 0, %v3000
    %v3002 = vrot.slane %v2997, %v3001
    %3004 = vmatprep.subr.mxu0 0.0
    %3005 = vmatpush1.msra.mxu0 %v2995
    %3006 = vmatprep.subr.mxu0 0.0
    %3007 = vmatpush1.msra.mxu0 0.0
    %3008 = vmatprep.subr.mxu0 0.0
    %3009 = vmatpush1.msra.mxu0 0.0
    %3010 = vmatprep.subr.mxu0 0.0
    %3011 = vmatpush1.msra.mxu0 0.0
    %3012 = vmatprep.subr.mxu0 0.0
    %3013 = vmatpush1.msra.mxu0 0.0
    %3014 = vmatprep.subr.mxu0 0.0
    %3015 = vmatpush1.msra.mxu0 0.0
    %3016 = vmatprep.subr.mxu0 0.0
    %3017 = vmatpush1.msra.mxu0 0.0
    %3018 = vmatprep.subr.mxu0 0.0
    %3019 = vmatpush1.msra.mxu0 0.0
    %3020 = vmatprep.subr.mxu0 0.0
    %3021 = vmatpush1.msra.mxu0 0.0
    %3022 = vmatprep.subr.mxu0 0.0
    %3023 = vmatpush1.msra.mxu0 0.0
    %3024 = vmatprep.subr.mxu0 0.0
    %3025 = vmatpush1.msra.mxu0 0.0
    %3026 = vmatprep.subr.mxu0 0.0
    %3027 = vmatpush1.msra.mxu0 0.0
    %3028 = vmatprep.subr.mxu0 0.0
    %3029 = vmatpush1.msra.mxu0 0.0
    %3030 = vmatprep.subr.mxu0 0.0
    %3031 = vmatpush1.msra.mxu0 0.0
    %3032 = vmatprep.subr.mxu0 0.0
    %3033 = vmatpush1.msra.mxu0 0.0
    %3034 = vmatprep.subr.mxu0 0.0
    %3035 = vmatpush1.msra.mxu0 0.0
    %3036 = vmatprep.subr.mxu0 0.0
    %3037 = vmatpush1.msra.mxu0 0.0
    %3038 = vmatprep.subr.mxu0 0.0
    %3039 = vmatpush1.msra.mxu0 0.0
    %3040 = vmatprep.subr.mxu0 0.0
    %3041 = vmatpush1.msra.mxu0 0.0
    %3042 = vmatprep.subr.mxu0 0.0
    %3043 = vmatpush1.msra.mxu0 0.0
    %3044 = vmatprep.subr.mxu0 0.0
    %3045 = vmatpush1.msra.mxu0 0.0
    %3046 = vmatprep.subr.mxu0 0.0
    %3047 = vmatpush1.msra.mxu0 0.0
    %3048 = vmatprep.subr.mxu0 0.0
    %3049 = vmatpush1.msra.mxu0 0.0
    %3050 = vmatprep.subr.mxu0 0.0
    %3051 = vmatpush1.msra.mxu0 0.0
    %3052 = vmatprep.subr.mxu0 0.0
    %3053 = vmatpush1.msra.mxu0 0.0
    %3054 = vmatprep.subr.mxu0 0.0
    %3055 = vmatpush1.msra.mxu0 0.0
    %3056 = vmatprep.subr.mxu0 0.0
    %3057 = vmatpush1.msra.mxu0 0.0
    %3058 = vmatprep.subr.mxu0 0.0
    %3059 = vmatpush1.msra.mxu0 0.0
    %3060 = vmatprep.subr.mxu0 0.0
    %3061 = vmatpush1.msra.mxu0 0.0
    %3062 = vmatprep.subr.mxu0 0.0
    %3063 = vmatpush1.msra.mxu0 0.0
    %3064 = vmatprep.subr.mxu0 0.0
    %3065 = vmatpush1.msra.mxu0 0.0
    %3066 = vmatprep.subr.mxu0 0.0
    %3067 = vmatpush1.msra.mxu0 0.0
    %3068 = vmatprep.mubr.f32.mxu0 0.0
    %3069 = vmatmul.mubr.f32.gmra.mrb[0].mxu0 %v2866
    %v3070 = vpop.f32.mrb[0].mxu0
    %v3071 = vadd.f32 %v3002, %v3070
    %v3072 = vpop.f32.mrb[0].mxu0
    %3073 = vmatprep.mubr.f32.mxu0 0.0
    %3074 = vmatmul.mubr.f32.gmra.mrb[0].mxu0 %v2869
    %v3075 = vpop.f32.mrb[0].mxu0
    %v3076 = vadd.f32 %v3002, %v3075
    %v3077 = vpop.f32.mrb[0].mxu0
    %3078 = vmatprep.mubr.f32.mxu0 0.0
    %3079 = vmatmul.mubr.f32.gmra.mrb[0].mxu0 %v2872
    %v3080 = vpop.f32.mrb[0].mxu0
    %v3081 = vadd.f32 %v3002, %v3080
    %v3082 = vpop.f32.mrb[0].mxu0
    %3083 = vmatprep.mubr.f32.mxu0 0.0
    %3084 = vmatmul.mubr.f32.gmra.mrb[0].mxu0 %v2875
    %v3085 = vpop.f32.mrb[0].mxu0
    %v3086 = vadd.f32 %v3002, %v3085
    %v3087 = vpop.f32.mrb[0].mxu0
    %3088 = vmatprep.mubr.f32.mxu0 0.0
    %3089 = vmatmul.mubr.f32.gmra.mrb[0].mxu0 %v2878
    %v3090 = vpop.f32.mrb[0].mxu0
    %v3091 = vadd.f32 %v3002, %v3090
    %v3092 = vpop.f32.mrb[0].mxu0
    %3093 = vmatprep.mubr.f32.mxu0 0.0
    %3094 = vmatmul.mubr.f32.gmra.mrb[0].mxu0 %v2881
    %v3095 = vpop.f32.mrb[0].mxu0
    %v3096 = vadd.f32 %v3002, %v3095
    %v3097 = vpop.f32.mrb[0].mxu0
    %3098 = vmatprep.mubr.f32.mxu0 0.0
    %3099 = vmatmul.mubr.f32.gmra.mrb[0].mxu0 %v2884
    %v3100 = vpop.f32.mrb[0].mxu0
    %v3101 = vadd.f32 %v3002, %v3100
    %v3102 = vpop.f32.mrb[0].mxu0
    %3103 = vmatprep.mubr.f32.mxu0 0.0
    %3104 = vmatmul.mubr.f32.gmra.mrb[0].mxu0 %v2887
    %v3105 = vpop.f32.mrb[0].mxu0
    %v3106 = vadd.f32 %v3002, %v3105
    %v3107 = vpop.f32.mrb[0].mxu0
    %3108 = vdwg.mxu0
    %s3109 = scalar_lea.vmem %s6, 16
    %v3110 = vld [vmem:[%s3109] sm:$0xff]
    %s3111 = scalar_lea.vmem %s8, 2
    %v3112 = vld [vmem:[%s3111] sm:$0x1]
    %v3114 = vlaneseq
    %v3115 = vshrl.u32 %v3114, 7
    %v3116 = vsub.s32 0, %v3115
    %v3117 = vrot.slane %v3112, %v3116
    %3119 = vmatprep.subr.mxu0 0.0
    %3120 = vmatpush1.msra.mxu0 %v3110
    %3121 = vmatprep.subr.mxu0 0.0
    %3122 = vmatpush1.msra.mxu0 0.0
    %3123 = vmatprep.subr.mxu0 0.0
    %3124 = vmatpush1.msra.mxu0 0.0
    %3125 = vmatprep.subr.mxu0 0.0
    %3126 = vmatpush1.msra.mxu0 0.0
    %3127 = vmatprep.subr.mxu0 0.0
    %3128 = vmatpush1.msra.mxu0 0.0
    %3129 = vmatprep.subr.mxu0 0.0
    %3130 = vmatpush1.msra.mxu0 0.0
    %3131 = vmatprep.subr.mxu0 0.0
    %3132 = vmatpush1.msra.mxu0 0.0
    %3133 = vmatprep.subr.mxu0 0.0
    %3134 = vmatpush1.msra.mxu0 0.0
    %3135 = vmatprep.subr.mxu0 0.0
    %3136 = vmatpush1.msra.mxu0 0.0
    %3137 = vmatprep.subr.mxu0 0.0
    %3138 = vmatpush1.msra.mxu0 0.0
    %3139 = vmatprep.subr.mxu0 0.0
    %3140 = vmatpush1.msra.mxu0 0.0
    %3141 = vmatprep.subr.mxu0 0.0
    %3142 = vmatpush1.msra.mxu0 0.0
    %3143 = vmatprep.subr.mxu0 0.0
    %3144 = vmatpush1.msra.mxu0 0.0
    %3145 = vmatprep.subr.mxu0 0.0
    %3146 = vmatpush1.msra.mxu0 0.0
    %3147 = vmatprep.subr.mxu0 0.0
    %3148 = vmatpush1.msra.mxu0 0.0
    %3149 = vmatprep.subr.mxu0 0.0
    %3150 = vmatpush1.msra.mxu0 0.0
    %3151 = vmatprep.subr.mxu0 0.0
    %3152 = vmatpush1.msra.mxu0 0.0
    %3153 = vmatprep.subr.mxu0 0.0
    %3154 = vmatpush1.msra.mxu0 0.0
    %3155 = vmatprep.subr.mxu0 0.0
    %3156 = vmatpush1.msra.mxu0 0.0
    %3157 = vmatprep.subr.mxu0 0.0
    %3158 = vmatpush1.msra.mxu0 0.0
    %3159 = vmatprep.subr.mxu0 0.0
    %3160 = vmatpush1.msra.mxu0 0.0
    %3161 = vmatprep.subr.mxu0 0.0
    %3162 = vmatpush1.msra.mxu0 0.0
    %3163 = vmatprep.subr.mxu0 0.0
    %3164 = vmatpush1.msra.mxu0 0.0
    %3165 = vmatprep.subr.mxu0 0.0
    %3166 = vmatpush1.msra.mxu0 0.0
    %3167 = vmatprep.subr.mxu0 0.0
    %3168 = vmatpush1.msra.mxu0 0.0
    %3169 = vmatprep.subr.mxu0 0.0
    %3170 = vmatpush1.msra.mxu0 0.0
    %3171 = vmatprep.subr.mxu0 0.0
    %3172 = vmatpush1.msra.mxu0 0.0
    %3173 = vmatprep.subr.mxu0 0.0
    %3174 = vmatpush1.msra.mxu0 0.0
    %3175 = vmatprep.subr.mxu0 0.0
    %3176 = vmatpush1.msra.mxu0 0.0
    %3177 = vmatprep.subr.mxu0 0.0
    %3178 = vmatpush1.msra.mxu0 0.0
    %3179 = vmatprep.subr.mxu0 0.0
    %3180 = vmatpush1.msra.mxu0 0.0
    %3181 = vmatprep.subr.mxu0 0.0
    %3182 = vmatpush1.msra.mxu0 0.0
    %3183 = vmatprep.mubr.f32.mxu0 0.0
    %3184 = vmatmul.mubr.f32.gmra.mrb[0].mxu0 %v2866
    %v3185 = vpop.f32.mrb[0].mxu0
    %v3186 = vadd.f32 %v3117, %v3185
    %v3187 = vpop.f32.mrb[0].mxu0
    %3188 = vmatprep.mubr.f32.mxu0 0.0
    %3189 = vmatmul.mubr.f32.gmra.mrb[0].mxu0 %v2869
    %v3190 = vpop.f32.mrb[0].mxu0
    %v3191 = vadd.f32 %v3117, %v3190
    %v3192 = vpop.f32.mrb[0].mxu0
    %3193 = vmatprep.mubr.f32.mxu0 0.0
    %3194 = vmatmul.mubr.f32.gmra.mrb[0].mxu0 %v2872
    %v3195 = vpop.f32.mrb[0].mxu0
    %v3196 = vadd.f32 %v3117, %v3195
    %v3197 = vpop.f32.mrb[0].mxu0
    %3198 = vmatprep.mubr.f32.mxu0 0.0
    %3199 = vmatmul.mubr.f32.gmra.mrb[0].mxu0 %v2875
    %v3200 = vpop.f32.mrb[0].mxu0
    %v3201 = vadd.f32 %v3117, %v3200
    %v3202 = vpop.f32.mrb[0].mxu0
    %3203 = vmatprep.mubr.f32.mxu0 0.0
    %3204 = vmatmul.mubr.f32.gmra.mrb[0].mxu0 %v2878
    %v3205 = vpop.f32.mrb[0].mxu0
    %v3206 = vadd.f32 %v3117, %v3205
    %v3207 = vpop.f32.mrb[0].mxu0
    %3208 = vmatprep.mubr.f32.mxu0 0.0
    %3209 = vmatmul.mubr.f32.gmra.mrb[0].mxu0 %v2881
    %v3210 = vpop.f32.mrb[0].mxu0
    %v3211 = vadd.f32 %v3117, %v3210
    %v3212 = vpop.f32.mrb[0].mxu0
    %3213 = vmatprep.mubr.f32.mxu0 0.0
    %3214 = vmatmul.mubr.f32.gmra.mrb[0].mxu0 %v2884
    %v3215 = vpop.f32.mrb[0].mxu0
    %v3216 = vadd.f32 %v3117, %v3215
    %v3217 = vpop.f32.mrb[0].mxu0
    %3218 = vmatprep.mubr.f32.mxu0 0.0
    %3219 = vmatmul.mubr.f32.gmra.mrb[0].mxu0 %v2887
    %v3220 = vpop.f32.mrb[0].mxu0
    %v3221 = vadd.f32 %v3117, %v3220
    %v3222 = vpop.f32.mrb[0].mxu0
    %3223 = vdwg.mxu0
    %v3224 = vld [vmem:[%s7] sm:$0xff]
    %v3225 = vld [vmem:[%s7 + $0x8] sm:$0xff]
    %v3226 = vld [vmem:[%s7 + $0x10] sm:$0xff]
    %v3227 = vld [vmem:[%s7 + $0x18] sm:$0xff]
    %s3228 = scalar_lea.vmem %s7, 32
    %v3229 = vld [vmem:[%s3228] sm:$0xff]
    %v3230 = vld [vmem:[%s3228 + $0x8] sm:$0xff]
    %v3231 = vld [vmem:[%s3228 + $0x10] sm:$0xff]
    %v3232 = vld [vmem:[%s3228 + $0x18] sm:$0xff]
    %s3233 = scalar_lea.vmem %s7, 64
    %v3234 = vld [vmem:[%s3233] sm:$0xff]
    %v3235 = vld [vmem:[%s3233 + $0x8] sm:$0xff]
    %v3236 = vld [vmem:[%s3233 + $0x10] sm:$0xff]
    %v3237 = vld [vmem:[%s3233 + $0x18] sm:$0xff]
    %v3238 = vld [vmem:[%s9] sm:$0x1]
    %v3240 = vsel %vm501, %v2847, 0
    %3242 = vmatprep.subr.mxu0 0.0
    %3243 = vmatpush1.msra.mxu0 %v3224
    %3244 = vmatprep.subr.mxu0 0.0
    %3245 = vmatpush1.msra.mxu0 %v3225
    %3246 = vmatprep.subr.mxu0 0.0
    %3247 = vmatpush1.msra.mxu0 %v3226
    %3248 = vmatprep.subr.mxu0 0.0
    %3249 = vmatpush1.msra.mxu0 %v3227
    %3250 = vmatprep.subr.mxu0 0.0
    %3251 = vmatpush1.msra.mxu0 0.0
    %3252 = vmatprep.subr.mxu0 0.0
    %3253 = vmatpush1.msra.mxu0 0.0
    %3254 = vmatprep.subr.mxu0 0.0
    %3255 = vmatpush1.msra.mxu0 0.0
    %3256 = vmatprep.subr.mxu0 0.0
    %3257 = vmatpush1.msra.mxu0 0.0
    %3258 = vmatprep.subr.mxu0 0.0
    %3259 = vmatpush1.msra.mxu0 0.0
    %3260 = vmatprep.subr.mxu0 0.0
    %3261 = vmatpush1.msra.mxu0 0.0
    %3262 = vmatprep.subr.mxu0 0.0
    %3263 = vmatpush1.msra.mxu0 0.0
    %3264 = vmatprep.subr.mxu0 0.0
    %3265 = vmatpush1.msra.mxu0 0.0
    %3266 = vmatprep.subr.mxu0 0.0
    %3267 = vmatpush1.msra.mxu0 0.0
    %3268 = vmatprep.subr.mxu0 0.0
    %3269 = vmatpush1.msra.mxu0 0.0
    %3270 = vmatprep.subr.mxu0 0.0
    %3271 = vmatpush1.msra.mxu0 0.0
    %3272 = vmatprep.subr.mxu0 0.0
    %3273 = vmatpush1.msra.mxu0 0.0
    %3274 = vmatprep.subr.mxu0 0.0
    %3275 = vmatpush1.msra.mxu0 0.0
    %3276 = vmatprep.subr.mxu0 0.0
    %3277 = vmatpush1.msra.mxu0 0.0
    %3278 = vmatprep.subr.mxu0 0.0
    %3279 = vmatpush1.msra.mxu0 0.0
    %3280 = vmatprep.subr.mxu0 0.0
    %3281 = vmatpush1.msra.mxu0 0.0
    %3282 = vmatprep.subr.mxu0 0.0
    %3283 = vmatpush1.msra.mxu0 0.0
    %3284 = vmatprep.subr.mxu0 0.0
    %3285 = vmatpush1.msra.mxu0 0.0
    %3286 = vmatprep.subr.mxu0 0.0
    %3287 = vmatpush1.msra.mxu0 0.0
    %3288 = vmatprep.subr.mxu0 0.0
    %3289 = vmatpush1.msra.mxu0 0.0
    %3290 = vmatprep.subr.mxu0 0.0
    %3291 = vmatpush1.msra.mxu0 0.0
    %3292 = vmatprep.subr.mxu0 0.0
    %3293 = vmatpush1.msra.mxu0 0.0
    %3294 = vmatprep.subr.mxu0 0.0
    %3295 = vmatpush1.msra.mxu0 0.0
    %3296 = vmatprep.subr.mxu0 0.0
    %3297 = vmatpush1.msra.mxu0 0.0
    %3298 = vmatprep.subr.mxu0 0.0
    %3299 = vmatpush1.msra.mxu0 0.0
    %3300 = vmatprep.subr.mxu0 0.0
    %3301 = vmatpush1.msra.mxu0 0.0
    %3302 = vmatprep.subr.mxu0 0.0
    %3303 = vmatpush1.msra.mxu0 0.0
    %3304 = vmatprep.subr.mxu0 0.0
    %3305 = vmatpush1.msra.mxu0 0.0
    %3306 = vmatprep.mubr.f32.mxu0 0.0
    %3307 = vmatmul.mubr.f32.gmra.mrb[0].mxu0 %v3240
    %v3308 = vpop.f32.mrb[0].mxu0
    %v3309 = vadd.f32 0.0, %v3308
    %v3310 = vpop.f32.mrb[0].mxu0
    %3311 = vdwg.mxu0
    %3312 = vmatprep.subr.mxu0 0.0
    %3313 = vmatpush1.msra.mxu0 %v3229
    %3314 = vmatprep.subr.mxu0 0.0
    %3315 = vmatpush1.msra.mxu0 %v3230
    %3316 = vmatprep.subr.mxu0 0.0
    %3317 = vmatpush1.msra.mxu0 %v3231
    %3318 = vmatprep.subr.mxu0 0.0
    %3319 = vmatpush1.msra.mxu0 %v3232
    %3320 = vmatprep.subr.mxu0 0.0
    %3321 = vmatpush1.msra.mxu0 0.0
    %3322 = vmatprep.subr.mxu0 0.0
    %3323 = vmatpush1.msra.mxu0 0.0
    %3324 = vmatprep.subr.mxu0 0.0
    %3325 = vmatpush1.msra.mxu0 0.0
    %3326 = vmatprep.subr.mxu0 0.0
    %3327 = vmatpush1.msra.mxu0 0.0
    %3328 = vmatprep.subr.mxu0 0.0
    %3329 = vmatpush1.msra.mxu0 0.0
    %3330 = vmatprep.subr.mxu0 0.0
    %3331 = vmatpush1.msra.mxu0 0.0
    %3332 = vmatprep.subr.mxu0 0.0
    %3333 = vmatpush1.msra.mxu0 0.0
    %3334 = vmatprep.subr.mxu0 0.0
    %3335 = vmatpush1.msra.mxu0 0.0
    %3336 = vmatprep.subr.mxu0 0.0
    %3337 = vmatpush1.msra.mxu0 0.0
    %3338 = vmatprep.subr.mxu0 0.0
    %3339 = vmatpush1.msra.mxu0 0.0
    %3340 = vmatprep.subr.mxu0 0.0
    %3341 = vmatpush1.msra.mxu0 0.0
    %3342 = vmatprep.subr.mxu0 0.0
    %3343 = vmatpush1.msra.mxu0 0.0
    %3344 = vmatprep.subr.mxu0 0.0
    %3345 = vmatpush1.msra.mxu0 0.0
    %3346 = vmatprep.subr.mxu0 0.0
    %3347 = vmatpush1.msra.mxu0 0.0
    %3348 = vmatprep.subr.mxu0 0.0
    %3349 = vmatpush1.msra.mxu0 0.0
    %3350 = vmatprep.subr.mxu0 0.0
    %3351 = vmatpush1.msra.mxu0 0.0
    %3352 = vmatprep.subr.mxu0 0.0
    %3353 = vmatpush1.msra.mxu0 0.0
    %3354 = vmatprep.subr.mxu0 0.0
    %3355 = vmatpush1.msra.mxu0 0.0
    %3356 = vmatprep.subr.mxu0 0.0
    %3357 = vmatpush1.msra.mxu0 0.0
    %3358 = vmatprep.subr.mxu0 0.0
    %3359 = vmatpush1.msra.mxu0 0.0
    %3360 = vmatprep.subr.mxu0 0.0
    %3361 = vmatpush1.msra.mxu0 0.0
    %3362 = vmatprep.subr.mxu0 0.0
    %3363 = vmatpush1.msra.mxu0 0.0
    %3364 = vmatprep.subr.mxu0 0.0
    %3365 = vmatpush1.msra.mxu0 0.0
    %3366 = vmatprep.subr.mxu0 0.0
    %3367 = vmatpush1.msra.mxu0 0.0
    %3368 = vmatprep.subr.mxu0 0.0
    %3369 = vmatpush1.msra.mxu0 0.0
    %3370 = vmatprep.subr.mxu0 0.0
    %3371 = vmatpush1.msra.mxu0 0.0
    %3372 = vmatprep.subr.mxu0 0.0
    %3373 = vmatpush1.msra.mxu0 0.0
    %3374 = vmatprep.subr.mxu0 0.0
    %3375 = vmatpush1.msra.mxu0 0.0
    %3376 = vmatprep.mubr.f32.mxu0 0.0
    %3377 = vmatmul.mubr.f32.gmra.mrb[0].mxu0 %v3240
    %v3378 = vpop.f32.mrb[0].mxu0
    %v3379 = vadd.f32 0.0, %v3378
    %v3380 = vpop.f32.mrb[0].mxu0
    %3381 = vdwg.mxu0
    %v3383 = vlaneseq
    %v3384 = vshrl.u32 %v3383, 7
    %v3385 = vsub.s32 0, %v3384
    %v3386 = vrot.slane %v3238, %v3385
    %3388 = vmatprep.subr.mxu0 0.0
    %3389 = vmatpush1.msra.mxu0 %v3234
    %3390 = vmatprep.subr.mxu0 0.0
    %3391 = vmatpush1.msra.mxu0 %v3235
    %3392 = vmatprep.subr.mxu0 0.0
    %3393 = vmatpush1.msra.mxu0 %v3236
    %3394 = vmatprep.subr.mxu0 0.0
    %3395 = vmatpush1.msra.mxu0 %v3237
    %3396 = vmatprep.subr.mxu0 0.0
    %3397 = vmatpush1.msra.mxu0 0.0
    %3398 = vmatprep.subr.mxu0 0.0
    %3399 = vmatpush1.msra.mxu0 0.0
    %3400 = vmatprep.subr.mxu0 0.0
    %3401 = vmatpush1.msra.mxu0 0.0
    %3402 = vmatprep.subr.mxu0 0.0
    %3403 = vmatpush1.msra.mxu0 0.0
    %3404 = vmatprep.subr.mxu0 0.0
    %3405 = vmatpush1.msra.mxu0 0.0
    %3406 = vmatprep.subr.mxu0 0.0
    %3407 = vmatpush1.msra.mxu0 0.0
    %3408 = vmatprep.subr.mxu0 0.0
    %3409 = vmatpush1.msra.mxu0 0.0
    %3410 = vmatprep.subr.mxu0 0.0
    %3411 = vmatpush1.msra.mxu0 0.0
    %3412 = vmatprep.subr.mxu0 0.0
    %3413 = vmatpush1.msra.mxu0 0.0
    %3414 = vmatprep.subr.mxu0 0.0
    %3415 = vmatpush1.msra.mxu0 0.0
    %3416 = vmatprep.subr.mxu0 0.0
    %3417 = vmatpush1.msra.mxu0 0.0
    %3418 = vmatprep.subr.mxu0 0.0
    %3419 = vmatpush1.msra.mxu0 0.0
    %3420 = vmatprep.subr.mxu0 0.0
    %3421 = vmatpush1.msra.mxu0 0.0
    %3422 = vmatprep.subr.mxu0 0.0
    %3423 = vmatpush1.msra.mxu0 0.0
    %3424 = vmatprep.subr.mxu0 0.0
    %3425 = vmatpush1.msra.mxu0 0.0
    %3426 = vmatprep.subr.mxu0 0.0
    %3427 = vmatpush1.msra.mxu0 0.0
    %3428 = vmatprep.subr.mxu0 0.0
    %3429 = vmatpush1.msra.mxu0 0.0
    %3430 = vmatprep.subr.mxu0 0.0
    %3431 = vmatpush1.msra.mxu0 0.0
    %3432 = vmatprep.subr.mxu0 0.0
    %3433 = vmatpush1.msra.mxu0 0.0
    %3434 = vmatprep.subr.mxu0 0.0
    %3435 = vmatpush1.msra.mxu0 0.0
    %3436 = vmatprep.subr.mxu0 0.0
    %3437 = vmatpush1.msra.mxu0 0.0
    %3438 = vmatprep.subr.mxu0 0.0
    %3439 = vmatpush1.msra.mxu0 0.0
    %3440 = vmatprep.subr.mxu0 0.0
    %3441 = vmatpush1.msra.mxu0 0.0
    %3442 = vmatprep.subr.mxu0 0.0
    %3443 = vmatpush1.msra.mxu0 0.0
    %3444 = vmatprep.subr.mxu0 0.0
    %3445 = vmatpush1.msra.mxu0 0.0
    %3446 = vmatprep.subr.mxu0 0.0
    %3447 = vmatpush1.msra.mxu0 0.0
    %3448 = vmatprep.subr.mxu0 0.0
    %3449 = vmatpush1.msra.mxu0 0.0
    %3450 = vmatprep.subr.mxu0 0.0
    %3451 = vmatpush1.msra.mxu0 0.0
    %3452 = vmatprep.mubr.f32.mxu0 0.0
    %3453 = vmatmul.mubr.f32.gmra.mrb[0].mxu0 %v3240
    %v3454 = vpop.f32.mrb[0].mxu0
    %v3455 = vadd.f32 %v3386, %v3454
    %v3456 = vpop.f32.mrb[0].mxu0
    %3457 = vdwg.mxu0
    %v3458 = vadd.f32 %v2956, %v3309
    %v3459 = vxor.u32 %v3458, 2147483648
    %v3460 = vmul.f32 %v3459, 1.442695
    %v3461 = vpow.pop %v3460
    %v3462 = vadd.f32 %v3461, 1.0
    %v3463 = vrcp.pop %v3462
    %v3464 = vmul.f32 1.0, %v3463
    %v3465 = vadd.f32 %v3071, %v3379
    %v3466 = vxor.u32 %v3465, 2147483648
    %v3467 = vmul.f32 %v3466, 1.442695
    %v3468 = vpow.pop %v3467
    %v3469 = vadd.f32 %v3468, 1.0
    %v3470 = vrcp.pop %v3469
    %v3471 = vmul.f32 1.0, %v3470
    %v3472 = vmul.f32 %v3464, %v3455
    %v3473 = vadd.f32 %v3186, %v3472
    %v3474 = vtanh.pop %v3473
    %v3475 = vsub.f32 1.0, %v3471
    %v3476 = vmul.f32 %v3475, %v3474
    %v3477 = vmul.f32 %v3471, %v2847
    %v3478 = vadd.f32 %v3476, %v3477
    %v3480 = vsel %vm501, %v3478, 0
    %3482 = vmatprep.subr.mxu0 0.0
    %3483 = vmatpush1.msra.mxu0 %v3224
    %3484 = vmatprep.subr.mxu0 0.0
    %3485 = vmatpush1.msra.mxu0 %v3225
    %3486 = vmatprep.subr.mxu0 0.0
    %3487 = vmatpush1.msra.mxu0 %v3226
    %3488 = vmatprep.subr.mxu0 0.0
    %3489 = vmatpush1.msra.mxu0 %v3227
    %3490 = vmatprep.subr.mxu0 0.0
    %3491 = vmatpush1.msra.mxu0 0.0
    %3492 = vmatprep.subr.mxu0 0.0
    %3493 = vmatpush1.msra.mxu0 0.0
    %3494 = vmatprep.subr.mxu0 0.0
    %3495 = vmatpush1.msra.mxu0 0.0
    %3496 = vmatprep.subr.mxu0 0.0
    %3497 = vmatpush1.msra.mxu0 0.0
    %3498 = vmatprep.subr.mxu0 0.0
    %3499 = vmatpush1.msra.mxu0 0.0
    %3500 = vmatprep.subr.mxu0 0.0
    %3501 = vmatpush1.msra.mxu0 0.0
    %3502 = vmatprep.subr.mxu0 0.0
    %3503 = vmatpush1.msra.mxu0 0.0
    %3504 = vmatprep.subr.mxu0 0.0
    %3505 = vmatpush1.msra.mxu0 0.0
    %3506 = vmatprep.subr.mxu0 0.0
    %3507 = vmatpush1.msra.mxu0 0.0
    %3508 = vmatprep.subr.mxu0 0.0
    %3509 = vmatpush1.msra.mxu0 0.0
    %3510 = vmatprep.subr.mxu0 0.0
    %3511 = vmatpush1.msra.mxu0 0.0
    %3512 = vmatprep.subr.mxu0 0.0
    %3513 = vmatpush1.msra.mxu0 0.0
    %3514 = vmatprep.subr.mxu0 0.0
    %3515 = vmatpush1.msra.mxu0 0.0
    %3516 = vmatprep.subr.mxu0 0.0
    %3517 = vmatpush1.msra.mxu0 0.0
    %3518 = vmatprep.subr.mxu0 0.0
    %3519 = vmatpush1.msra.mxu0 0.0
    %3520 = vmatprep.subr.mxu0 0.0
    %3521 = vmatpush1.msra.mxu0 0.0
    %3522 = vmatprep.subr.mxu0 0.0
    %3523 = vmatpush1.msra.mxu0 0.0
    %3524 = vmatprep.subr.mxu0 0.0
    %3525 = vmatpush1.msra.mxu0 0.0
    %3526 = vmatprep.subr.mxu0 0.0
    %3527 = vmatpush1.msra.mxu0 0.0
    %3528 = vmatprep.subr.mxu0 0.0
    %3529 = vmatpush1.msra.mxu0 0.0
    %3530 = vmatprep.subr.mxu0 0.0
    %3531 = vmatpush1.msra.mxu0 0.0
    %3532 = vmatprep.subr.mxu0 0.0
    %3533 = vmatpush1.msra.mxu0 0.0
    %3534 = vmatprep.subr.mxu0 0.0
    %3535 = vmatpush1.msra.mxu0 0.0
    %3536 = vmatprep.subr.mxu0 0.0
    %3537 = vmatpush1.msra.mxu0 0.0
    %3538 = vmatprep.subr.mxu0 0.0
    %3539 = vmatpush1.msra.mxu0 0.0
    %3540 = vmatprep.subr.mxu0 0.0
    %3541 = vmatpush1.msra.mxu0 0.0
    %3542 = vmatprep.subr.mxu0 0.0
    %3543 = vmatpush1.msra.mxu0 0.0
    %3544 = vmatprep.subr.mxu0 0.0
    %3545 = vmatpush1.msra.mxu0 0.0
    %3546 = vmatprep.mubr.f32.mxu0 0.0
    %3547 = vmatmul.mubr.f32.gmra.mrb[0].mxu0 %v3480
    %v3548 = vpop.f32.mrb[0].mxu0
    %v3549 = vadd.f32 0.0, %v3548
    %v3550 = vpop.f32.mrb[0].mxu0
    %3551 = vdwg.mxu0
    %3552 = vmatprep.subr.mxu0 0.0
    %3553 = vmatpush1.msra.mxu0 %v3229
    %3554 = vmatprep.subr.mxu0 0.0
    %3555 = vmatpush1.msra.mxu0 %v3230
    %3556 = vmatprep.subr.mxu0 0.0
    %3557 = vmatpush1.msra.mxu0 %v3231
    %3558 = vmatprep.subr.mxu0 0.0
    %3559 = vmatpush1.msra.mxu0 %v3232
    %3560 = vmatprep.subr.mxu0 0.0
    %3561 = vmatpush1.msra.mxu0 0.0
    %3562 = vmatprep.subr.mxu0 0.0
    %3563 = vmatpush1.msra.mxu0 0.0
    %3564 = vmatprep.subr.mxu0 0.0
    %3565 = vmatpush1.msra.mxu0 0.0
    %3566 = vmatprep.subr.mxu0 0.0
    %3567 = vmatpush1.msra.mxu0 0.0
    %3568 = vmatprep.subr.mxu0 0.0
    %3569 = vmatpush1.msra.mxu0 0.0
    %3570 = vmatprep.subr.mxu0 0.0
    %3571 = vmatpush1.msra.mxu0 0.0
    %3572 = vmatprep.subr.mxu0 0.0
    %3573 = vmatpush1.msra.mxu0 0.0
    %3574 = vmatprep.subr.mxu0 0.0
    %3575 = vmatpush1.msra.mxu0 0.0
    %3576 = vmatprep.subr.mxu0 0.0
    %3577 = vmatpush1.msra.mxu0 0.0
    %3578 = vmatprep.subr.mxu0 0.0
    %3579 = vmatpush1.msra.mxu0 0.0
    %3580 = vmatprep.subr.mxu0 0.0
    %3581 = vmatpush1.msra.mxu0 0.0
    %3582 = vmatprep.subr.mxu0 0.0
    %3583 = vmatpush1.msra.mxu0 0.0
    %3584 = vmatprep.subr.mxu0 0.0
    %3585 = vmatpush1.msra.mxu0 0.0
    %3586 = vmatprep.subr.mxu0 0.0
    %3587 = vmatpush1.msra.mxu0 0.0
    %3588 = vmatprep.subr.mxu0 0.0
    %3589 = vmatpush1.msra.mxu0 0.0
    %3590 = vmatprep.subr.mxu0 0.0
    %3591 = vmatpush1.msra.mxu0 0.0
    %3592 = vmatprep.subr.mxu0 0.0
    %3593 = vmatpush1.msra.mxu0 0.0
    %3594 = vmatprep.subr.mxu0 0.0
    %3595 = vmatpush1.msra.mxu0 0.0
    %3596 = vmatprep.subr.mxu0 0.0
    %3597 = vmatpush1.msra.mxu0 0.0
    %3598 = vmatprep.subr.mxu0 0.0
    %3599 = vmatpush1.msra.mxu0 0.0
    %3600 = vmatprep.subr.mxu0 0.0
    %3601 = vmatpush1.msra.mxu0 0.0
    %3602 = vmatprep.subr.mxu0 0.0
    %3603 = vmatpush1.msra.mxu0 0.0
    %3604 = vmatprep.subr.mxu0 0.0
    %3605 = vmatpush1.msra.mxu0 0.0
    %3606 = vmatprep.subr.mxu0 0.0
    %3607 = vmatpush1.msra.mxu0 0.0
    %3608 = vmatprep.subr.mxu0 0.0
    %3609 = vmatpush1.msra.mxu0 0.0
    %3610 = vmatprep.subr.mxu0 0.0
    %3611 = vmatpush1.msra.mxu0 0.0
    %3612 = vmatprep.subr.mxu0 0.0
    %3613 = vmatpush1.msra.mxu0 0.0
    %3614 = vmatprep.subr.mxu0 0.0
    %3615 = vmatpush1.msra.mxu0 0.0
    %3616 = vmatprep.mubr.f32.mxu0 0.0
    %3617 = vmatmul.mubr.f32.gmra.mrb[0].mxu0 %v3480
    %v3618 = vpop.f32.mrb[0].mxu0
    %v3619 = vadd.f32 0.0, %v3618
    %v3620 = vpop.f32.mrb[0].mxu0
    %3621 = vdwg.mxu0
    %3622 = vmatprep.subr.mxu0 0.0
    %3623 = vmatpush1.msra.mxu0 %v3234
    %3624 = vmatprep.subr.mxu0 0.0
    %3625 = vmatpush1.msra.mxu0 %v3235
    %3626 = vmatprep.subr.mxu0 0.0
    %3627 = vmatpush1.msra.mxu0 %v3236
    %3628 = vmatprep.subr.mxu0 0.0
    %3629 = vmatpush1.msra.mxu0 %v3237
    %3630 = vmatprep.subr.mxu0 0.0
    %3631 = vmatpush1.msra.mxu0 0.0
    %3632 = vmatprep.subr.mxu0 0.0
    %3633 = vmatpush1.msra.mxu0 0.0
    %3634 = vmatprep.subr.mxu0 0.0
    %3635 = vmatpush1.msra.mxu0 0.0
    %3636 = vmatprep.subr.mxu0 0.0
    %3637 = vmatpush1.msra.mxu0 0.0
    %3638 = vmatprep.subr.mxu0 0.0
    %3639 = vmatpush1.msra.mxu0 0.0
    %3640 = vmatprep.subr.mxu0 0.0
    %3641 = vmatpush1.msra.mxu0 0.0
    %3642 = vmatprep.subr.mxu0 0.0
    %3643 = vmatpush1.msra.mxu0 0.0
    %3644 = vmatprep.subr.mxu0 0.0
    %3645 = vmatpush1.msra.mxu0 0.0
    %3646 = vmatprep.subr.mxu0 0.0
    %3647 = vmatpush1.msra.mxu0 0.0
    %3648 = vmatprep.subr.mxu0 0.0
    %3649 = vmatpush1.msra.mxu0 0.0
    %3650 = vmatprep.subr.mxu0 0.0
    %3651 = vmatpush1.msra.mxu0 0.0
    %3652 = vmatprep.subr.mxu0 0.0
    %3653 = vmatpush1.msra.mxu0 0.0
    %3654 = vmatprep.subr.mxu0 0.0
    %3655 = vmatpush1.msra.mxu0 0.0
    %3656 = vmatprep.subr.mxu0 0.0
    %3657 = vmatpush1.msra.mxu0 0.0
    %3658 = vmatprep.subr.mxu0 0.0
    %3659 = vmatpush1.msra.mxu0 0.0
    %3660 = vmatprep.subr.mxu0 0.0
    %3661 = vmatpush1.msra.mxu0 0.0
    %3662 = vmatprep.subr.mxu0 0.0
    %3663 = vmatpush1.msra.mxu0 0.0
    %3664 = vmatprep.subr.mxu0 0.0
    %3665 = vmatpush1.msra.mxu0 0.0
    %3666 = vmatprep.subr.mxu0 0.0
    %3667 = vmatpush1.msra.mxu0 0.0
    %3668 = vmatprep.subr.mxu0 0.0
    %3669 = vmatpush1.msra.mxu0 0.0
    %3670 = vmatprep.subr.mxu0 0.0
    %3671 = vmatpush1.msra.mxu0 0.0
    %3672 = vmatprep.subr.mxu0 0.0
    %3673 = vmatpush1.msra.mxu0 0.0
    %3674 = vmatprep.subr.mxu0 0.0
    %3675 = vmatpush1.msra.mxu0 0.0
    %3676 = vmatprep.subr.mxu0 0.0
    %3677 = vmatpush1.msra.mxu0 0.0
    %3678 = vmatprep.subr.mxu0 0.0
    %3679 = vmatpush1.msra.mxu0 0.0
    %3680 = vmatprep.subr.mxu0 0.0
    %3681 = vmatpush1.msra.mxu0 0.0
    %3682 = vmatprep.subr.mxu0 0.0
    %3683 = vmatpush1.msra.mxu0 0.0
    %3684 = vmatprep.subr.mxu0 0.0
    %3685 = vmatpush1.msra.mxu0 0.0
    %3686 = vmatprep.mubr.f32.mxu0 0.0
    %3687 = vmatmul.mubr.f32.gmra.mrb[0].mxu0 %v3480
    %v3688 = vpop.f32.mrb[0].mxu0
    %v3689 = vadd.f32 %v3386, %v3688
    %v3690 = vpop.f32.mrb[0].mxu0
    %3691 = vdwg.mxu0
    %v3692 = vadd.f32 %v2961, %v3549
    %v3693 = vxor.u32 %v3692, 2147483648
    %v3694 = vmul.f32 %v3693, 1.442695
    %v3695 = vpow.pop %v3694
    %v3696 = vadd.f32 %v3695, 1.0
    %v3697 = vrcp.pop %v3696
    %v3698 = vmul.f32 1.0, %v3697
    %v3699 = vadd.f32 %v3076, %v3619
    %v3700 = vxor.u32 %v3699, 2147483648
    %v3701 = vmul.f32 %v3700, 1.442695
    %v3702 = vpow.pop %v3701
    %v3703 = vadd.f32 %v3702, 1.0
    %v3704 = vrcp.pop %v3703
    %v3705 = vmul.f32 1.0, %v3704
    %v3706 = vmul.f32 %v3698, %v3689
    %v3707 = vadd.f32 %v3191, %v3706
    %v3708 = vtanh.pop %v3707
    %v3709 = vsub.f32 1.0, %v3705
    %v3710 = vmul.f32 %v3709, %v3708
    %v3711 = vmul.f32 %v3705, %v3478
    %v3712 = vadd.f32 %v3710, %v3711
    %v3714 = vsel %vm501, %v3712, 0
    %3716 = vmatprep.subr.mxu0 0.0
    %3717 = vmatpush1.msra.mxu0 %v3224
    %3718 = vmatprep.subr.mxu0 0.0
    %3719 = vmatpush1.msra.mxu0 %v3225
    %3720 = vmatprep.subr.mxu0 0.0
    %3721 = vmatpush1.msra.mxu0 %v3226
    %3722 = vmatprep.subr.mxu0 0.0
    %3723 = vmatpush1.msra.mxu0 %v3227
    %3724 = vmatprep.subr.mxu0 0.0
    %3725 = vmatpush1.msra.mxu0 0.0
    %3726 = vmatprep.subr.mxu0 0.0
    %3727 = vmatpush1.msra.mxu0 0.0
    %3728 = vmatprep.subr.mxu0 0.0
    %3729 = vmatpush1.msra.mxu0 0.0
    %3730 = vmatprep.subr.mxu0 0.0
    %3731 = vmatpush1.msra.mxu0 0.0
    %3732 = vmatprep.subr.mxu0 0.0
    %3733 = vmatpush1.msra.mxu0 0.0
    %3734 = vmatprep.subr.mxu0 0.0
    %3735 = vmatpush1.msra.mxu0 0.0
    %3736 = vmatprep.subr.mxu0 0.0
    %3737 = vmatpush1.msra.mxu0 0.0
    %3738 = vmatprep.subr.mxu0 0.0
    %3739 = vmatpush1.msra.mxu0 0.0
    %3740 = vmatprep.subr.mxu0 0.0
    %3741 = vmatpush1.msra.mxu0 0.0
    %3742 = vmatprep.subr.mxu0 0.0
    %3743 = vmatpush1.msra.mxu0 0.0
    %3744 = vmatprep.subr.mxu0 0.0
    %3745 = vmatpush1.msra.mxu0 0.0
    %3746 = vmatprep.subr.mxu0 0.0
    %3747 = vmatpush1.msra.mxu0 0.0
    %3748 = vmatprep.subr.mxu0 0.0
    %3749 = vmatpush1.msra.mxu0 0.0
    %3750 = vmatprep.subr.mxu0 0.0
    %3751 = vmatpush1.msra.mxu0 0.0
    %3752 = vmatprep.subr.mxu0 0.0
    %3753 = vmatpush1.msra.mxu0 0.0
    %3754 = vmatprep.subr.mxu0 0.0
    %3755 = vmatpush1.msra.mxu0 0.0
    %3756 = vmatprep.subr.mxu0 0.0
    %3757 = vmatpush1.msra.mxu0 0.0
    %3758 = vmatprep.subr.mxu0 0.0
    %3759 = vmatpush1.msra.mxu0 0.0
    %3760 = vmatprep.subr.mxu0 0.0
    %3761 = vmatpush1.msra.mxu0 0.0
    %3762 = vmatprep.subr.mxu0 0.0
    %3763 = vmatpush1.msra.mxu0 0.0
    %3764 = vmatprep.subr.mxu0 0.0
    %3765 = vmatpush1.msra.mxu0 0.0
    %3766 = vmatprep.subr.mxu0 0.0
    %3767 = vmatpush1.msra.mxu0 0.0
    %3768 = vmatprep.subr.mxu0 0.0
    %3769 = vmatpush1.msra.mxu0 0.0
    %3770 = vmatprep.subr.mxu0 0.0
    %3771 = vmatpush1.msra.mxu0 0.0
    %3772 = vmatprep.subr.mxu0 0.0
    %3773 = vmatpush1.msra.mxu0 0.0
    %3774 = vmatprep.subr.mxu0 0.0
    %3775 = vmatpush1.msra.mxu0 0.0
    %3776 = vmatprep.subr.mxu0 0.0
    %3777 = vmatpush1.msra.mxu0 0.0
    %3778 = vmatprep.subr.mxu0 0.0
    %3779 = vmatpush1.msra.mxu0 0.0
    %3780 = vmatprep.mubr.f32.mxu0 0.0
    %3781 = vmatmul.mubr.f32.gmra.mrb[0].mxu0 %v3714
    %v3782 = vpop.f32.mrb[0].mxu0
    %v3783 = vadd.f32 0.0, %v3782
    %v3784 = vpop.f32.mrb[0].mxu0
    %3785 = vdwg.mxu0
    %3786 = vmatprep.subr.mxu0 0.0
    %3787 = vmatpush1.msra.mxu0 %v3229
    %3788 = vmatprep.subr.mxu0 0.0
    %3789 = vmatpush1.msra.mxu0 %v3230
    %3790 = vmatprep.subr.mxu0 0.0
    %3791 = vmatpush1.msra.mxu0 %v3231
    %3792 = vmatprep.subr.mxu0 0.0
    %3793 = vmatpush1.msra.mxu0 %v3232
    %3794 = vmatprep.subr.mxu0 0.0
    %3795 = vmatpush1.msra.mxu0 0.0
    %3796 = vmatprep.subr.mxu0 0.0
    %3797 = vmatpush1.msra.mxu0 0.0
    %3798 = vmatprep.subr.mxu0 0.0
    %3799 = vmatpush1.msra.mxu0 0.0
    %3800 = vmatprep.subr.mxu0 0.0
    %3801 = vmatpush1.msra.mxu0 0.0
    %3802 = vmatprep.subr.mxu0 0.0
    %3803 = vmatpush1.msra.mxu0 0.0
    %3804 = vmatprep.subr.mxu0 0.0
    %3805 = vmatpush1.msra.mxu0 0.0
    %3806 = vmatprep.subr.mxu0 0.0
    %3807 = vmatpush1.msra.mxu0 0.0
    %3808 = vmatprep.subr.mxu0 0.0
    %3809 = vmatpush1.msra.mxu0 0.0
    %3810 = vmatprep.subr.mxu0 0.0
    %3811 = vmatpush1.msra.mxu0 0.0
    %3812 = vmatprep.subr.mxu0 0.0
    %3813 = vmatpush1.msra.mxu0 0.0
    %3814 = vmatprep.subr.mxu0 0.0
    %3815 = vmatpush1.msra.mxu0 0.0
    %3816 = vmatprep.subr.mxu0 0.0
    %3817 = vmatpush1.msra.mxu0 0.0
    %3818 = vmatprep.subr.mxu0 0.0
    %3819 = vmatpush1.msra.mxu0 0.0
    %3820 = vmatprep.subr.mxu0 0.0
    %3821 = vmatpush1.msra.mxu0 0.0
    %3822 = vmatprep.subr.mxu0 0.0
    %3823 = vmatpush1.msra.mxu0 0.0
    %3824 = vmatprep.subr.mxu0 0.0
    %3825 = vmatpush1.msra.mxu0 0.0
    %3826 = vmatprep.subr.mxu0 0.0
    %3827 = vmatpush1.msra.mxu0 0.0
    %3828 = vmatprep.subr.mxu0 0.0
    %3829 = vmatpush1.msra.mxu0 0.0
    %3830 = vmatprep.subr.mxu0 0.0
    %3831 = vmatpush1.msra.mxu0 0.0
    %3832 = vmatprep.subr.mxu0 0.0
    %3833 = vmatpush1.msra.mxu0 0.0
    %3834 = vmatprep.subr.mxu0 0.0
    %3835 = vmatpush1.msra.mxu0 0.0
    %3836 = vmatprep.subr.mxu0 0.0
    %3837 = vmatpush1.msra.mxu0 0.0
    %3838 = vmatprep.subr.mxu0 0.0
    %3839 = vmatpush1.msra.mxu0 0.0
    %3840 = vmatprep.subr.mxu0 0.0
    %3841 = vmatpush1.msra.mxu0 0.0
    %3842 = vmatprep.subr.mxu0 0.0
    %3843 = vmatpush1.msra.mxu0 0.0
    %3844 = vmatprep.subr.mxu0 0.0
    %3845 = vmatpush1.msra.mxu0 0.0
    %3846 = vmatprep.subr.mxu0 0.0
    %3847 = vmatpush1.msra.mxu0 0.0
    %3848 = vmatprep.subr.mxu0 0.0
    %3849 = vmatpush1.msra.mxu0 0.0
    %3850 = vmatprep.mubr.f32.mxu0 0.0
    %3851 = vmatmul.mubr.f32.gmra.mrb[0].mxu0 %v3714
    %v3852 = vpop.f32.mrb[0].mxu0
    %v3853 = vadd.f32 0.0, %v3852
    %v3854 = vpop.f32.mrb[0].mxu0
    %3855 = vdwg.mxu0
    %3856 = vmatprep.subr.mxu0 0.0
    %3857 = vmatpush1.msra.mxu0 %v3234
    %3858 = vmatprep.subr.mxu0 0.0
    %3859 = vmatpush1.msra.mxu0 %v3235
    %3860 = vmatprep.subr.mxu0 0.0
    %3861 = vmatpush1.msra.mxu0 %v3236
    %3862 = vmatprep.subr.mxu0 0.0
    %3863 = vmatpush1.msra.mxu0 %v3237
    %3864 = vmatprep.subr.mxu0 0.0
    %3865 = vmatpush1.msra.mxu0 0.0
    %3866 = vmatprep.subr.mxu0 0.0
    %3867 = vmatpush1.msra.mxu0 0.0
    %3868 = vmatprep.subr.mxu0 0.0
    %3869 = vmatpush1.msra.mxu0 0.0
    %3870 = vmatprep.subr.mxu0 0.0
    %3871 = vmatpush1.msra.mxu0 0.0
    %3872 = vmatprep.subr.mxu0 0.0
    %3873 = vmatpush1.msra.mxu0 0.0
    %3874 = vmatprep.subr.mxu0 0.0
    %3875 = vmatpush1.msra.mxu0 0.0
    %3876 = vmatprep.subr.mxu0 0.0
    %3877 = vmatpush1.msra.mxu0 0.0
    %3878 = vmatprep.subr.mxu0 0.0
    %3879 = vmatpush1.msra.mxu0 0.0
    %3880 = vmatprep.subr.mxu0 0.0
    %3881 = vmatpush1.msra.mxu0 0.0
    %3882 = vmatprep.subr.mxu0 0.0
    %3883 = vmatpush1.msra.mxu0 0.0
    %3884 = vmatprep.subr.mxu0 0.0
    %3885 = vmatpush1.msra.mxu0 0.0
    %3886 = vmatprep.subr.mxu0 0.0
    %3887 = vmatpush1.msra.mxu0 0.0
    %3888 = vmatprep.subr.mxu0 0.0
    %3889 = vmatpush1.msra.mxu0 0.0
    %3890 = vmatprep.subr.mxu0 0.0
    %3891 = vmatpush1.msra.mxu0 0.0
    %3892 = vmatprep.subr.mxu0 0.0
    %3893 = vmatpush1.msra.mxu0 0.0
    %3894 = vmatprep.subr.mxu0 0.0
    %3895 = vmatpush1.msra.mxu0 0.0
    %3896 = vmatprep.subr.mxu0 0.0
    %3897 = vmatpush1.msra.mxu0 0.0
    %3898 = vmatprep.subr.mxu0 0.0
    %3899 = vmatpush1.msra.mxu0 0.0
    %3900 = vmatprep.subr.mxu0 0.0
    %3901 = vmatpush1.msra.mxu0 0.0
    %3902 = vmatprep.subr.mxu0 0.0
    %3903 = vmatpush1.msra.mxu0 0.0
    %3904 = vmatprep.subr.mxu0 0.0
    %3905 = vmatpush1.msra.mxu0 0.0
    %3906 = vmatprep.subr.mxu0 0.0
    %3907 = vmatpush1.msra.mxu0 0.0
    %3908 = vmatprep.subr.mxu0 0.0
    %3909 = vmatpush1.msra.mxu0 0.0
    %3910 = vmatprep.subr.mxu0 0.0
    %3911 = vmatpush1.msra.mxu0 0.0
    %3912 = vmatprep.subr.mxu0 0.0
    %3913 = vmatpush1.msra.mxu0 0.0
    %3914 = vmatprep.subr.mxu0 0.0
    %3915 = vmatpush1.msra.mxu0 0.0
    %3916 = vmatprep.subr.mxu0 0.0
    %3917 = vmatpush1.msra.mxu0 0.0
    %3918 = vmatprep.subr.mxu0 0.0
    %3919 = vmatpush1.msra.mxu0 0.0
    %3920 = vmatprep.mubr.f32.mxu0 0.0
    %3921 = vmatmul.mubr.f32.gmra.mrb[0].mxu0 %v3714
    %v3922 = vpop.f32.mrb[0].mxu0
    %v3923 = vadd.f32 %v3386, %v3922
    %v3924 = vpop.f32.mrb[0].mxu0
    %3925 = vdwg.mxu0
    %v3926 = vadd.f32 %v2966, %v3783
    %v3927 = vxor.u32 %v3926, 2147483648
    %v3928 = vmul.f32 %v3927, 1.442695
    %v3929 = vpow.pop %v3928
    %v3930 = vadd.f32 %v3929, 1.0
    %v3931 = vrcp.pop %v3930
    %v3932 = vmul.f32 1.0, %v3931
    %v3933 = vadd.f32 %v3081, %v3853
    %v3934 = vxor.u32 %v3933, 2147483648
    %v3935 = vmul.f32 %v3934, 1.442695
    %v3936 = vpow.pop %v3935
    %v3937 = vadd.f32 %v3936, 1.0
    %v3938 = vrcp.pop %v3937
    %v3939 = vmul.f32 1.0, %v3938
    %v3940 = vmul.f32 %v3932, %v3923
    %v3941 = vadd.f32 %v3196, %v3940
    %v3942 = vtanh.pop %v3941
    %v3943 = vsub.f32 1.0, %v3939
    %v3944 = vmul.f32 %v3943, %v3942
    %v3945 = vmul.f32 %v3939, %v3712
    %v3946 = vadd.f32 %v3944, %v3945
    %v3948 = vsel %vm501, %v3946, 0
    %3950 = vmatprep.subr.mxu0 0.0
    %3951 = vmatpush1.msra.mxu0 %v3224
    %3952 = vmatprep.subr.mxu0 0.0
    %3953 = vmatpush1.msra.mxu0 %v3225
    %3954 = vmatprep.subr.mxu0 0.0
    %3955 = vmatpush1.msra.mxu0 %v3226
    %3956 = vmatprep.subr.mxu0 0.0
    %3957 = vmatpush1.msra.mxu0 %v3227
    %3958 = vmatprep.subr.mxu0 0.0
    %3959 = vmatpush1.msra.mxu0 0.0
    %3960 = vmatprep.subr.mxu0 0.0
    %3961 = vmatpush1.msra.mxu0 0.0
    %3962 = vmatprep.subr.mxu0 0.0
    %3963 = vmatpush1.msra.mxu0 0.0
    %3964 = vmatprep.subr.mxu0 0.0
    %3965 = vmatpush1.msra.mxu0 0.0
    %3966 = vmatprep.subr.mxu0 0.0
    %3967 = vmatpush1.msra.mxu0 0.0
    %3968 = vmatprep.subr.mxu0 0.0
    %3969 = vmatpush1.msra.mxu0 0.0
    %3970 = vmatprep.subr.mxu0 0.0
    %3971 = vmatpush1.msra.mxu0 0.0
    %3972 = vmatprep.subr.mxu0 0.0
    %3973 = vmatpush1.msra.mxu0 0.0
    %3974 = vmatprep.subr.mxu0 0.0
    %3975 = vmatpush1.msra.mxu0 0.0
    %3976 = vmatprep.subr.mxu0 0.0
    %3977 = vmatpush1.msra.mxu0 0.0
    %3978 = vmatprep.subr.mxu0 0.0
    %3979 = vmatpush1.msra.mxu0 0.0
    %3980 = vmatprep.subr.mxu0 0.0
    %3981 = vmatpush1.msra.mxu0 0.0
    %3982 = vmatprep.subr.mxu0 0.0
    %3983 = vmatpush1.msra.mxu0 0.0
    %3984 = vmatprep.subr.mxu0 0.0
    %3985 = vmatpush1.msra.mxu0 0.0
    %3986 = vmatprep.subr.mxu0 0.0
    %3987 = vmatpush1.msra.mxu0 0.0
    %3988 = vmatprep.subr.mxu0 0.0
    %3989 = vmatpush1.msra.mxu0 0.0
    %3990 = vmatprep.subr.mxu0 0.0
    %3991 = vmatpush1.msra.mxu0 0.0
    %3992 = vmatprep.subr.mxu0 0.0
    %3993 = vmatpush1.msra.mxu0 0.0
    %3994 = vmatprep.subr.mxu0 0.0
    %3995 = vmatpush1.msra.mxu0 0.0
    %3996 = vmatprep.subr.mxu0 0.0
    %3997 = vmatpush1.msra.mxu0 0.0
    %3998 = vmatprep.subr.mxu0 0.0
    %3999 = vmatpush1.msra.mxu0 0.0
    %4000 = vmatprep.subr.mxu0 0.0
    %4001 = vmatpush1.msra.mxu0 0.0
    %4002 = vmatprep.subr.mxu0 0.0
    %4003 = vmatpush1.msra.mxu0 0.0
    %4004 = vmatprep.subr.mxu0 0.0
    %4005 = vmatpush1.msra.mxu0 0.0
    %4006 = vmatprep.subr.mxu0 0.0
    %4007 = vmatpush1.msra.mxu0 0.0
    %4008 = vmatprep.subr.mxu0 0.0
    %4009 = vmatpush1.msra.mxu0 0.0
    %4010 = vmatprep.subr.mxu0 0.0
    %4011 = vmatpush1.msra.mxu0 0.0
    %4012 = vmatprep.subr.mxu0 0.0
    %4013 = vmatpush1.msra.mxu0 0.0
    %4014 = vmatprep.mubr.f32.mxu0 0.0
    %4015 = vmatmul.mubr.f32.gmra.mrb[0].mxu0 %v3948
    %v4016 = vpop.f32.mrb[0].mxu0
    %v4017 = vadd.f32 0.0, %v4016
    %v4018 = vpop.f32.mrb[0].mxu0
    %4019 = vdwg.mxu0
    %4020 = vmatprep.subr.mxu0 0.0
    %4021 = vmatpush1.msra.mxu0 %v3229
    %4022 = vmatprep.subr.mxu0 0.0
    %4023 = vmatpush1.msra.mxu0 %v3230
    %4024 = vmatprep.subr.mxu0 0.0
    %4025 = vmatpush1.msra.mxu0 %v3231
    %4026 = vmatprep.subr.mxu0 0.0
    %4027 = vmatpush1.msra.mxu0 %v3232
    %4028 = vmatprep.subr.mxu0 0.0
    %4029 = vmatpush1.msra.mxu0 0.0
    %4030 = vmatprep.subr.mxu0 0.0
    %4031 = vmatpush1.msra.mxu0 0.0
    %4032 = vmatprep.subr.mxu0 0.0
    %4033 = vmatpush1.msra.mxu0 0.0
    %4034 = vmatprep.subr.mxu0 0.0
    %4035 = vmatpush1.msra.mxu0 0.0
    %4036 = vmatprep.subr.mxu0 0.0
    %4037 = vmatpush1.msra.mxu0 0.0
    %4038 = vmatprep.subr.mxu0 0.0
    %4039 = vmatpush1.msra.mxu0 0.0
    %4040 = vmatprep.subr.mxu0 0.0
    %4041 = vmatpush1.msra.mxu0 0.0
    %4042 = vmatprep.subr.mxu0 0.0
    %4043 = vmatpush1.msra.mxu0 0.0
    %4044 = vmatprep.subr.mxu0 0.0
    %4045 = vmatpush1.msra.mxu0 0.0
    %4046 = vmatprep.subr.mxu0 0.0
    %4047 = vmatpush1.msra.mxu0 0.0
    %4048 = vmatprep.subr.mxu0 0.0
    %4049 = vmatpush1.msra.mxu0 0.0
    %4050 = vmatprep.subr.mxu0 0.0
    %4051 = vmatpush1.msra.mxu0 0.0
    %4052 = vmatprep.subr.mxu0 0.0
    %4053 = vmatpush1.msra.mxu0 0.0
    %4054 = vmatprep.subr.mxu0 0.0
    %4055 = vmatpush1.msra.mxu0 0.0
    %4056 = vmatprep.subr.mxu0 0.0
    %4057 = vmatpush1.msra.mxu0 0.0
    %4058 = vmatprep.subr.mxu0 0.0
    %4059 = vmatpush1.msra.mxu0 0.0
    %4060 = vmatprep.subr.mxu0 0.0
    %4061 = vmatpush1.msra.mxu0 0.0
    %4062 = vmatprep.subr.mxu0 0.0
    %4063 = vmatpush1.msra.mxu0 0.0
    %4064 = vmatprep.subr.mxu0 0.0
    %4065 = vmatpush1.msra.mxu0 0.0
    %4066 = vmatprep.subr.mxu0 0.0
    %4067 = vmatpush1.msra.mxu0 0.0
    %4068 = vmatprep.subr.mxu0 0.0
    %4069 = vmatpush1.msra.mxu0 0.0
    %4070 = vmatprep.subr.mxu0 0.0
    %4071 = vmatpush1.msra.mxu0 0.0
    %4072 = vmatprep.subr.mxu0 0.0
    %4073 = vmatpush1.msra.mxu0 0.0
    %4074 = vmatprep.subr.mxu0 0.0
    %4075 = vmatpush1.msra.mxu0 0.0
    %4076 = vmatprep.subr.mxu0 0.0
    %4077 = vmatpush1.msra.mxu0 0.0
    %4078 = vmatprep.subr.mxu0 0.0
    %4079 = vmatpush1.msra.mxu0 0.0
    %4080 = vmatprep.subr.mxu0 0.0
    %4081 = vmatpush1.msra.mxu0 0.0
    %4082 = vmatprep.subr.mxu0 0.0
    %4083 = vmatpush1.msra.mxu0 0.0
    %4084 = vmatprep.mubr.f32.mxu0 0.0
    %4085 = vmatmul.mubr.f32.gmra.mrb[0].mxu0 %v3948
    %v4086 = vpop.f32.mrb[0].mxu0
    %v4087 = vadd.f32 0.0, %v4086
    %v4088 = vpop.f32.mrb[0].mxu0
    %4089 = vdwg.mxu0
    %4090 = vmatprep.subr.mxu0 0.0
    %4091 = vmatpush1.msra.mxu0 %v3234
    %4092 = vmatprep.subr.mxu0 0.0
    %4093 = vmatpush1.msra.mxu0 %v3235
    %4094 = vmatprep.subr.mxu0 0.0
    %4095 = vmatpush1.msra.mxu0 %v3236
    %4096 = vmatprep.subr.mxu0 0.0
    %4097 = vmatpush1.msra.mxu0 %v3237
    %4098 = vmatprep.subr.mxu0 0.0
    %4099 = vmatpush1.msra.mxu0 0.0
    %4100 = vmatprep.subr.mxu0 0.0
    %4101 = vmatpush1.msra.mxu0 0.0
    %4102 = vmatprep.subr.mxu0 0.0
    %4103 = vmatpush1.msra.mxu0 0.0
    %4104 = vmatprep.subr.mxu0 0.0
    %4105 = vmatpush1.msra.mxu0 0.0
    %4106 = vmatprep.subr.mxu0 0.0
    %4107 = vmatpush1.msra.mxu0 0.0
    %4108 = vmatprep.subr.mxu0 0.0
    %4109 = vmatpush1.msra.mxu0 0.0
    %4110 = vmatprep.subr.mxu0 0.0
    %4111 = vmatpush1.msra.mxu0 0.0
    %4112 = vmatprep.subr.mxu0 0.0
    %4113 = vmatpush1.msra.mxu0 0.0
    %4114 = vmatprep.subr.mxu0 0.0
    %4115 = vmatpush1.msra.mxu0 0.0
    %4116 = vmatprep.subr.mxu0 0.0
    %4117 = vmatpush1.msra.mxu0 0.0
    %4118 = vmatprep.subr.mxu0 0.0
    %4119 = vmatpush1.msra.mxu0 0.0
    %4120 = vmatprep.subr.mxu0 0.0
    %4121 = vmatpush1.msra.mxu0 0.0
    %4122 = vmatprep.subr.mxu0 0.0
    %4123 = vmatpush1.msra.mxu0 0.0
    %4124 = vmatprep.subr.mxu0 0.0
    %4125 = vmatpush1.msra.mxu0 0.0
    %4126 = vmatprep.subr.mxu0 0.0
    %4127 = vmatpush1.msra.mxu0 0.0
    %4128 = vmatprep.subr.mxu0 0.0
    %4129 = vmatpush1.msra.mxu0 0.0
    %4130 = vmatprep.subr.mxu0 0.0
    %4131 = vmatpush1.msra.mxu0 0.0
    %4132 = vmatprep.subr.mxu0 0.0
    %4133 = vmatpush1.msra.mxu0 0.0
    %4134 = vmatprep.subr.mxu0 0.0
    %4135 = vmatpush1.msra.mxu0 0.0
    %4136 = vmatprep.subr.mxu0 0.0
    %4137 = vmatpush1.msra.mxu0 0.0
    %4138 = vmatprep.subr.mxu0 0.0
    %4139 = vmatpush1.msra.mxu0 0.0
    %4140 = vmatprep.subr.mxu0 0.0
    %4141 = vmatpush1.msra.mxu0 0.0
    %4142 = vmatprep.subr.mxu0 0.0
    %4143 = vmatpush1.msra.mxu0 0.0
    %4144 = vmatprep.subr.mxu0 0.0
    %4145 = vmatpush1.msra.mxu0 0.0
    %4146 = vmatprep.subr.mxu0 0.0
    %4147 = vmatpush1.msra.mxu0 0.0
    %4148 = vmatprep.subr.mxu0 0.0
    %4149 = vmatpush1.msra.mxu0 0.0
    %4150 = vmatprep.subr.mxu0 0.0
    %4151 = vmatpush1.msra.mxu0 0.0
    %4152 = vmatprep.subr.mxu0 0.0
    %4153 = vmatpush1.msra.mxu0 0.0
    %4154 = vmatprep.mubr.f32.mxu0 0.0
    %4155 = vmatmul.mubr.f32.gmra.mrb[0].mxu0 %v3948
    %v4156 = vpop.f32.mrb[0].mxu0
    %v4157 = vadd.f32 %v3386, %v4156
    %v4158 = vpop.f32.mrb[0].mxu0
    %4159 = vdwg.mxu0
    %v4160 = vadd.f32 %v2971, %v4017
    %v4161 = vxor.u32 %v4160, 2147483648
    %v4162 = vmul.f32 %v4161, 1.442695
    %v4163 = vpow.pop %v4162
    %v4164 = vadd.f32 %v4163, 1.0
    %v4165 = vrcp.pop %v4164
    %v4166 = vmul.f32 1.0, %v4165
    %v4167 = vadd.f32 %v3086, %v4087
    %v4168 = vxor.u32 %v4167, 2147483648
    %v4169 = vmul.f32 %v4168, 1.442695
    %v4170 = vpow.pop %v4169
    %v4171 = vadd.f32 %v4170, 1.0
    %v4172 = vrcp.pop %v4171
    %v4173 = vmul.f32 1.0, %v4172
    %v4174 = vmul.f32 %v4166, %v4157
    %v4175 = vadd.f32 %v3201, %v4174
    %v4176 = vtanh.pop %v4175
    %v4177 = vsub.f32 1.0, %v4173
    %v4178 = vmul.f32 %v4177, %v4176
    %v4179 = vmul.f32 %v4173, %v3946
    %v4180 = vadd.f32 %v4178, %v4179
    %v4182 = vsel %vm501, %v4180, 0
    %4184 = vmatprep.subr.mxu0 0.0
    %4185 = vmatpush1.msra.mxu0 %v3224
    %4186 = vmatprep.subr.mxu0 0.0
    %4187 = vmatpush1.msra.mxu0 %v3225
    %4188 = vmatprep.subr.mxu0 0.0
    %4189 = vmatpush1.msra.mxu0 %v3226
    %4190 = vmatprep.subr.mxu0 0.0
    %4191 = vmatpush1.msra.mxu0 %v3227
    %4192 = vmatprep.subr.mxu0 0.0
    %4193 = vmatpush1.msra.mxu0 0.0
    %4194 = vmatprep.subr.mxu0 0.0
    %4195 = vmatpush1.msra.mxu0 0.0
    %4196 = vmatprep.subr.mxu0 0.0
    %4197 = vmatpush1.msra.mxu0 0.0
    %4198 = vmatprep.subr.mxu0 0.0
    %4199 = vmatpush1.msra.mxu0 0.0
    %4200 = vmatprep.subr.mxu0 0.0
    %4201 = vmatpush1.msra.mxu0 0.0
    %4202 = vmatprep.subr.mxu0 0.0
    %4203 = vmatpush1.msra.mxu0 0.0
    %4204 = vmatprep.subr.mxu0 0.0
    %4205 = vmatpush1.msra.mxu0 0.0
    %4206 = vmatprep.subr.mxu0 0.0
    %4207 = vmatpush1.msra.mxu0 0.0
    %4208 = vmatprep.subr.mxu0 0.0
    %4209 = vmatpush1.msra.mxu0 0.0
    %4210 = vmatprep.subr.mxu0 0.0
    %4211 = vmatpush1.msra.mxu0 0.0
    %4212 = vmatprep.subr.mxu0 0.0
    %4213 = vmatpush1.msra.mxu0 0.0
    %4214 = vmatprep.subr.mxu0 0.0
    %4215 = vmatpush1.msra.mxu0 0.0
    %4216 = vmatprep.subr.mxu0 0.0
    %4217 = vmatpush1.msra.mxu0 0.0
    %4218 = vmatprep.subr.mxu0 0.0
    %4219 = vmatpush1.msra.mxu0 0.0
    %4220 = vmatprep.subr.mxu0 0.0
    %4221 = vmatpush1.msra.mxu0 0.0
    %4222 = vmatprep.subr.mxu0 0.0
    %4223 = vmatpush1.msra.mxu0 0.0
    %4224 = vmatprep.subr.mxu0 0.0
    %4225 = vmatpush1.msra.mxu0 0.0
    %4226 = vmatprep.subr.mxu0 0.0
    %4227 = vmatpush1.msra.mxu0 0.0
    %4228 = vmatprep.subr.mxu0 0.0
    %4229 = vmatpush1.msra.mxu0 0.0
    %4230 = vmatprep.subr.mxu0 0.0
    %4231 = vmatpush1.msra.mxu0 0.0
    %4232 = vmatprep.subr.mxu0 0.0
    %4233 = vmatpush1.msra.mxu0 0.0
    %4234 = vmatprep.subr.mxu0 0.0
    %4235 = vmatpush1.msra.mxu0 0.0
    %4236 = vmatprep.subr.mxu0 0.0
    %4237 = vmatpush1.msra.mxu0 0.0
    %4238 = vmatprep.subr.mxu0 0.0
    %4239 = vmatpush1.msra.mxu0 0.0
    %4240 = vmatprep.subr.mxu0 0.0
    %4241 = vmatpush1.msra.mxu0 0.0
    %4242 = vmatprep.subr.mxu0 0.0
    %4243 = vmatpush1.msra.mxu0 0.0
    %4244 = vmatprep.subr.mxu0 0.0
    %4245 = vmatpush1.msra.mxu0 0.0
    %4246 = vmatprep.subr.mxu0 0.0
    %4247 = vmatpush1.msra.mxu0 0.0
    %4248 = vmatprep.mubr.f32.mxu0 0.0
    %4249 = vmatmul.mubr.f32.gmra.mrb[0].mxu0 %v4182
    %v4250 = vpop.f32.mrb[0].mxu0
    %v4251 = vadd.f32 0.0, %v4250
    %v4252 = vpop.f32.mrb[0].mxu0
    %4253 = vdwg.mxu0
    %4254 = vmatprep.subr.mxu0 0.0
    %4255 = vmatpush1.msra.mxu0 %v3229
    %4256 = vmatprep.subr.mxu0 0.0
    %4257 = vmatpush1.msra.mxu0 %v3230
    %4258 = vmatprep.subr.mxu0 0.0
    %4259 = vmatpush1.msra.mxu0 %v3231
    %4260 = vmatprep.subr.mxu0 0.0
    %4261 = vmatpush1.msra.mxu0 %v3232
    %4262 = vmatprep.subr.mxu0 0.0
    %4263 = vmatpush1.msra.mxu0 0.0
    %4264 = vmatprep.subr.mxu0 0.0
    %4265 = vmatpush1.msra.mxu0 0.0
    %4266 = vmatprep.subr.mxu0 0.0
    %4267 = vmatpush1.msra.mxu0 0.0
    %4268 = vmatprep.subr.mxu0 0.0
    %4269 = vmatpush1.msra.mxu0 0.0
    %4270 = vmatprep.subr.mxu0 0.0
    %4271 = vmatpush1.msra.mxu0 0.0
    %4272 = vmatprep.subr.mxu0 0.0
    %4273 = vmatpush1.msra.mxu0 0.0
    %4274 = vmatprep.subr.mxu0 0.0
    %4275 = vmatpush1.msra.mxu0 0.0
    %4276 = vmatprep.subr.mxu0 0.0
    %4277 = vmatpush1.msra.mxu0 0.0
    %4278 = vmatprep.subr.mxu0 0.0
    %4279 = vmatpush1.msra.mxu0 0.0
    %4280 = vmatprep.subr.mxu0 0.0
    %4281 = vmatpush1.msra.mxu0 0.0
    %4282 = vmatprep.subr.mxu0 0.0
    %4283 = vmatpush1.msra.mxu0 0.0
    %4284 = vmatprep.subr.mxu0 0.0
    %4285 = vmatpush1.msra.mxu0 0.0
    %4286 = vmatprep.subr.mxu0 0.0
    %4287 = vmatpush1.msra.mxu0 0.0
    %4288 = vmatprep.subr.mxu0 0.0
    %4289 = vmatpush1.msra.mxu0 0.0
    %4290 = vmatprep.subr.mxu0 0.0
    %4291 = vmatpush1.msra.mxu0 0.0
    %4292 = vmatprep.subr.mxu0 0.0
    %4293 = vmatpush1.msra.mxu0 0.0
    %4294 = vmatprep.subr.mxu0 0.0
    %4295 = vmatpush1.msra.mxu0 0.0
    %4296 = vmatprep.subr.mxu0 0.0
    %4297 = vmatpush1.msra.mxu0 0.0
    %4298 = vmatprep.subr.mxu0 0.0
    %4299 = vmatpush1.msra.mxu0 0.0
    %4300 = vmatprep.subr.mxu0 0.0
    %4301 = vmatpush1.msra.mxu0 0.0
    %4302 = vmatprep.subr.mxu0 0.0
    %4303 = vmatpush1.msra.mxu0 0.0
    %4304 = vmatprep.subr.mxu0 0.0
    %4305 = vmatpush1.msra.mxu0 0.0
    %4306 = vmatprep.subr.mxu0 0.0
    %4307 = vmatpush1.msra.mxu0 0.0
    %4308 = vmatprep.subr.mxu0 0.0
    %4309 = vmatpush1.msra.mxu0 0.0
    %4310 = vmatprep.subr.mxu0 0.0
    %4311 = vmatpush1.msra.mxu0 0.0
    %4312 = vmatprep.subr.mxu0 0.0
    %4313 = vmatpush1.msra.mxu0 0.0
    %4314 = vmatprep.subr.mxu0 0.0
    %4315 = vmatpush1.msra.mxu0 0.0
    %4316 = vmatprep.subr.mxu0 0.0
    %4317 = vmatpush1.msra.mxu0 0.0
    %4318 = vmatprep.mubr.f32.mxu0 0.0
    %4319 = vmatmul.mubr.f32.gmra.mrb[0].mxu0 %v4182
    %v4320 = vpop.f32.mrb[0].mxu0
    %v4321 = vadd.f32 0.0, %v4320
    %v4322 = vpop.f32.mrb[0].mxu0
    %4323 = vdwg.mxu0
    %4324 = vmatprep.subr.mxu0 0.0
    %4325 = vmatpush1.msra.mxu0 %v3234
    %4326 = vmatprep.subr.mxu0 0.0
    %4327 = vmatpush1.msra.mxu0 %v3235
    %4328 = vmatprep.subr.mxu0 0.0
    %4329 = vmatpush1.msra.mxu0 %v3236
    %4330 = vmatprep.subr.mxu0 0.0
    %4331 = vmatpush1.msra.mxu0 %v3237
    %4332 = vmatprep.subr.mxu0 0.0
    %4333 = vmatpush1.msra.mxu0 0.0
    %4334 = vmatprep.subr.mxu0 0.0
    %4335 = vmatpush1.msra.mxu0 0.0
    %4336 = vmatprep.subr.mxu0 0.0
    %4337 = vmatpush1.msra.mxu0 0.0
    %4338 = vmatprep.subr.mxu0 0.0
    %4339 = vmatpush1.msra.mxu0 0.0
    %4340 = vmatprep.subr.mxu0 0.0
    %4341 = vmatpush1.msra.mxu0 0.0
    %4342 = vmatprep.subr.mxu0 0.0
    %4343 = vmatpush1.msra.mxu0 0.0
    %4344 = vmatprep.subr.mxu0 0.0
    %4345 = vmatpush1.msra.mxu0 0.0
    %4346 = vmatprep.subr.mxu0 0.0
    %4347 = vmatpush1.msra.mxu0 0.0
    %4348 = vmatprep.subr.mxu0 0.0
    %4349 = vmatpush1.msra.mxu0 0.0
    %4350 = vmatprep.subr.mxu0 0.0
    %4351 = vmatpush1.msra.mxu0 0.0
    %4352 = vmatprep.subr.mxu0 0.0
    %4353 = vmatpush1.msra.mxu0 0.0
    %4354 = vmatprep.subr.mxu0 0.0
    %4355 = vmatpush1.msra.mxu0 0.0
    %4356 = vmatprep.subr.mxu0 0.0
    %4357 = vmatpush1.msra.mxu0 0.0
    %4358 = vmatprep.subr.mxu0 0.0
    %4359 = vmatpush1.msra.mxu0 0.0
    %4360 = vmatprep.subr.mxu0 0.0
    %4361 = vmatpush1.msra.mxu0 0.0
    %4362 = vmatprep.subr.mxu0 0.0
    %4363 = vmatpush1.msra.mxu0 0.0
    %4364 = vmatprep.subr.mxu0 0.0
    %4365 = vmatpush1.msra.mxu0 0.0
    %4366 = vmatprep.subr.mxu0 0.0
    %4367 = vmatpush1.msra.mxu0 0.0
    %4368 = vmatprep.subr.mxu0 0.0
    %4369 = vmatpush1.msra.mxu0 0.0
    %4370 = vmatprep.subr.mxu0 0.0
    %4371 = vmatpush1.msra.mxu0 0.0
    %4372 = vmatprep.subr.mxu0 0.0
    %4373 = vmatpush1.msra.mxu0 0.0
    %4374 = vmatprep.subr.mxu0 0.0
    %4375 = vmatpush1.msra.mxu0 0.0
    %4376 = vmatprep.subr.mxu0 0.0
    %4377 = vmatpush1.msra.mxu0 0.0
    %4378 = vmatprep.subr.mxu0 0.0
    %4379 = vmatpush1.msra.mxu0 0.0
    %4380 = vmatprep.subr.mxu0 0.0
    %4381 = vmatpush1.msra.mxu0 0.0
    %4382 = vmatprep.subr.mxu0 0.0
    %4383 = vmatpush1.msra.mxu0 0.0
    %4384 = vmatprep.subr.mxu0 0.0
    %4385 = vmatpush1.msra.mxu0 0.0
    %4386 = vmatprep.subr.mxu0 0.0
    %4387 = vmatpush1.msra.mxu0 0.0
    %4388 = vmatprep.mubr.f32.mxu0 0.0
    %4389 = vmatmul.mubr.f32.gmra.mrb[0].mxu0 %v4182
    %v4390 = vpop.f32.mrb[0].mxu0
    %v4391 = vadd.f32 %v3386, %v4390
    %v4392 = vpop.f32.mrb[0].mxu0
    %4393 = vdwg.mxu0
    %v4394 = vadd.f32 %v2976, %v4251
    %v4395 = vxor.u32 %v4394, 2147483648
    %v4396 = vmul.f32 %v4395, 1.442695
    %v4397 = vpow.pop %v4396
    %v4398 = vadd.f32 %v4397, 1.0
    %v4399 = vrcp.pop %v4398
    %v4400 = vmul.f32 1.0, %v4399
    %v4401 = vadd.f32 %v3091, %v4321
    %v4402 = vxor.u32 %v4401, 2147483648
    %v4403 = vmul.f32 %v4402, 1.442695
    %v4404 = vpow.pop %v4403
    %v4405 = vadd.f32 %v4404, 1.0
    %v4406 = vrcp.pop %v4405
    %v4407 = vmul.f32 1.0, %v4406
    %v4408 = vmul.f32 %v4400, %v4391
    %v4409 = vadd.f32 %v3206, %v4408
    %v4410 = vtanh.pop %v4409
    %v4411 = vsub.f32 1.0, %v4407
    %v4412 = vmul.f32 %v4411, %v4410
    %v4413 = vmul.f32 %v4407, %v4180
    %v4414 = vadd.f32 %v4412, %v4413
    %v4416 = vsel %vm501, %v4414, 0
    %4418 = vmatprep.subr.mxu0 0.0
    %4419 = vmatpush1.msra.mxu0 %v3224
    %4420 = vmatprep.subr.mxu0 0.0
    %4421 = vmatpush1.msra.mxu0 %v3225
    %4422 = vmatprep.subr.mxu0 0.0
    %4423 = vmatpush1.msra.mxu0 %v3226
    %4424 = vmatprep.subr.mxu0 0.0
    %4425 = vmatpush1.msra.mxu0 %v3227
    %4426 = vmatprep.subr.mxu0 0.0
    %4427 = vmatpush1.msra.mxu0 0.0
    %4428 = vmatprep.subr.mxu0 0.0
    %4429 = vmatpush1.msra.mxu0 0.0
    %4430 = vmatprep.subr.mxu0 0.0
    %4431 = vmatpush1.msra.mxu0 0.0
    %4432 = vmatprep.subr.mxu0 0.0
    %4433 = vmatpush1.msra.mxu0 0.0
    %4434 = vmatprep.subr.mxu0 0.0
    %4435 = vmatpush1.msra.mxu0 0.0
    %4436 = vmatprep.subr.mxu0 0.0
    %4437 = vmatpush1.msra.mxu0 0.0
    %4438 = vmatprep.subr.mxu0 0.0
    %4439 = vmatpush1.msra.mxu0 0.0
    %4440 = vmatprep.subr.mxu0 0.0
    %4441 = vmatpush1.msra.mxu0 0.0
    %4442 = vmatprep.subr.mxu0 0.0
    %4443 = vmatpush1.msra.mxu0 0.0
    %4444 = vmatprep.subr.mxu0 0.0
    %4445 = vmatpush1.msra.mxu0 0.0
    %4446 = vmatprep.subr.mxu0 0.0
    %4447 = vmatpush1.msra.mxu0 0.0
    %4448 = vmatprep.subr.mxu0 0.0
    %4449 = vmatpush1.msra.mxu0 0.0
    %4450 = vmatprep.subr.mxu0 0.0
    %4451 = vmatpush1.msra.mxu0 0.0
    %4452 = vmatprep.subr.mxu0 0.0
    %4453 = vmatpush1.msra.mxu0 0.0
    %4454 = vmatprep.subr.mxu0 0.0
    %4455 = vmatpush1.msra.mxu0 0.0
    %4456 = vmatprep.subr.mxu0 0.0
    %4457 = vmatpush1.msra.mxu0 0.0
    %4458 = vmatprep.subr.mxu0 0.0
    %4459 = vmatpush1.msra.mxu0 0.0
    %4460 = vmatprep.subr.mxu0 0.0
    %4461 = vmatpush1.msra.mxu0 0.0
    %4462 = vmatprep.subr.mxu0 0.0
    %4463 = vmatpush1.msra.mxu0 0.0
    %4464 = vmatprep.subr.mxu0 0.0
    %4465 = vmatpush1.msra.mxu0 0.0
    %4466 = vmatprep.subr.mxu0 0.0
    %4467 = vmatpush1.msra.mxu0 0.0
    %4468 = vmatprep.subr.mxu0 0.0
    %4469 = vmatpush1.msra.mxu0 0.0
    %4470 = vmatprep.subr.mxu0 0.0
    %4471 = vmatpush1.msra.mxu0 0.0
    %4472 = vmatprep.subr.mxu0 0.0
    %4473 = vmatpush1.msra.mxu0 0.0
    %4474 = vmatprep.subr.mxu0 0.0
    %4475 = vmatpush1.msra.mxu0 0.0
    %4476 = vmatprep.subr.mxu0 0.0
    %4477 = vmatpush1.msra.mxu0 0.0
    %4478 = vmatprep.subr.mxu0 0.0
    %4479 = vmatpush1.msra.mxu0 0.0
    %4480 = vmatprep.subr.mxu0 0.0
    %4481 = vmatpush1.msra.mxu0 0.0
    %4482 = vmatprep.mubr.f32.mxu0 0.0
    %4483 = vmatmul.mubr.f32.gmra.mrb[0].mxu0 %v4416
    %v4484 = vpop.f32.mrb[0].mxu0
    %v4485 = vadd.f32 0.0, %v4484
    %v4486 = vpop.f32.mrb[0].mxu0
    %4487 = vdwg.mxu0
    %4488 = vmatprep.subr.mxu0 0.0
    %4489 = vmatpush1.msra.mxu0 %v3229
    %4490 = vmatprep.subr.mxu0 0.0
    %4491 = vmatpush1.msra.mxu0 %v3230
    %4492 = vmatprep.subr.mxu0 0.0
    %4493 = vmatpush1.msra.mxu0 %v3231
    %4494 = vmatprep.subr.mxu0 0.0
    %4495 = vmatpush1.msra.mxu0 %v3232
    %4496 = vmatprep.subr.mxu0 0.0
    %4497 = vmatpush1.msra.mxu0 0.0
    %4498 = vmatprep.subr.mxu0 0.0
    %4499 = vmatpush1.msra.mxu0 0.0
    %4500 = vmatprep.subr.mxu0 0.0
    %4501 = vmatpush1.msra.mxu0 0.0
    %4502 = vmatprep.subr.mxu0 0.0
    %4503 = vmatpush1.msra.mxu0 0.0
    %4504 = vmatprep.subr.mxu0 0.0
    %4505 = vmatpush1.msra.mxu0 0.0
    %4506 = vmatprep.subr.mxu0 0.0
    %4507 = vmatpush1.msra.mxu0 0.0
    %4508 = vmatprep.subr.mxu0 0.0
    %4509 = vmatpush1.msra.mxu0 0.0
    %4510 = vmatprep.subr.mxu0 0.0
    %4511 = vmatpush1.msra.mxu0 0.0
    %4512 = vmatprep.subr.mxu0 0.0
    %4513 = vmatpush1.msra.mxu0 0.0
    %4514 = vmatprep.subr.mxu0 0.0
    %4515 = vmatpush1.msra.mxu0 0.0
    %4516 = vmatprep.subr.mxu0 0.0
    %4517 = vmatpush1.msra.mxu0 0.0
    %4518 = vmatprep.subr.mxu0 0.0
    %4519 = vmatpush1.msra.mxu0 0.0
    %4520 = vmatprep.subr.mxu0 0.0
    %4521 = vmatpush1.msra.mxu0 0.0
    %4522 = vmatprep.subr.mxu0 0.0
    %4523 = vmatpush1.msra.mxu0 0.0
    %4524 = vmatprep.subr.mxu0 0.0
    %4525 = vmatpush1.msra.mxu0 0.0
    %4526 = vmatprep.subr.mxu0 0.0
    %4527 = vmatpush1.msra.mxu0 0.0
    %4528 = vmatprep.subr.mxu0 0.0
    %4529 = vmatpush1.msra.mxu0 0.0
    %4530 = vmatprep.subr.mxu0 0.0
    %4531 = vmatpush1.msra.mxu0 0.0
    %4532 = vmatprep.subr.mxu0 0.0
    %4533 = vmatpush1.msra.mxu0 0.0
    %4534 = vmatprep.subr.mxu0 0.0
    %4535 = vmatpush1.msra.mxu0 0.0
    %4536 = vmatprep.subr.mxu0 0.0
    %4537 = vmatpush1.msra.mxu0 0.0
    %4538 = vmatprep.subr.mxu0 0.0
    %4539 = vmatpush1.msra.mxu0 0.0
    %4540 = vmatprep.subr.mxu0 0.0
    %4541 = vmatpush1.msra.mxu0 0.0
    %4542 = vmatprep.subr.mxu0 0.0
    %4543 = vmatpush1.msra.mxu0 0.0
    %4544 = vmatprep.subr.mxu0 0.0
    %4545 = vmatpush1.msra.mxu0 0.0
    %4546 = vmatprep.subr.mxu0 0.0
    %4547 = vmatpush1.msra.mxu0 0.0
    %4548 = vmatprep.subr.mxu0 0.0
    %4549 = vmatpush1.msra.mxu0 0.0
    %4550 = vmatprep.subr.mxu0 0.0
    %4551 = vmatpush1.msra.mxu0 0.0
    %4552 = vmatprep.mubr.f32.mxu0 0.0
    %4553 = vmatmul.mubr.f32.gmra.mrb[0].mxu0 %v4416
    %v4554 = vpop.f32.mrb[0].mxu0
    %v4555 = vadd.f32 0.0, %v4554
    %v4556 = vpop.f32.mrb[0].mxu0
    %4557 = vdwg.mxu0
    %4558 = vmatprep.subr.mxu0 0.0
    %4559 = vmatpush1.msra.mxu0 %v3234
    %4560 = vmatprep.subr.mxu0 0.0
    %4561 = vmatpush1.msra.mxu0 %v3235
    %4562 = vmatprep.subr.mxu0 0.0
    %4563 = vmatpush1.msra.mxu0 %v3236
    %4564 = vmatprep.subr.mxu0 0.0
    %4565 = vmatpush1.msra.mxu0 %v3237
    %4566 = vmatprep.subr.mxu0 0.0
    %4567 = vmatpush1.msra.mxu0 0.0
    %4568 = vmatprep.subr.mxu0 0.0
    %4569 = vmatpush1.msra.mxu0 0.0
    %4570 = vmatprep.subr.mxu0 0.0
    %4571 = vmatpush1.msra.mxu0 0.0
    %4572 = vmatprep.subr.mxu0 0.0
    %4573 = vmatpush1.msra.mxu0 0.0
    %4574 = vmatprep.subr.mxu0 0.0
    %4575 = vmatpush1.msra.mxu0 0.0
    %4576 = vmatprep.subr.mxu0 0.0
    %4577 = vmatpush1.msra.mxu0 0.0
    %4578 = vmatprep.subr.mxu0 0.0
    %4579 = vmatpush1.msra.mxu0 0.0
    %4580 = vmatprep.subr.mxu0 0.0
    %4581 = vmatpush1.msra.mxu0 0.0
    %4582 = vmatprep.subr.mxu0 0.0
    %4583 = vmatpush1.msra.mxu0 0.0
    %4584 = vmatprep.subr.mxu0 0.0
    %4585 = vmatpush1.msra.mxu0 0.0
    %4586 = vmatprep.subr.mxu0 0.0
    %4587 = vmatpush1.msra.mxu0 0.0
    %4588 = vmatprep.subr.mxu0 0.0
    %4589 = vmatpush1.msra.mxu0 0.0
    %4590 = vmatprep.subr.mxu0 0.0
    %4591 = vmatpush1.msra.mxu0 0.0
    %4592 = vmatprep.subr.mxu0 0.0
    %4593 = vmatpush1.msra.mxu0 0.0
    %4594 = vmatprep.subr.mxu0 0.0
    %4595 = vmatpush1.msra.mxu0 0.0
    %4596 = vmatprep.subr.mxu0 0.0
    %4597 = vmatpush1.msra.mxu0 0.0
    %4598 = vmatprep.subr.mxu0 0.0
    %4599 = vmatpush1.msra.mxu0 0.0
    %4600 = vmatprep.subr.mxu0 0.0
    %4601 = vmatpush1.msra.mxu0 0.0
    %4602 = vmatprep.subr.mxu0 0.0
    %4603 = vmatpush1.msra.mxu0 0.0
    %4604 = vmatprep.subr.mxu0 0.0
    %4605 = vmatpush1.msra.mxu0 0.0
    %4606 = vmatprep.subr.mxu0 0.0
    %4607 = vmatpush1.msra.mxu0 0.0
    %4608 = vmatprep.subr.mxu0 0.0
    %4609 = vmatpush1.msra.mxu0 0.0
    %4610 = vmatprep.subr.mxu0 0.0
    %4611 = vmatpush1.msra.mxu0 0.0
    %4612 = vmatprep.subr.mxu0 0.0
    %4613 = vmatpush1.msra.mxu0 0.0
    %4614 = vmatprep.subr.mxu0 0.0
    %4615 = vmatpush1.msra.mxu0 0.0
    %4616 = vmatprep.subr.mxu0 0.0
    %4617 = vmatpush1.msra.mxu0 0.0
    %4618 = vmatprep.subr.mxu0 0.0
    %4619 = vmatpush1.msra.mxu0 0.0
    %4620 = vmatprep.subr.mxu0 0.0
    %4621 = vmatpush1.msra.mxu0 0.0
    %4622 = vmatprep.mubr.f32.mxu0 0.0
    %4623 = vmatmul.mubr.f32.gmra.mrb[0].mxu0 %v4416
    %v4624 = vpop.f32.mrb[0].mxu0
    %v4625 = vadd.f32 %v3386, %v4624
    %v4626 = vpop.f32.mrb[0].mxu0
    %4627 = vdwg.mxu0
    %v4628 = vadd.f32 %v2981, %v4485
    %v4629 = vxor.u32 %v4628, 2147483648
    %v4630 = vmul.f32 %v4629, 1.442695
    %v4631 = vpow.pop %v4630
    %v4632 = vadd.f32 %v4631, 1.0
    %v4633 = vrcp.pop %v4632
    %v4634 = vmul.f32 1.0, %v4633
    %v4635 = vadd.f32 %v3096, %v4555
    %v4636 = vxor.u32 %v4635, 2147483648
    %v4637 = vmul.f32 %v4636, 1.442695
    %v4638 = vpow.pop %v4637
    %v4639 = vadd.f32 %v4638, 1.0
    %v4640 = vrcp.pop %v4639
    %v4641 = vmul.f32 1.0, %v4640
    %v4642 = vmul.f32 %v4634, %v4625
    %v4643 = vadd.f32 %v3211, %v4642
    %v4644 = vtanh.pop %v4643
    %v4645 = vsub.f32 1.0, %v4641
    %v4646 = vmul.f32 %v4645, %v4644
    %v4647 = vmul.f32 %v4641, %v4414
    %v4648 = vadd.f32 %v4646, %v4647
    %v4650 = vsel %vm501, %v4648, 0
    %4652 = vmatprep.subr.mxu0 0.0
    %4653 = vmatpush1.msra.mxu0 %v3224
    %4654 = vmatprep.subr.mxu0 0.0
    %4655 = vmatpush1.msra.mxu0 %v3225
    %4656 = vmatprep.subr.mxu0 0.0
    %4657 = vmatpush1.msra.mxu0 %v3226
    %4658 = vmatprep.subr.mxu0 0.0
    %4659 = vmatpush1.msra.mxu0 %v3227
    %4660 = vmatprep.subr.mxu0 0.0
    %4661 = vmatpush1.msra.mxu0 0.0
    %4662 = vmatprep.subr.mxu0 0.0
    %4663 = vmatpush1.msra.mxu0 0.0
    %4664 = vmatprep.subr.mxu0 0.0
    %4665 = vmatpush1.msra.mxu0 0.0
    %4666 = vmatprep.subr.mxu0 0.0
    %4667 = vmatpush1.msra.mxu0 0.0
    %4668 = vmatprep.subr.mxu0 0.0
    %4669 = vmatpush1.msra.mxu0 0.0
    %4670 = vmatprep.subr.mxu0 0.0
    %4671 = vmatpush1.msra.mxu0 0.0
    %4672 = vmatprep.subr.mxu0 0.0
    %4673 = vmatpush1.msra.mxu0 0.0
    %4674 = vmatprep.subr.mxu0 0.0
    %4675 = vmatpush1.msra.mxu0 0.0
    %4676 = vmatprep.subr.mxu0 0.0
    %4677 = vmatpush1.msra.mxu0 0.0
    %4678 = vmatprep.subr.mxu0 0.0
    %4679 = vmatpush1.msra.mxu0 0.0
    %4680 = vmatprep.subr.mxu0 0.0
    %4681 = vmatpush1.msra.mxu0 0.0
    %4682 = vmatprep.subr.mxu0 0.0
    %4683 = vmatpush1.msra.mxu0 0.0
    %4684 = vmatprep.subr.mxu0 0.0
    %4685 = vmatpush1.msra.mxu0 0.0
    %4686 = vmatprep.subr.mxu0 0.0
    %4687 = vmatpush1.msra.mxu0 0.0
    %4688 = vmatprep.subr.mxu0 0.0
    %4689 = vmatpush1.msra.mxu0 0.0
    %4690 = vmatprep.subr.mxu0 0.0
    %4691 = vmatpush1.msra.mxu0 0.0
    %4692 = vmatprep.subr.mxu0 0.0
    %4693 = vmatpush1.msra.mxu0 0.0
    %4694 = vmatprep.subr.mxu0 0.0
    %4695 = vmatpush1.msra.mxu0 0.0
    %4696 = vmatprep.subr.mxu0 0.0
    %4697 = vmatpush1.msra.mxu0 0.0
    %4698 = vmatprep.subr.mxu0 0.0
    %4699 = vmatpush1.msra.mxu0 0.0
    %4700 = vmatprep.subr.mxu0 0.0
    %4701 = vmatpush1.msra.mxu0 0.0
    %4702 = vmatprep.subr.mxu0 0.0
    %4703 = vmatpush1.msra.mxu0 0.0
    %4704 = vmatprep.subr.mxu0 0.0
    %4705 = vmatpush1.msra.mxu0 0.0
    %4706 = vmatprep.subr.mxu0 0.0
    %4707 = vmatpush1.msra.mxu0 0.0
    %4708 = vmatprep.subr.mxu0 0.0
    %4709 = vmatpush1.msra.mxu0 0.0
    %4710 = vmatprep.subr.mxu0 0.0
    %4711 = vmatpush1.msra.mxu0 0.0
    %4712 = vmatprep.subr.mxu0 0.0
    %4713 = vmatpush1.msra.mxu0 0.0
    %4714 = vmatprep.subr.mxu0 0.0
    %4715 = vmatpush1.msra.mxu0 0.0
    %4716 = vmatprep.mubr.f32.mxu0 0.0
    %4717 = vmatmul.mubr.f32.gmra.mrb[0].mxu0 %v4650
    %v4718 = vpop.f32.mrb[0].mxu0
    %v4719 = vadd.f32 0.0, %v4718
    %v4720 = vpop.f32.mrb[0].mxu0
    %4721 = vdwg.mxu0
    %4722 = vmatprep.subr.mxu0 0.0
    %4723 = vmatpush1.msra.mxu0 %v3229
    %4724 = vmatprep.subr.mxu0 0.0
    %4725 = vmatpush1.msra.mxu0 %v3230
    %4726 = vmatprep.subr.mxu0 0.0
    %4727 = vmatpush1.msra.mxu0 %v3231
    %4728 = vmatprep.subr.mxu0 0.0
    %4729 = vmatpush1.msra.mxu0 %v3232
    %4730 = vmatprep.subr.mxu0 0.0
    %4731 = vmatpush1.msra.mxu0 0.0
    %4732 = vmatprep.subr.mxu0 0.0
    %4733 = vmatpush1.msra.mxu0 0.0
    %4734 = vmatprep.subr.mxu0 0.0
    %4735 = vmatpush1.msra.mxu0 0.0
    %4736 = vmatprep.subr.mxu0 0.0
    %4737 = vmatpush1.msra.mxu0 0.0
    %4738 = vmatprep.subr.mxu0 0.0
    %4739 = vmatpush1.msra.mxu0 0.0
    %4740 = vmatprep.subr.mxu0 0.0
    %4741 = vmatpush1.msra.mxu0 0.0
    %4742 = vmatprep.subr.mxu0 0.0
    %4743 = vmatpush1.msra.mxu0 0.0
    %4744 = vmatprep.subr.mxu0 0.0
    %4745 = vmatpush1.msra.mxu0 0.0
    %4746 = vmatprep.subr.mxu0 0.0
    %4747 = vmatpush1.msra.mxu0 0.0
    %4748 = vmatprep.subr.mxu0 0.0
    %4749 = vmatpush1.msra.mxu0 0.0
    %4750 = vmatprep.subr.mxu0 0.0
    %4751 = vmatpush1.msra.mxu0 0.0
    %4752 = vmatprep.subr.mxu0 0.0
    %4753 = vmatpush1.msra.mxu0 0.0
    %4754 = vmatprep.subr.mxu0 0.0
    %4755 = vmatpush1.msra.mxu0 0.0
    %4756 = vmatprep.subr.mxu0 0.0
    %4757 = vmatpush1.msra.mxu0 0.0
    %4758 = vmatprep.subr.mxu0 0.0
    %4759 = vmatpush1.msra.mxu0 0.0
    %4760 = vmatprep.subr.mxu0 0.0
    %4761 = vmatpush1.msra.mxu0 0.0
    %4762 = vmatprep.subr.mxu0 0.0
    %4763 = vmatpush1.msra.mxu0 0.0
    %4764 = vmatprep.subr.mxu0 0.0
    %4765 = vmatpush1.msra.mxu0 0.0
    %4766 = vmatprep.subr.mxu0 0.0
    %4767 = vmatpush1.msra.mxu0 0.0
    %4768 = vmatprep.subr.mxu0 0.0
    %4769 = vmatpush1.msra.mxu0 0.0
    %4770 = vmatprep.subr.mxu0 0.0
    %4771 = vmatpush1.msra.mxu0 0.0
    %4772 = vmatprep.subr.mxu0 0.0
    %4773 = vmatpush1.msra.mxu0 0.0
    %4774 = vmatprep.subr.mxu0 0.0
    %4775 = vmatpush1.msra.mxu0 0.0
    %4776 = vmatprep.subr.mxu0 0.0
    %4777 = vmatpush1.msra.mxu0 0.0
    %4778 = vmatprep.subr.mxu0 0.0
    %4779 = vmatpush1.msra.mxu0 0.0
    %4780 = vmatprep.subr.mxu0 0.0
    %4781 = vmatpush1.msra.mxu0 0.0
    %4782 = vmatprep.subr.mxu0 0.0
    %4783 = vmatpush1.msra.mxu0 0.0
    %4784 = vmatprep.subr.mxu0 0.0
    %4785 = vmatpush1.msra.mxu0 0.0
    %4786 = vmatprep.mubr.f32.mxu0 0.0
    %4787 = vmatmul.mubr.f32.gmra.mrb[0].mxu0 %v4650
    %v4788 = vpop.f32.mrb[0].mxu0
    %v4789 = vadd.f32 0.0, %v4788
    %v4790 = vpop.f32.mrb[0].mxu0
    %4791 = vdwg.mxu0
    %4792 = vmatprep.subr.mxu0 0.0
    %4793 = vmatpush1.msra.mxu0 %v3234
    %4794 = vmatprep.subr.mxu0 0.0
    %4795 = vmatpush1.msra.mxu0 %v3235
    %4796 = vmatprep.subr.mxu0 0.0
    %4797 = vmatpush1.msra.mxu0 %v3236
    %4798 = vmatprep.subr.mxu0 0.0
    %4799 = vmatpush1.msra.mxu0 %v3237
    %4800 = vmatprep.subr.mxu0 0.0
    %4801 = vmatpush1.msra.mxu0 0.0
    %4802 = vmatprep.subr.mxu0 0.0
    %4803 = vmatpush1.msra.mxu0 0.0
    %4804 = vmatprep.subr.mxu0 0.0
    %4805 = vmatpush1.msra.mxu0 0.0
    %4806 = vmatprep.subr.mxu0 0.0
    %4807 = vmatpush1.msra.mxu0 0.0
    %4808 = vmatprep.subr.mxu0 0.0
    %4809 = vmatpush1.msra.mxu0 0.0
    %4810 = vmatprep.subr.mxu0 0.0
    %4811 = vmatpush1.msra.mxu0 0.0
    %4812 = vmatprep.subr.mxu0 0.0
    %4813 = vmatpush1.msra.mxu0 0.0
    %4814 = vmatprep.subr.mxu0 0.0
    %4815 = vmatpush1.msra.mxu0 0.0
    %4816 = vmatprep.subr.mxu0 0.0
    %4817 = vmatpush1.msra.mxu0 0.0
    %4818 = vmatprep.subr.mxu0 0.0
    %4819 = vmatpush1.msra.mxu0 0.0
    %4820 = vmatprep.subr.mxu0 0.0
    %4821 = vmatpush1.msra.mxu0 0.0
    %4822 = vmatprep.subr.mxu0 0.0
    %4823 = vmatpush1.msra.mxu0 0.0
    %4824 = vmatprep.subr.mxu0 0.0
    %4825 = vmatpush1.msra.mxu0 0.0
    %4826 = vmatprep.subr.mxu0 0.0
    %4827 = vmatpush1.msra.mxu0 0.0
    %4828 = vmatprep.subr.mxu0 0.0
    %4829 = vmatpush1.msra.mxu0 0.0
    %4830 = vmatprep.subr.mxu0 0.0
    %4831 = vmatpush1.msra.mxu0 0.0
    %4832 = vmatprep.subr.mxu0 0.0
    %4833 = vmatpush1.msra.mxu0 0.0
    %4834 = vmatprep.subr.mxu0 0.0
    %4835 = vmatpush1.msra.mxu0 0.0
    %4836 = vmatprep.subr.mxu0 0.0
    %4837 = vmatpush1.msra.mxu0 0.0
    %4838 = vmatprep.subr.mxu0 0.0
    %4839 = vmatpush1.msra.mxu0 0.0
    %4840 = vmatprep.subr.mxu0 0.0
    %4841 = vmatpush1.msra.mxu0 0.0
    %4842 = vmatprep.subr.mxu0 0.0
    %4843 = vmatpush1.msra.mxu0 0.0
    %4844 = vmatprep.subr.mxu0 0.0
    %4845 = vmatpush1.msra.mxu0 0.0
    %4846 = vmatprep.subr.mxu0 0.0
    %4847 = vmatpush1.msra.mxu0 0.0
    %4848 = vmatprep.subr.mxu0 0.0
    %4849 = vmatpush1.msra.mxu0 0.0
    %4850 = vmatprep.subr.mxu0 0.0
    %4851 = vmatpush1.msra.mxu0 0.0
    %4852 = vmatprep.subr.mxu0 0.0
    %4853 = vmatpush1.msra.mxu0 0.0
    %4854 = vmatprep.subr.mxu0 0.0
    %4855 = vmatpush1.msra.mxu0 0.0
    %4856 = vmatprep.mubr.f32.mxu0 0.0
    %4857 = vmatmul.mubr.f32.gmra.mrb[0].mxu0 %v4650
    %v4858 = vpop.f32.mrb[0].mxu0
    %v4859 = vadd.f32 %v3386, %v4858
    %v4860 = vpop.f32.mrb[0].mxu0
    %4861 = vdwg.mxu0
    %v4862 = vadd.f32 %v2986, %v4719
    %v4863 = vxor.u32 %v4862, 2147483648
    %v4864 = vmul.f32 %v4863, 1.442695
    %v4865 = vpow.pop %v4864
    %v4866 = vadd.f32 %v4865, 1.0
    %v4867 = vrcp.pop %v4866
    %v4868 = vmul.f32 1.0, %v4867
    %v4869 = vadd.f32 %v3101, %v4789
    %v4870 = vxor.u32 %v4869, 2147483648
    %v4871 = vmul.f32 %v4870, 1.442695
    %v4872 = vpow.pop %v4871
    %v4873 = vadd.f32 %v4872, 1.0
    %v4874 = vrcp.pop %v4873
    %v4875 = vmul.f32 1.0, %v4874
    %v4876 = vmul.f32 %v4868, %v4859
    %v4877 = vadd.f32 %v3216, %v4876
    %v4878 = vtanh.pop %v4877
    %v4879 = vsub.f32 1.0, %v4875
    %v4880 = vmul.f32 %v4879, %v4878
    %v4881 = vmul.f32 %v4875, %v4648
    %v4882 = vadd.f32 %v4880, %v4881
    %v4884 = vsel %vm501, %v4882, 0
    %4886 = vmatprep.subr.mxu0 0.0
    %4887 = vmatpush1.msra.mxu0 %v3224
    %4888 = vmatprep.subr.mxu0 0.0
    %4889 = vmatpush1.msra.mxu0 %v3225
    %4890 = vmatprep.subr.mxu0 0.0
    %4891 = vmatpush1.msra.mxu0 %v3226
    %4892 = vmatprep.subr.mxu0 0.0
    %4893 = vmatpush1.msra.mxu0 %v3227
    %4894 = vmatprep.subr.mxu0 0.0
    %4895 = vmatpush1.msra.mxu0 0.0
    %4896 = vmatprep.subr.mxu0 0.0
    %4897 = vmatpush1.msra.mxu0 0.0
    %4898 = vmatprep.subr.mxu0 0.0
    %4899 = vmatpush1.msra.mxu0 0.0
    %4900 = vmatprep.subr.mxu0 0.0
    %4901 = vmatpush1.msra.mxu0 0.0
    %4902 = vmatprep.subr.mxu0 0.0
    %4903 = vmatpush1.msra.mxu0 0.0
    %4904 = vmatprep.subr.mxu0 0.0
    %4905 = vmatpush1.msra.mxu0 0.0
    %4906 = vmatprep.subr.mxu0 0.0
    %4907 = vmatpush1.msra.mxu0 0.0
    %4908 = vmatprep.subr.mxu0 0.0
    %4909 = vmatpush1.msra.mxu0 0.0
    %4910 = vmatprep.subr.mxu0 0.0
    %4911 = vmatpush1.msra.mxu0 0.0
    %4912 = vmatprep.subr.mxu0 0.0
    %4913 = vmatpush1.msra.mxu0 0.0
    %4914 = vmatprep.subr.mxu0 0.0
    %4915 = vmatpush1.msra.mxu0 0.0
    %4916 = vmatprep.subr.mxu0 0.0
    %4917 = vmatpush1.msra.mxu0 0.0
    %4918 = vmatprep.subr.mxu0 0.0
    %4919 = vmatpush1.msra.mxu0 0.0
    %4920 = vmatprep.subr.mxu0 0.0
    %4921 = vmatpush1.msra.mxu0 0.0
    %4922 = vmatprep.subr.mxu0 0.0
    %4923 = vmatpush1.msra.mxu0 0.0
    %4924 = vmatprep.subr.mxu0 0.0
    %4925 = vmatpush1.msra.mxu0 0.0
    %4926 = vmatprep.subr.mxu0 0.0
    %4927 = vmatpush1.msra.mxu0 0.0
    %4928 = vmatprep.subr.mxu0 0.0
    %4929 = vmatpush1.msra.mxu0 0.0
    %4930 = vmatprep.subr.mxu0 0.0
    %4931 = vmatpush1.msra.mxu0 0.0
    %4932 = vmatprep.subr.mxu0 0.0
    %4933 = vmatpush1.msra.mxu0 0.0
    %4934 = vmatprep.subr.mxu0 0.0
    %4935 = vmatpush1.msra.mxu0 0.0
    %4936 = vmatprep.subr.mxu0 0.0
    %4937 = vmatpush1.msra.mxu0 0.0
    %4938 = vmatprep.subr.mxu0 0.0
    %4939 = vmatpush1.msra.mxu0 0.0
    %4940 = vmatprep.subr.mxu0 0.0
    %4941 = vmatpush1.msra.mxu0 0.0
    %4942 = vmatprep.subr.mxu0 0.0
    %4943 = vmatpush1.msra.mxu0 0.0
    %4944 = vmatprep.subr.mxu0 0.0
    %4945 = vmatpush1.msra.mxu0 0.0
    %4946 = vmatprep.subr.mxu0 0.0
    %4947 = vmatpush1.msra.mxu0 0.0
    %4948 = vmatprep.subr.mxu0 0.0
    %4949 = vmatpush1.msra.mxu0 0.0
    %4950 = vmatprep.mubr.f32.mxu0 0.0
    %4951 = vmatmul.mubr.f32.gmra.mrb[0].mxu0 %v4884
    %v4952 = vpop.f32.mrb[0].mxu0
    %v4953 = vadd.f32 0.0, %v4952
    %v4954 = vpop.f32.mrb[0].mxu0
    %4955 = vdwg.mxu0
    %4956 = vmatprep.subr.mxu0 0.0
    %4957 = vmatpush1.msra.mxu0 %v3229
    %4958 = vmatprep.subr.mxu0 0.0
    %4959 = vmatpush1.msra.mxu0 %v3230
    %4960 = vmatprep.subr.mxu0 0.0
    %4961 = vmatpush1.msra.mxu0 %v3231
    %4962 = vmatprep.subr.mxu0 0.0
    %4963 = vmatpush1.msra.mxu0 %v3232
    %4964 = vmatprep.subr.mxu0 0.0
    %4965 = vmatpush1.msra.mxu0 0.0
    %4966 = vmatprep.subr.mxu0 0.0
    %4967 = vmatpush1.msra.mxu0 0.0
    %4968 = vmatprep.subr.mxu0 0.0
    %4969 = vmatpush1.msra.mxu0 0.0
    %4970 = vmatprep.subr.mxu0 0.0
    %4971 = vmatpush1.msra.mxu0 0.0
    %4972 = vmatprep.subr.mxu0 0.0
    %4973 = vmatpush1.msra.mxu0 0.0
    %4974 = vmatprep.subr.mxu0 0.0
    %4975 = vmatpush1.msra.mxu0 0.0
    %4976 = vmatprep.subr.mxu0 0.0
    %4977 = vmatpush1.msra.mxu0 0.0
    %4978 = vmatprep.subr.mxu0 0.0
    %4979 = vmatpush1.msra.mxu0 0.0
    %4980 = vmatprep.subr.mxu0 0.0
    %4981 = vmatpush1.msra.mxu0 0.0
    %4982 = vmatprep.subr.mxu0 0.0
    %4983 = vmatpush1.msra.mxu0 0.0
    %4984 = vmatprep.subr.mxu0 0.0
    %4985 = vmatpush1.msra.mxu0 0.0
    %4986 = vmatprep.subr.mxu0 0.0
    %4987 = vmatpush1.msra.mxu0 0.0
    %4988 = vmatprep.subr.mxu0 0.0
    %4989 = vmatpush1.msra.mxu0 0.0
    %4990 = vmatprep.subr.mxu0 0.0
    %4991 = vmatpush1.msra.mxu0 0.0
    %4992 = vmatprep.subr.mxu0 0.0
    %4993 = vmatpush1.msra.mxu0 0.0
    %4994 = vmatprep.subr.mxu0 0.0
    %4995 = vmatpush1.msra.mxu0 0.0
    %4996 = vmatprep.subr.mxu0 0.0
    %4997 = vmatpush1.msra.mxu0 0.0
    %4998 = vmatprep.subr.mxu0 0.0
    %4999 = vmatpush1.msra.mxu0 0.0
    %5000 = vmatprep.subr.mxu0 0.0
    %5001 = vmatpush1.msra.mxu0 0.0
    %5002 = vmatprep.subr.mxu0 0.0
    %5003 = vmatpush1.msra.mxu0 0.0
    %5004 = vmatprep.subr.mxu0 0.0
    %5005 = vmatpush1.msra.mxu0 0.0
    %5006 = vmatprep.subr.mxu0 0.0
    %5007 = vmatpush1.msra.mxu0 0.0
    %5008 = vmatprep.subr.mxu0 0.0
    %5009 = vmatpush1.msra.mxu0 0.0
    %5010 = vmatprep.subr.mxu0 0.0
    %5011 = vmatpush1.msra.mxu0 0.0
    %5012 = vmatprep.subr.mxu0 0.0
    %5013 = vmatpush1.msra.mxu0 0.0
    %5014 = vmatprep.subr.mxu0 0.0
    %5015 = vmatpush1.msra.mxu0 0.0
    %5016 = vmatprep.subr.mxu0 0.0
    %5017 = vmatpush1.msra.mxu0 0.0
    %5018 = vmatprep.subr.mxu0 0.0
    %5019 = vmatpush1.msra.mxu0 0.0
    %5020 = vmatprep.mubr.f32.mxu0 0.0
    %5021 = vmatmul.mubr.f32.gmra.mrb[0].mxu0 %v4884
    %v5022 = vpop.f32.mrb[0].mxu0
    %v5023 = vadd.f32 0.0, %v5022
    %v5024 = vpop.f32.mrb[0].mxu0
    %5025 = vdwg.mxu0
    %5026 = vmatprep.subr.mxu0 0.0
    %5027 = vmatpush1.msra.mxu0 %v3234
    %5028 = vmatprep.subr.mxu0 0.0
    %5029 = vmatpush1.msra.mxu0 %v3235
    %5030 = vmatprep.subr.mxu0 0.0
    %5031 = vmatpush1.msra.mxu0 %v3236
    %5032 = vmatprep.subr.mxu0 0.0
    %5033 = vmatpush1.msra.mxu0 %v3237
    %5034 = vmatprep.subr.mxu0 0.0
    %5035 = vmatpush1.msra.mxu0 0.0
    %5036 = vmatprep.subr.mxu0 0.0
    %5037 = vmatpush1.msra.mxu0 0.0
    %5038 = vmatprep.subr.mxu0 0.0
    %5039 = vmatpush1.msra.mxu0 0.0
    %5040 = vmatprep.subr.mxu0 0.0
    %5041 = vmatpush1.msra.mxu0 0.0
    %5042 = vmatprep.subr.mxu0 0.0
    %5043 = vmatpush1.msra.mxu0 0.0
    %5044 = vmatprep.subr.mxu0 0.0
    %5045 = vmatpush1.msra.mxu0 0.0
    %5046 = vmatprep.subr.mxu0 0.0
    %5047 = vmatpush1.msra.mxu0 0.0
    %5048 = vmatprep.subr.mxu0 0.0
    %5049 = vmatpush1.msra.mxu0 0.0
    %5050 = vmatprep.subr.mxu0 0.0
    %5051 = vmatpush1.msra.mxu0 0.0
    %5052 = vmatprep.subr.mxu0 0.0
    %5053 = vmatpush1.msra.mxu0 0.0
    %5054 = vmatprep.subr.mxu0 0.0
    %5055 = vmatpush1.msra.mxu0 0.0
    %5056 = vmatprep.subr.mxu0 0.0
    %5057 = vmatpush1.msra.mxu0 0.0
    %5058 = vmatprep.subr.mxu0 0.0
    %5059 = vmatpush1.msra.mxu0 0.0
    %5060 = vmatprep.subr.mxu0 0.0
    %5061 = vmatpush1.msra.mxu0 0.0
    %5062 = vmatprep.subr.mxu0 0.0
    %5063 = vmatpush1.msra.mxu0 0.0
    %5064 = vmatprep.subr.mxu0 0.0
    %5065 = vmatpush1.msra.mxu0 0.0
    %5066 = vmatprep.subr.mxu0 0.0
    %5067 = vmatpush1.msra.mxu0 0.0
    %5068 = vmatprep.subr.mxu0 0.0
    %5069 = vmatpush1.msra.mxu0 0.0
    %5070 = vmatprep.subr.mxu0 0.0
    %5071 = vmatpush1.msra.mxu0 0.0
    %5072 = vmatprep.subr.mxu0 0.0
    %5073 = vmatpush1.msra.mxu0 0.0
    %5074 = vmatprep.subr.mxu0 0.0
    %5075 = vmatpush1.msra.mxu0 0.0
    %5076 = vmatprep.subr.mxu0 0.0
    %5077 = vmatpush1.msra.mxu0 0.0
    %5078 = vmatprep.subr.mxu0 0.0
    %5079 = vmatpush1.msra.mxu0 0.0
    %5080 = vmatprep.subr.mxu0 0.0
    %5081 = vmatpush1.msra.mxu0 0.0
    %5082 = vmatprep.subr.mxu0 0.0
    %5083 = vmatpush1.msra.mxu0 0.0
    %5084 = vmatprep.subr.mxu0 0.0
    %5085 = vmatpush1.msra.mxu0 0.0
    %5086 = vmatprep.subr.mxu0 0.0
    %5087 = vmatpush1.msra.mxu0 0.0
    %5088 = vmatprep.subr.mxu0 0.0
    %5089 = vmatpush1.msra.mxu0 0.0
    %5090 = vmatprep.mubr.f32.mxu0 0.0
    %5091 = vmatmul.mubr.f32.gmra.mrb[0].mxu0 %v4884
    %v5092 = vpop.f32.mrb[0].mxu0
    %v5093 = vadd.f32 %v3386, %v5092
    %v5094 = vpop.f32.mrb[0].mxu0
    %5095 = vdwg.mxu0
    %v5096 = vadd.f32 %v2991, %v4953
    %v5097 = vxor.u32 %v5096, 2147483648
    %v5098 = vmul.f32 %v5097, 1.442695
    %v5099 = vpow.pop %v5098
    %v5100 = vadd.f32 %v5099, 1.0
    %v5101 = vrcp.pop %v5100
    %v5102 = vmul.f32 1.0, %v5101
    %v5103 = vadd.f32 %v3106, %v5023
    %v5104 = vxor.u32 %v5103, 2147483648
    %v5105 = vmul.f32 %v5104, 1.442695
    %v5106 = vpow.pop %v5105
    %v5107 = vadd.f32 %v5106, 1.0
    %v5108 = vrcp.pop %v5107
    %v5109 = vmul.f32 1.0, %v5108
    %v5110 = vmul.f32 %v5102, %v5093
    %v5111 = vadd.f32 %v3221, %v5110
    %v5112 = vtanh.pop %v5111
    %v5113 = vsub.f32 1.0, %v5109
    %v5114 = vmul.f32 %v5113, %v5112
    %v5115 = vmul.f32 %v5109, %v4882
    %v5116 = vadd.f32 %v5114, %v5115
    %v5117 = vld [vmem:[%s10] sm:$0xff]
    %v5118 = vld [vmem:[%s10 + $0x8] sm:$0xff]
    %v5119 = vld [vmem:[%s10 + $0x10] sm:$0xff]
    %v5120 = vld [vmem:[%s10 + $0x18] sm:$0xff]
    %v5121 = vld [vmem:[%s11] sm:$0x1]
    %v5123 = vlaneseq
    %v5124 = vshrl.u32 %v5123, 7
    %v5125 = vsub.s32 0, %v5124
    %v5126 = vrot.slane %v5121, %v5125
    %v5129 = vsel %vm501, %v5116, 0
    %5131 = vmatprep.subr.mxu0 0.0
    %5132 = vmatpush1.msra.mxu0 %v5117
    %5133 = vmatprep.subr.mxu0 0.0
    %5134 = vmatpush1.msra.mxu0 %v5118
    %5135 = vmatprep.subr.mxu0 0.0
    %5136 = vmatpush1.msra.mxu0 %v5119
    %5137 = vmatprep.subr.mxu0 0.0
    %5138 = vmatpush1.msra.mxu0 %v5120
    %5139 = vmatprep.subr.mxu0 0.0
    %5140 = vmatpush1.msra.mxu0 0.0
    %5141 = vmatprep.subr.mxu0 0.0
    %5142 = vmatpush1.msra.mxu0 0.0
    %5143 = vmatprep.subr.mxu0 0.0
    %5144 = vmatpush1.msra.mxu0 0.0
    %5145 = vmatprep.subr.mxu0 0.0
    %5146 = vmatpush1.msra.mxu0 0.0
    %5147 = vmatprep.subr.mxu0 0.0
    %5148 = vmatpush1.msra.mxu0 0.0
    %5149 = vmatprep.subr.mxu0 0.0
    %5150 = vmatpush1.msra.mxu0 0.0
    %5151 = vmatprep.subr.mxu0 0.0
    %5152 = vmatpush1.msra.mxu0 0.0
    %5153 = vmatprep.subr.mxu0 0.0
    %5154 = vmatpush1.msra.mxu0 0.0
    %5155 = vmatprep.subr.mxu0 0.0
    %5156 = vmatpush1.msra.mxu0 0.0
    %5157 = vmatprep.subr.mxu0 0.0
    %5158 = vmatpush1.msra.mxu0 0.0
    %5159 = vmatprep.subr.mxu0 0.0
    %5160 = vmatpush1.msra.mxu0 0.0
    %5161 = vmatprep.subr.mxu0 0.0
    %5162 = vmatpush1.msra.mxu0 0.0
    %5163 = vmatprep.subr.mxu0 0.0
    %5164 = vmatpush1.msra.mxu0 0.0
    %5165 = vmatprep.subr.mxu0 0.0
    %5166 = vmatpush1.msra.mxu0 0.0
    %5167 = vmatprep.subr.mxu0 0.0
    %5168 = vmatpush1.msra.mxu0 0.0
    %5169 = vmatprep.subr.mxu0 0.0
    %5170 = vmatpush1.msra.mxu0 0.0
    %5171 = vmatprep.subr.mxu0 0.0
    %5172 = vmatpush1.msra.mxu0 0.0
    %5173 = vmatprep.subr.mxu0 0.0
    %5174 = vmatpush1.msra.mxu0 0.0
    %5175 = vmatprep.subr.mxu0 0.0
    %5176 = vmatpush1.msra.mxu0 0.0
    %5177 = vmatprep.subr.mxu0 0.0
    %5178 = vmatpush1.msra.mxu0 0.0
    %5179 = vmatprep.subr.mxu0 0.0
    %5180 = vmatpush1.msra.mxu0 0.0
    %5181 = vmatprep.subr.mxu0 0.0
    %5182 = vmatpush1.msra.mxu0 0.0
    %5183 = vmatprep.subr.mxu0 0.0
    %5184 = vmatpush1.msra.mxu0 0.0
    %5185 = vmatprep.subr.mxu0 0.0
    %5186 = vmatpush1.msra.mxu0 0.0
    %5187 = vmatprep.subr.mxu0 0.0
    %5188 = vmatpush1.msra.mxu0 0.0
    %5189 = vmatprep.subr.mxu0 0.0
    %5190 = vmatpush1.msra.mxu0 0.0
    %5191 = vmatprep.subr.mxu0 0.0
    %5192 = vmatpush1.msra.mxu0 0.0
    %5193 = vmatprep.subr.mxu0 0.0
    %5194 = vmatpush1.msra.mxu0 0.0
    %5195 = vmatprep.mubr.f32.mxu0 0.0
    %5196 = vmatmul.mubr.f32.gmra.mrb[0].mxu0 %v3480
    %v5197 = vpop.f32.mrb[0].mxu0
    %v5198 = vadd.f32 %v5126, %v5197
    %v5199 = vpop.f32.mrb[0].mxu0
    %5200 = vmatprep.mubr.f32.mxu0 0.0
    %5201 = vmatmul.mubr.f32.gmra.mrb[0].mxu0 %v3714
    %v5202 = vpop.f32.mrb[0].mxu0
    %v5203 = vadd.f32 %v5126, %v5202
    %v5204 = vpop.f32.mrb[0].mxu0
    %5205 = vmatprep.mubr.f32.mxu0 0.0
    %5206 = vmatmul.mubr.f32.gmra.mrb[0].mxu0 %v3948
    %v5207 = vpop.f32.mrb[0].mxu0
    %v5208 = vadd.f32 %v5126, %v5207
    %v5209 = vpop.f32.mrb[0].mxu0
    %5210 = vmatprep.mubr.f32.mxu0 0.0
    %5211 = vmatmul.mubr.f32.gmra.mrb[0].mxu0 %v4182
    %v5212 = vpop.f32.mrb[0].mxu0
    %v5213 = vadd.f32 %v5126, %v5212
    %v5214 = vpop.f32.mrb[0].mxu0
    %5215 = vmatprep.mubr.f32.mxu0 0.0
    %5216 = vmatmul.mubr.f32.gmra.mrb[0].mxu0 %v4416
    %v5217 = vpop.f32.mrb[0].mxu0
    %v5218 = vadd.f32 %v5126, %v5217
    %v5219 = vpop.f32.mrb[0].mxu0
    %5220 = vmatprep.mubr.f32.mxu0 0.0
    %5221 = vmatmul.mubr.f32.gmra.mrb[0].mxu0 %v4650
    %v5222 = vpop.f32.mrb[0].mxu0
    %v5223 = vadd.f32 %v5126, %v5222
    %v5224 = vpop.f32.mrb[0].mxu0
    %5225 = vmatprep.mubr.f32.mxu0 0.0
    %5226 = vmatmul.mubr.f32.gmra.mrb[0].mxu0 %v4884
    %v5227 = vpop.f32.mrb[0].mxu0
    %v5228 = vadd.f32 %v5126, %v5227
    %v5229 = vpop.f32.mrb[0].mxu0
    %5230 = vmatprep.mubr.f32.mxu0 0.0
    %5231 = vmatmul.mubr.f32.gmra.mrb[0].mxu0 %v5129
    %v5232 = vpop.f32.mrb[0].mxu0
    %v5233 = vadd.f32 %v5126, %v5232
    %v5234 = vpop.f32.mrb[0].mxu0
    %5235 = vdwg.mxu0
    %5236 = vst.msk [vmem:[%s12] sm:$0xff] %vm90, %v5198
    %5237 = vst.msk [vmem:[%s12 + $0x8] sm:$0xff] %vm90, %v5203
    %5238 = vst.msk [vmem:[%s12 + $0x10] sm:$0xff] %vm90, %v5208
    %5239 = vst.msk [vmem:[%s12 + $0x18] sm:$0xff] %vm90, %v5213
    %5240 = vst.msk [vmem:[%s12 + $0x20] sm:$0xff] %vm90, %v5218
    %5241 = vst.msk [vmem:[%s12 + $0x28] sm:$0xff] %vm90, %v5223
    %5242 = vst.msk [vmem:[%s12 + $0x30] sm:$0xff] %vm90, %v5228
    %5243 = vst.msk [vmem:[%s12 + $0x38] sm:$0xff] %vm90, %v5233
    // Predicated region
    $region58: #{tpu_custom_call.1} parent=1 // pred_check
      _
    $region59: #{tpu_custom_call.1} parent=1 // pred_check_branch
      %5245 = sbr.rel (0) target = $region61
    $region60: #{tpu_custom_call.1} parent=1 // pred_region
      _
    $region61: #{tpu_custom_call.1} parent=1 // pred_fallthru
      _
    // Predicated region
    $region62: #{tpu_custom_call.1} parent=1 // pred_check
      _
    $region63: #{tpu_custom_call.1} parent=1 // pred_check_branch
      %5247 = sbr.rel (0) target = $region65
    $region64: #{tpu_custom_call.1} parent=1 // pred_region
      %s5249 = ssub.s32 128, 128
      %5250 = vsyncadd [#allocation4], %s5249
      %s5252 = sshll.u32 [#allocation7], 4
      %s5253 = int_to_ptr.vmem [resolvable:$true] %s5252
      %5255 = dma.vmem_to_hbm [thread:$0]  %s5253, 128, %s13, [#allocation4]
    $region65: #{tpu_custom_call.1} parent=1 // pred_fallthru
      _
    // Predicated region
    $region66: #{tpu_custom_call.1} parent=1 // pred_check
      _
    $region67: #{tpu_custom_call.1} parent=1 // pred_check_branch
      %5257 = sbr.rel (0) target = $region69
    $region68: #{tpu_custom_call.1} parent=1 // pred_region
      _
    $region69: #{tpu_custom_call.1} parent=1 // pred_fallthru
      _
    // Predicated region
    $region70: #{tpu_custom_call.1} parent=1 // pred_check
      _
    $region71: #{tpu_custom_call.1} parent=1 // pred_check_branch
      %5259 = sbr.rel (0) target = $region73
    $region72: #{tpu_custom_call.1} parent=1 // pred_region
      %5260 = dma.done [#allocation4], 128
    $region73: #{tpu_custom_call.1} parent=1 // pred_fallthru
      _
    %5261 = vsyncpa [#allocation3], 1
    %5262 = vsyncpa [#allocation6], 1
    %5263 = vsyncpa [#allocation4], 1

</llo_original>
